<compile_context>
chip_gen: v7x
topology: tpu7x:2x2x1
jax: 0.10.0
libtpu: 0.0.40
codegen_flags: <defaults>
</compile_context>

<pallas_src>
import math

import numpy as np
import jax
import jax.numpy as jnp
from jax import lax
from jax.experimental import pallas as pl
from jax.experimental.pallas import tpu as pltpu

CACHE = 64                 # `cache_num` hard-coded in SelectiveAttention.forward
N_EMBD = 32
N_HEAD = 4
HEAD_DIM = N_EMBD // N_HEAD
SEQ = 8
LN_EPS = 1e-5
GELU_DIV = 1.41421         # literal used by CustomGELU (not exactly sqrt(2))
HI = lax.Precision.HIGHEST


# ---------------------------------------------------------------------------
# Trace-time helpers
# ---------------------------------------------------------------------------
def _strip_plan(t, cache, n_embd):
    """Static plan for torch's y.transpose(1,2).contiguous().view(-1,E)[cache:].

    y_sel[r, c] = y_heads[h, d, tt]  with  col*ttot + tt = (cache + r)*E + c,
    col = h*HEAD_DIM + d.  Each output row decomposes into <=2 contiguous
    strips (col, tt in [t0, t0+n)) -> output columns [c0, c0+n).
    """
    ttot = cache + t
    plan = []
    for r in range(t):
        flat = (cache + r) * n_embd
        rem = n_embd
        strips = []
        while rem > 0:
            col, t0 = divmod(flat, ttot)
            n = min(ttot - t0, rem)
            c0 = n_embd - rem
            strips.append((col, t0, c0, n))
            flat += n
            rem -= n
        plan.append(strips)
    return plan


def _live_heads(plan):
    return sorted({s[0] // HEAD_DIM for strips in plan for s in strips})


# ---------------------------------------------------------------------------
# In-kernel math helpers
# ---------------------------------------------------------------------------
def _layernorm(x, w, b, eps):
    mu = jnp.mean(x, axis=-1, keepdims=True)
    xc = x - mu
    var = jnp.mean(xc * xc, axis=-1, keepdims=True)
    return xc * lax.rsqrt(var + eps) * w + b


def _erf(x):
    # Abramowitz & Stegun 7.1.26, max abs error ~1.5e-7.  Uses only
    # abs/where/mul/add/exp/div, which always lower in Mosaic.
    a1, a2, a3, a4, a5 = (0.254829592, -0.284496736, 1.421413741,
                          -1.453152027, 1.061405429)
    pp = 0.3275911
    sgn = jnp.where(x >= 0.0, 1.0, -1.0)
    ax = jnp.abs(x)
    t = 1.0 / (1.0 + pp * ax)
    poly = ((((a5 * t + a4) * t + a3) * t + a2) * t + a1) * t
    return sgn * (1.0 - poly * jnp.exp(-ax * ax))


# ---------------------------------------------------------------------------
# Single fused kernel for the whole Block forward.
# ---------------------------------------------------------------------------
def _block_kernel(x_ref, qc_ref, kc_ref, vc_ref, w_ref, vec_ref, out_ref):
    T, E = x_ref.shape
    D = HEAD_DIM
    ttot = CACHE + T

    x = x_ref[...]
    W = w_ref[...]       # (E, 12E): [w_attn | w_proj | w_fc | w_out^T]
    V = vec_ref[...]     # (4, 4E) : row0 = ln1_w|ln1_b|ln2_w|ln2_b
                         #           row1 = b_attn|b_proj, row2 = b_fc,
                         #           row3 = b_out|pad

    ln1_w, ln1_b = V[0:1, 0:E], V[0:1, E:2 * E]
    ln2_w, ln2_b = V[0:1, 2 * E:3 * E], V[0:1, 3 * E:4 * E]
    b_attn = V[1:2, 0:3 * E]
    b_proj = V[1:2, 3 * E:4 * E]
    b_fc = V[2:3, :]
    b_out = V[3:4, 0:E]

    w_attn = W[:, 0:3 * E]
    w_proj = W[:, 3 * E:4 * E]
    w_fc = W[:, 4 * E:8 * E]
    w_outT = W[:, 8 * E:12 * E]

    # ---- ln_1 + c_attn ------------------------------------------------------
    x_ = _layernorm(x, ln1_w, ln1_b, LN_EPS)
    qkv = jnp.dot(x_, w_attn, precision=HI,
                  preferred_element_type=jnp.float32) + b_attn
    q_new, k_new, v_new = qkv[:, 0:E], qkv[:, E:2 * E], qkv[:, 2 * E:3 * E]

    # In-sentence cache: cached rows first, current rows after (sublane concat).
    q_all = jnp.concatenate([qc_ref[...], q_new], axis=0)   # (ttot, E)
    k_all = jnp.concatenate([kc_ref[...], k_new], axis=0)
    v_all = jnp.concatenate([vc_ref[...], v_new], axis=0)

    # ---- attention, live heads only (dead-head elimination) ------------------
    # The torch slice consumes only the (head, dim, time) triples listed in the
    # static strip plan; for CACHE=64, E=32, T=8 that is head 3 only.  Heads
    # never read are mathematically dead, so they are never computed.
    plan = _strip_plan(T, CACHE, E)
    heads = _live_heads(plan)

    scale = 1.0 / math.sqrt(D)
    y_head = {}
    for h in heads:
        qh = q_all[:, h * D:(h + 1) * D] * scale      # scale folded into q
        kh = k_all[:, h * D:(h + 1) * D]
        vh = v_all[:, h * D:(h + 1) * D]
        att = lax.dot_general(qh, kh, (((1,), (1,)), ((), ())),
                              precision=HI,
                              preferred_element_type=jnp.float32)   # (ttot, ttot)
        att = att - jnp.max(att, axis=-1, keepdims=True)
        p = jnp.exp(att)
        p = p * pl.reciprocal(jnp.sum(p, axis=-1, keepdims=True), approx=False)
        y_head[h] = jnp.dot(p, vh, precision=HI,
                            preferred_element_type=jnp.float32)     # (ttot, D)

    # ---- c_proj fused with the head-permutation slice (one MXU matmul) -------
    # Build y_sel^T (E, T): column r is the strip-plan gather for output row r.
    # Pieces are sublane-aligned static slices (offsets/lengths all multiples
    # of 8 here); placement into lane r uses a tiny iota mask so no minor-axis
    # concatenate is ever emitted.
    lane_r = lax.broadcasted_iota(jnp.int32, (1, T), 1)
    y_selT = jnp.zeros((E, T), jnp.float32)
    for r, strips in enumerate(plan):
        pieces = [y_head[col // D][t0:t0 + n, (col % D):(col % D) + 1]
                  for (col, t0, c0, n) in strips]                    # (n, 1) each
        col_r = pieces[0] if len(pieces) == 1 else jnp.concatenate(pieces, axis=0)
        y_selT = y_selT + col_r * (lane_r == r).astype(jnp.float32)  # (E, T)

    # attn_out[r, :] = sum_c y_sel[r, c] * w_proj[c, :] + b_proj
    attn_out = lax.dot_general(y_selT, w_proj, (((0,), (0,)), ((), ())),
                               precision=HI,
                               preferred_element_type=jnp.float32) + b_proj

    x1 = x + attn_out

    # ---- ln_2 + MLP -----------------------------------------------------------
    h1 = _layernorm(x1, ln2_w, ln2_b, LN_EPS)
    h1 = jnp.dot(h1, w_fc, precision=HI,
                 preferred_element_type=jnp.float32) + b_fc
    h1 = h1 * 0.5 * (1.0 + _erf(h1 / GELU_DIV))                       # CustomGELU
    h1 = lax.dot_general(h1, w_outT, (((1,), (1,)), ((), ())),
                         precision=HI,
                         preferred_element_type=jnp.float32) + b_out

    # Last dim 32 (<128 lanes) => masked store; unavoidable without changing the
    # module's output shape, negligible at 8 rows.
    out_ref[...] = x1 + h1


# ---------------------------------------------------------------------------
# Host-side wrappers
# ---------------------------------------------------------------------------
def pack_params(p):
    """One-time packing of the 12 parameter tensors into 2 VMEM slabs.

    Cuts per-call kernel inputs (and their DMA descriptors / semaphore waits)
    from 16 to 6 -- a direct win since the kernel is launch/DMA-latency bound.
    """
    E = N_EMBD
    assert 4 * E == 128, "vec-slab row packing assumes n_embd == 32"
    w_slab = jnp.concatenate(
        [p["w_attn"], p["w_proj"], p["w_fc"], p["w_out"].T], axis=1)   # (E, 12E)
    vec_slab = jnp.concatenate([
        jnp.concatenate([p["ln1_w"], p["ln1_b"], p["ln2_w"], p["ln2_b"]], axis=1),
        jnp.concatenate([p["b_attn"], p["b_proj"]], axis=1),
        p["b_fc"],
        jnp.concatenate([p["b_out"], jnp.zeros((1, 3 * E), jnp.float32)], axis=1),
    ], axis=0)                                                          # (4, 4E)
    return w_slab, vec_slab


def block_forward(x, q_c, k_c, v_c, w_slab, vec_slab):
    T, E = x.shape
    ttot = CACHE + T
    n_live = len(_live_heads(_strip_plan(T, CACHE, E)))

    args = (x, q_c, k_c, v_c, w_slab, vec_slab)
    flops = 2 * (T * E * 3 * E                          # c_attn
                 + 2 * n_live * ttot * ttot * HEAD_DIM  # live-head scores + p@v
                 + T * E * E                            # fused c_proj
                 + 2 * T * E * 4 * E)                   # MLP
    transcendentals = n_live * ttot * ttot + T * 4 * E
    bytes_accessed = 4 * (sum(int(np.prod(a.shape)) for a in args) + T * E)

    return pl.pallas_call(
        _block_kernel,
        out_shape=jax.ShapeDtypeStruct((T, E), jnp.float32),
        in_specs=[pl.BlockSpec(memory_space=pltpu.MemorySpace.VMEM)] * len(args),
        out_specs=pl.BlockSpec(memory_space=pltpu.MemorySpace.VMEM),
        cost_estimate=pl.CostEstimate(flops=flops,
                                      transcendentals=transcendentals,
                                      bytes_accessed=bytes_accessed),
    )(*args)


def init_params(key):
    E = N_EMBD
    ks = jax.random.split(key, 6)
    inv_e = 1.0 / math.sqrt(E)
    inv_4e = 1.0 / math.sqrt(4 * E)
    return {
        # LayerNorm defaults: weight = 1, bias = 0
        "ln1_w": jnp.ones((1, E), jnp.float32),
        "ln1_b": jnp.zeros((1, E), jnp.float32),
        "ln2_w": jnp.ones((1, E), jnp.float32),
        "ln2_b": jnp.zeros((1, E), jnp.float32),
        # c_attn / c_proj: init_normal -> uniform_(0,1) weights, bias = 0.1
        "w_attn": jax.random.uniform(ks[0], (E, 3 * E), jnp.float32),
        "b_attn": jnp.full((1, 3 * E), 0.1, jnp.float32),
        "w_proj": jax.random.uniform(ks[1], (E, E), jnp.float32),
        "b_proj": jnp.full((1, E), 0.1, jnp.float32),
        # MLP linears: torch default U(-1/sqrt(fan_in), 1/sqrt(fan_in))
        "w_fc": jax.random.uniform(ks[2], (E, 4 * E), jnp.float32, -inv_e, inv_e),
        "b_fc": jax.random.uniform(ks[3], (1, 4 * E), jnp.float32, -inv_e, inv_e),
        "w_out": jax.random.uniform(ks[4], (4 * E, E), jnp.float32, -inv_4e, inv_4e),
        "b_out": jax.random.uniform(ks[5], (1, E), jnp.float32, -inv_4e, inv_4e),
    }


def reference(x, q_c, k_c, v_c, p):
    """Pure-JAX re-implementation of the torch forward (for verification)."""
    def ln(z, w, b):
        mu = z.mean(-1, keepdims=True)
        var = ((z - mu) ** 2).mean(-1, keepdims=True)
        return (z - mu) / jnp.sqrt(var + LN_EPS) * w + b

    x_ = ln(x, p["ln1_w"], p["ln1_b"])
    qkv = jnp.dot(x_, p["w_attn"], precision=HI) + p["b_attn"]
    q, k, v = jnp.split(qkv, 3, axis=1)
    q = jnp.concatenate([q_c, q], axis=0)
    k = jnp.concatenate([k_c, k], axis=0)
    v = jnp.concatenate([v_c, v], axis=0)
    ttot = q.shape[0]
    qh = q.reshape(ttot, N_HEAD, HEAD_DIM).transpose(1, 0, 2)
    kh = k.reshape(ttot, N_HEAD, HEAD_DIM).transpose(1, 0, 2)
    vh = v.reshape(ttot, N_HEAD, HEAD_DIM).transpose(1, 0, 2)
    att = jnp.einsum("htd,hsd->hts", qh, kh, precision=HI) * (1.0 / math.sqrt(HEAD_DIM))
    att = jax.nn.softmax(att, axis=-1)
    y = jnp.einsum("hts,hsd->htd", att, vh, precision=HI)
    y = y.transpose(0, 2, 1).reshape(-1, N_EMBD)[CACHE:, :]
    y = jnp.dot(y, p["w_proj"], precision=HI) + p["b_proj"]
    x1 = x + y
    h = ln(x1, p["ln2_w"], p["ln2_b"])
    h = jnp.dot(h, p["w_fc"], precision=HI) + p["b_fc"]
    h = h * 0.5 * (1.0 + lax.erf(h / GELU_DIV))
    h = jnp.dot(h, p["w_out"], precision=HI) + p["b_out"]
    return x1 + h


if __name__ == "__main__":
    key = jax.random.PRNGKey(0)
    kx, kq, kk, kv, kp = jax.random.split(key, 5)
    x = jax.random.normal(kx, (SEQ, N_EMBD), jnp.float32)
    q_c = jax.random.normal(kq, (CACHE, N_EMBD), jnp.float32)
    k_c = jax.random.normal(kk, (CACHE, N_EMBD), jnp.float32)
    v_c = jax.random.normal(kv, (CACHE, N_EMBD), jnp.float32)
    params = init_params(kp)
    w_slab, vec_slab = pack_params(params)   # one-time, off the per-call path

    out = jax.block_until_ready(block_forward(x, q_c, k_c, v_c, w_slab, vec_slab))
    ref = jax.block_until_ready(reference(x, q_c, k_c, v_c, params))

    assert out.shape == (SEQ, N_EMBD)
    np.testing.assert_allclose(np.asarray(out), np.asarray(ref), rtol=2e-2, atol=2e-2)
    print("KERNEL_OK")
</pallas_src>

<mosaic_0001>
module attributes {stable_mosaic.version = 11 : i64} {
  func.func @_block_kernel(%arg0: memref<8x32xf32, #tpu.memory_space<vmem>>, %arg1: memref<64x32xf32, #tpu.memory_space<vmem>>, %arg2: memref<64x32xf32, #tpu.memory_space<vmem>>, %arg3: memref<64x32xf32, #tpu.memory_space<vmem>>, %arg4: memref<32x384xf32, #tpu.memory_space<vmem>>, %arg5: memref<4x128xf32, #tpu.memory_space<vmem>>, %arg6: memref<8x32xf32, #tpu.memory_space<vmem>>) attributes {dimension_semantics = [], scalar_prefetch = 0 : i64, scratch_operands = 0 : i64, tpu.core_type = #tpu.core_type<tc>} {
    %c0 = arith.constant 0 : index
    %c0_0 = arith.constant 0 : index
    %0 = vector.load %arg0[%c0, %c0_0] : memref<8x32xf32, #tpu.memory_space<vmem>>, vector<8x32xf32>
    %c0_1 = arith.constant 0 : index
    %c0_2 = arith.constant 0 : index
    %1 = vector.load %arg4[%c0_1, %c0_2] : memref<32x384xf32, #tpu.memory_space<vmem>>, vector<32x384xf32>
    %c0_3 = arith.constant 0 : index
    %c0_4 = arith.constant 0 : index
    %2 = vector.load %arg5[%c0_3, %c0_4] : memref<4x128xf32, #tpu.memory_space<vmem>>, vector<4x128xf32>
    %3 = vector.extract_strided_slice %2 {offsets = [0, 0], sizes = [1, 32], strides = [1, 1]} : vector<4x128xf32> to vector<1x32xf32>
    %4 = vector.extract_strided_slice %2 {offsets = [0, 32], sizes = [1, 32], strides = [1, 1]} : vector<4x128xf32> to vector<1x32xf32>
    %5 = vector.extract_strided_slice %2 {offsets = [0, 64], sizes = [1, 32], strides = [1, 1]} : vector<4x128xf32> to vector<1x32xf32>
    %6 = vector.extract_strided_slice %2 {offsets = [0, 96], sizes = [1, 32], strides = [1, 1]} : vector<4x128xf32> to vector<1x32xf32>
    %7 = vector.extract_strided_slice %2 {offsets = [1, 0], sizes = [1, 96], strides = [1, 1]} : vector<4x128xf32> to vector<1x96xf32>
    %8 = vector.extract_strided_slice %2 {offsets = [1, 96], sizes = [1, 32], strides = [1, 1]} : vector<4x128xf32> to vector<1x32xf32>
    %9 = vector.extract_strided_slice %2 {offsets = [2, 0], sizes = [1, 128], strides = [1, 1]} : vector<4x128xf32> to vector<1x128xf32>
    %10 = vector.extract_strided_slice %2 {offsets = [3, 0], sizes = [1, 32], strides = [1, 1]} : vector<4x128xf32> to vector<1x32xf32>
    %11 = vector.extract_strided_slice %1 {offsets = [0, 0], sizes = [32, 96], strides = [1, 1]} : vector<32x384xf32> to vector<32x96xf32>
    %12 = vector.extract_strided_slice %1 {offsets = [0, 96], sizes = [32, 32], strides = [1, 1]} : vector<32x384xf32> to vector<32x32xf32>
    %13 = vector.extract_strided_slice %1 {offsets = [0, 128], sizes = [32, 128], strides = [1, 1]} : vector<32x384xf32> to vector<32x128xf32>
    %14 = vector.extract_strided_slice %1 {offsets = [0, 256], sizes = [32, 128], strides = [1, 1]} : vector<32x384xf32> to vector<32x128xf32>
    %cst = arith.constant dense<0.000000e+00> : vector<8xf32>
    %15 = vector.multi_reduction <add>, %0, %cst [1] : vector<8x32xf32> to vector<8xf32>
    %16 = vector.shape_cast %15 : vector<8xf32> to vector<8x1xf32>
    %cst_5 = arith.constant 3.200000e+01 : f32
    %17 = vector.broadcast %cst_5 : f32 to vector<8x1xf32>
    %18 = arith.divf %16, %17 : vector<8x1xf32>
    %19 = vector.broadcast %18 : vector<8x1xf32> to vector<8x32xf32>
    %20 = arith.subf %0, %19 : vector<8x32xf32>
    %21 = arith.mulf %20, %20 : vector<8x32xf32>
    %cst_6 = arith.constant dense<0.000000e+00> : vector<8xf32>
    %22 = vector.multi_reduction <add>, %21, %cst_6 [1] : vector<8x32xf32> to vector<8xf32>
    %23 = vector.shape_cast %22 : vector<8xf32> to vector<8x1xf32>
    %cst_7 = arith.constant 3.200000e+01 : f32
    %24 = vector.broadcast %cst_7 : f32 to vector<8x1xf32>
    %25 = arith.divf %23, %24 : vector<8x1xf32>
    %cst_8 = arith.constant 9.99999974E-6 : f32
    %26 = vector.broadcast %cst_8 : f32 to vector<8x1xf32>
    %27 = arith.addf %25, %26 : vector<8x1xf32>
    %28 = math.rsqrt %27 : vector<8x1xf32>
    %29 = vector.broadcast %28 : vector<8x1xf32> to vector<8x32xf32>
    %30 = arith.mulf %20, %29 : vector<8x32xf32>
    %31 = vector.broadcast %3 : vector<1x32xf32> to vector<8x32xf32>
    %32 = arith.mulf %30, %31 : vector<8x32xf32>
    %33 = vector.broadcast %4 : vector<1x32xf32> to vector<8x32xf32>
    %34 = arith.addf %32, %33 : vector<8x32xf32>
    %cst_9 = arith.constant dense<0.000000e+00> : vector<8x96xf32>
    %35 = tpu.matmul %34, %11, %cst_9 {dimension_numbers = #tpu.dot_dimension_numbers<[1], [0], [0], [1], [0, 0, 1, 1], [], []>, precision = #tpu.contract_precision<fp32>} : vector<8x32xf32>, vector<32x96xf32>, vector<8x96xf32> -> vector<8x96xf32>
    %36 = vector.broadcast %7 : vector<1x96xf32> to vector<8x96xf32>
    %37 = arith.addf %35, %36 : vector<8x96xf32>
    %38 = vector.extract_strided_slice %37 {offsets = [0, 0], sizes = [8, 32], strides = [1, 1]} : vector<8x96xf32> to vector<8x32xf32>
    %39 = vector.extract_strided_slice %37 {offsets = [0, 32], sizes = [8, 32], strides = [1, 1]} : vector<8x96xf32> to vector<8x32xf32>
    %40 = vector.extract_strided_slice %37 {offsets = [0, 64], sizes = [8, 32], strides = [1, 1]} : vector<8x96xf32> to vector<8x32xf32>
    %c0_10 = arith.constant 0 : index
    %c0_11 = arith.constant 0 : index
    %41 = vector.load %arg1[%c0_10, %c0_11] : memref<64x32xf32, #tpu.memory_space<vmem>>, vector<64x32xf32>
    %42 = tpu.concatenate %41, %38 in 0 : vector<64x32xf32>, vector<8x32xf32> -> vector<72x32xf32>
    %c0_12 = arith.constant 0 : index
    %c0_13 = arith.constant 0 : index
    %43 = vector.load %arg2[%c0_12, %c0_13] : memref<64x32xf32, #tpu.memory_space<vmem>>, vector<64x32xf32>
    %44 = tpu.concatenate %43, %39 in 0 : vector<64x32xf32>, vector<8x32xf32> -> vector<72x32xf32>
    %c0_14 = arith.constant 0 : index
    %c0_15 = arith.constant 0 : index
    %45 = vector.load %arg3[%c0_14, %c0_15] : memref<64x32xf32, #tpu.memory_space<vmem>>, vector<64x32xf32>
    %46 = tpu.concatenate %45, %40 in 0 : vector<64x32xf32>, vector<8x32xf32> -> vector<72x32xf32>
    %47 = vector.extract_strided_slice %42 {offsets = [0, 24], sizes = [72, 8], strides = [1, 1]} : vector<72x32xf32> to vector<72x8xf32>
    %cst_16 = arith.constant 0.353553385 : f32
    %48 = vector.broadcast %cst_16 : f32 to vector<72x8xf32>
    %49 = arith.mulf %47, %48 : vector<72x8xf32>
    %50 = vector.extract_strided_slice %44 {offsets = [0, 24], sizes = [72, 8], strides = [1, 1]} : vector<72x32xf32> to vector<72x8xf32>
    %51 = vector.extract_strided_slice %46 {offsets = [0, 24], sizes = [72, 8], strides = [1, 1]} : vector<72x32xf32> to vector<72x8xf32>
    %cst_17 = arith.constant dense<0.000000e+00> : vector<72x72xf32>
    %52 = tpu.matmul %49, %50, %cst_17 {dimension_numbers = #tpu.dot_dimension_numbers<[1], [1], [0], [0], [0, 0, 1, 0], [], []>, precision = #tpu.contract_precision<fp32>} : vector<72x8xf32>, vector<72x8xf32>, vector<72x72xf32> -> vector<72x72xf32>
    %cst_18 = arith.constant dense<0xFF800000> : vector<72xf32>
    %53 = vector.multi_reduction <maximumf>, %52, %cst_18 [1] : vector<72x72xf32> to vector<72xf32>
    %54 = vector.shape_cast %53 : vector<72xf32> to vector<72x1xf32>
    %55 = vector.broadcast %54 : vector<72x1xf32> to vector<72x72xf32>
    %56 = arith.subf %52, %55 : vector<72x72xf32>
    %57 = math.exp %56 : vector<72x72xf32>
    %cst_19 = arith.constant dense<0.000000e+00> : vector<72xf32>
    %58 = vector.multi_reduction <add>, %57, %cst_19 [1] : vector<72x72xf32> to vector<72xf32>
    %59 = vector.shape_cast %58 : vector<72xf32> to vector<72x1xf32>
    %60 = tpu.reciprocal %59 : vector<72x1xf32> -> vector<72x1xf32>
    %61 = vector.broadcast %60 : vector<72x1xf32> to vector<72x72xf32>
    %62 = arith.mulf %57, %61 : vector<72x72xf32>
    %cst_20 = arith.constant dense<0.000000e+00> : vector<72x8xf32>
    %63 = tpu.matmul %62, %51, %cst_20 {dimension_numbers = #tpu.dot_dimension_numbers<[1], [0], [0], [1], [0, 0, 1, 1], [], []>, precision = #tpu.contract_precision<fp32>} : vector<72x72xf32>, vector<72x8xf32>, vector<72x8xf32> -> vector<72x8xf32>
    %64 = tpu.iota {dimensions = array<i32: 1>} : vector<1x8xi32>
    %cst_21 = arith.constant 0.000000e+00 : f32
    %65 = vector.broadcast %cst_21 : f32 to vector<32x8xf32>
    %66 = vector.extract_strided_slice %63 {offsets = [32, 4], sizes = [32, 1], strides = [1, 1]} : vector<72x8xf32> to vector<32x1xf32>
    %c0_i32 = arith.constant 0 : i32
    %67 = vector.broadcast %c0_i32 : i32 to vector<1x8xi32>
    %68 = arith.cmpi eq, %64, %67 : vector<1x8xi32>
    %69 = arith.extui %68 : vector<1x8xi1> to vector<1x8xi32>
    %70 = arith.sitofp %69 : vector<1x8xi32> to vector<1x8xf32>
    %71 = vector.broadcast %66 : vector<32x1xf32> to vector<32x8xf32>
    %72 = vector.broadcast %70 : vector<1x8xf32> to vector<32x8xf32>
    %73 = arith.mulf %71, %72 : vector<32x8xf32>
    %74 = arith.addf %65, %73 : vector<32x8xf32>
    %75 = vector.extract_strided_slice %63 {offsets = [64, 4], sizes = [8, 1], strides = [1, 1]} : vector<72x8xf32> to vector<8x1xf32>
    %76 = vector.extract_strided_slice %63 {offsets = [0, 5], sizes = [24, 1], strides = [1, 1]} : vector<72x8xf32> to vector<24x1xf32>
    %77 = tpu.concatenate %75, %76 in 0 : vector<8x1xf32>, vector<24x1xf32> -> vector<32x1xf32>
    %c1_i32 = arith.constant 1 : i32
    %78 = vector.broadcast %c1_i32 : i32 to vector<1x8xi32>
    %79 = arith.cmpi eq, %64, %78 : vector<1x8xi32>
    %80 = arith.extui %79 : vector<1x8xi1> to vector<1x8xi32>
    %81 = arith.sitofp %80 : vector<1x8xi32> to vector<1x8xf32>
    %82 = vector.broadcast %77 : vector<32x1xf32> to vector<32x8xf32>
    %83 = vector.broadcast %81 : vector<1x8xf32> to vector<32x8xf32>
    %84 = arith.mulf %82, %83 : vector<32x8xf32>
    %85 = arith.addf %74, %84 : vector<32x8xf32>
    %86 = vector.extract_strided_slice %63 {offsets = [24, 5], sizes = [32, 1], strides = [1, 1]} : vector<72x8xf32> to vector<32x1xf32>
    %c2_i32 = arith.constant 2 : i32
    %87 = vector.broadcast %c2_i32 : i32 to vector<1x8xi32>
    %88 = arith.cmpi eq, %64, %87 : vector<1x8xi32>
    %89 = arith.extui %88 : vector<1x8xi1> to vector<1x8xi32>
    %90 = arith.sitofp %89 : vector<1x8xi32> to vector<1x8xf32>
    %91 = vector.broadcast %86 : vector<32x1xf32> to vector<32x8xf32>
    %92 = vector.broadcast %90 : vector<1x8xf32> to vector<32x8xf32>
    %93 = arith.mulf %91, %92 : vector<32x8xf32>
    %94 = arith.addf %85, %93 : vector<32x8xf32>
    %95 = vector.extract_strided_slice %63 {offsets = [56, 5], sizes = [16, 1], strides = [1, 1]} : vector<72x8xf32> to vector<16x1xf32>
    %96 = vector.extract_strided_slice %63 {offsets = [0, 6], sizes = [16, 1], strides = [1, 1]} : vector<72x8xf32> to vector<16x1xf32>
    %97 = tpu.concatenate %95, %96 in 0 : vector<16x1xf32>, vector<16x1xf32> -> vector<32x1xf32>
    %c3_i32 = arith.constant 3 : i32
    %98 = vector.broadcast %c3_i32 : i32 to vector<1x8xi32>
    %99 = arith.cmpi eq, %64, %98 : vector<1x8xi32>
    %100 = arith.extui %99 : vector<1x8xi1> to vector<1x8xi32>
    %101 = arith.sitofp %100 : vector<1x8xi32> to vector<1x8xf32>
    %102 = vector.broadcast %97 : vector<32x1xf32> to vector<32x8xf32>
    %103 = vector.broadcast %101 : vector<1x8xf32> to vector<32x8xf32>
    %104 = arith.mulf %102, %103 : vector<32x8xf32>
    %105 = arith.addf %94, %104 : vector<32x8xf32>
    %106 = vector.extract_strided_slice %63 {offsets = [16, 6], sizes = [32, 1], strides = [1, 1]} : vector<72x8xf32> to vector<32x1xf32>
    %c4_i32 = arith.constant 4 : i32
    %107 = vector.broadcast %c4_i32 : i32 to vector<1x8xi32>
    %108 = arith.cmpi eq, %64, %107 : vector<1x8xi32>
    %109 = arith.extui %108 : vector<1x8xi1> to vector<1x8xi32>
    %110 = arith.sitofp %109 : vector<1x8xi32> to vector<1x8xf32>
    %111 = vector.broadcast %106 : vector<32x1xf32> to vector<32x8xf32>
    %112 = vector.broadcast %110 : vector<1x8xf32> to vector<32x8xf32>
    %113 = arith.mulf %111, %112 : vector<32x8xf32>
    %114 = arith.addf %105, %113 : vector<32x8xf32>
    %115 = vector.extract_strided_slice %63 {offsets = [48, 6], sizes = [24, 1], strides = [1, 1]} : vector<72x8xf32> to vector<24x1xf32>
    %116 = vector.extract_strided_slice %63 {offsets = [0, 7], sizes = [8, 1], strides = [1, 1]} : vector<72x8xf32> to vector<8x1xf32>
    %117 = tpu.concatenate %115, %116 in 0 : vector<24x1xf32>, vector<8x1xf32> -> vector<32x1xf32>
    %c5_i32 = arith.constant 5 : i32
    %118 = vector.broadcast %c5_i32 : i32 to vector<1x8xi32>
    %119 = arith.cmpi eq, %64, %118 : vector<1x8xi32>
    %120 = arith.extui %119 : vector<1x8xi1> to vector<1x8xi32>
    %121 = arith.sitofp %120 : vector<1x8xi32> to vector<1x8xf32>
    %122 = vector.broadcast %117 : vector<32x1xf32> to vector<32x8xf32>
    %123 = vector.broadcast %121 : vector<1x8xf32> to vector<32x8xf32>
    %124 = arith.mulf %122, %123 : vector<32x8xf32>
    %125 = arith.addf %114, %124 : vector<32x8xf32>
    %126 = vector.extract_strided_slice %63 {offsets = [8, 7], sizes = [32, 1], strides = [1, 1]} : vector<72x8xf32> to vector<32x1xf32>
    %c6_i32 = arith.constant 6 : i32
    %127 = vector.broadcast %c6_i32 : i32 to vector<1x8xi32>
    %128 = arith.cmpi eq, %64, %127 : vector<1x8xi32>
    %129 = arith.extui %128 : vector<1x8xi1> to vector<1x8xi32>
    %130 = arith.sitofp %129 : vector<1x8xi32> to vector<1x8xf32>
    %131 = vector.broadcast %126 : vector<32x1xf32> to vector<32x8xf32>
    %132 = vector.broadcast %130 : vector<1x8xf32> to vector<32x8xf32>
    %133 = arith.mulf %131, %132 : vector<32x8xf32>
    %134 = arith.addf %125, %133 : vector<32x8xf32>
    %135 = vector.extract_strided_slice %63 {offsets = [40, 7], sizes = [32, 1], strides = [1, 1]} : vector<72x8xf32> to vector<32x1xf32>
    %c7_i32 = arith.constant 7 : i32
    %136 = vector.broadcast %c7_i32 : i32 to vector<1x8xi32>
    %137 = arith.cmpi eq, %64, %136 : vector<1x8xi32>
    %138 = arith.extui %137 : vector<1x8xi1> to vector<1x8xi32>
    %139 = arith.sitofp %138 : vector<1x8xi32> to vector<1x8xf32>
    %140 = vector.broadcast %135 : vector<32x1xf32> to vector<32x8xf32>
    %141 = vector.broadcast %139 : vector<1x8xf32> to vector<32x8xf32>
    %142 = arith.mulf %140, %141 : vector<32x8xf32>
    %143 = arith.addf %134, %142 : vector<32x8xf32>
    %cst_22 = arith.constant dense<0.000000e+00> : vector<8x32xf32>
    %144 = tpu.matmul %143, %12, %cst_22 {dimension_numbers = #tpu.dot_dimension_numbers<[0], [0], [1], [1], [0, 1, 1, 1], [], []>, precision = #tpu.contract_precision<fp32>} : vector<32x8xf32>, vector<32x32xf32>, vector<8x32xf32> -> vector<8x32xf32>
    %145 = vector.broadcast %8 : vector<1x32xf32> to vector<8x32xf32>
    %146 = arith.addf %144, %145 : vector<8x32xf32>
    %147 = arith.addf %0, %146 : vector<8x32xf32>
    %cst_23 = arith.constant dense<0.000000e+00> : vector<8xf32>
    %148 = vector.multi_reduction <add>, %147, %cst_23 [1] : vector<8x32xf32> to vector<8xf32>
    %149 = vector.shape_cast %148 : vector<8xf32> to vector<8x1xf32>
    %cst_24 = arith.constant 3.200000e+01 : f32
    %150 = vector.broadcast %cst_24 : f32 to vector<8x1xf32>
    %151 = arith.divf %149, %150 : vector<8x1xf32>
    %152 = vector.broadcast %151 : vector<8x1xf32> to vector<8x32xf32>
    %153 = arith.subf %147, %152 : vector<8x32xf32>
    %154 = arith.mulf %153, %153 : vector<8x32xf32>
    %cst_25 = arith.constant dense<0.000000e+00> : vector<8xf32>
    %155 = vector.multi_reduction <add>, %154, %cst_25 [1] : vector<8x32xf32> to vector<8xf32>
    %156 = vector.shape_cast %155 : vector<8xf32> to vector<8x1xf32>
    %cst_26 = arith.constant 3.200000e+01 : f32
    %157 = vector.broadcast %cst_26 : f32 to vector<8x1xf32>
    %158 = arith.divf %156, %157 : vector<8x1xf32>
    %cst_27 = arith.constant 9.99999974E-6 : f32
    %159 = vector.broadcast %cst_27 : f32 to vector<8x1xf32>
    %160 = arith.addf %158, %159 : vector<8x1xf32>
    %161 = math.rsqrt %160 : vector<8x1xf32>
    %162 = vector.broadcast %161 : vector<8x1xf32> to vector<8x32xf32>
    %163 = arith.mulf %153, %162 : vector<8x32xf32>
    %164 = vector.broadcast %5 : vector<1x32xf32> to vector<8x32xf32>
    %165 = arith.mulf %163, %164 : vector<8x32xf32>
    %166 = vector.broadcast %6 : vector<1x32xf32> to vector<8x32xf32>
    %167 = arith.addf %165, %166 : vector<8x32xf32>
    %cst_28 = arith.constant dense<0.000000e+00> : vector<8x128xf32>
    %168 = tpu.matmul %167, %13, %cst_28 {dimension_numbers = #tpu.dot_dimension_numbers<[1], [0], [0], [1], [0, 0, 1, 1], [], []>, precision = #tpu.contract_precision<fp32>} : vector<8x32xf32>, vector<32x128xf32>, vector<8x128xf32> -> vector<8x128xf32>
    %169 = vector.broadcast %9 : vector<1x128xf32> to vector<8x128xf32>
    %170 = arith.addf %168, %169 : vector<8x128xf32>
    %cst_29 = arith.constant 5.000000e-01 : f32
    %171 = vector.broadcast %cst_29 : f32 to vector<8x128xf32>
    %172 = arith.mulf %170, %171 : vector<8x128xf32>
    %cst_30 = arith.constant 1.414210e+00 : f32
    %173 = vector.broadcast %cst_30 : f32 to vector<8x128xf32>
    %174 = arith.divf %170, %173 : vector<8x128xf32>
    %cst_31 = arith.constant 0.000000e+00 : f32
    %175 = vector.broadcast %cst_31 : f32 to vector<8x128xf32>
    %176 = arith.cmpf oge, %174, %175 : vector<8x128xf32>
    %cst_32 = arith.constant 1.000000e+00 : f32
    %cst_33 = arith.constant -1.000000e+00 : f32
    %177 = vector.broadcast %cst_32 : f32 to vector<8x128xf32>
    %178 = vector.broadcast %cst_33 : f32 to vector<8x128xf32>
    %179 = arith.select %176, %177, %178 : vector<8x128xi1>, vector<8x128xf32>
    %180 = math.absf %174 : vector<8x128xf32>
    %cst_34 = arith.constant 0.327591091 : f32
    %181 = vector.broadcast %cst_34 : f32 to vector<8x128xf32>
    %182 = arith.mulf %181, %180 : vector<8x128xf32>
    %cst_35 = arith.constant 1.000000e+00 : f32
    %183 = vector.broadcast %cst_35 : f32 to vector<8x128xf32>
    %184 = arith.addf %183, %182 : vector<8x128xf32>
    %cst_36 = arith.constant 1.000000e+00 : f32
    %185 = vector.broadcast %cst_36 : f32 to vector<8x128xf32>
    %186 = arith.divf %185, %184 : vector<8x128xf32>
    %cst_37 = arith.constant 1.06140542 : f32
    %187 = vector.broadcast %cst_37 : f32 to vector<8x128xf32>
    %188 = arith.mulf %187, %186 : vector<8x128xf32>
    %cst_38 = arith.constant -1.45315206 : f32
    %189 = vector.broadcast %cst_38 : f32 to vector<8x128xf32>
    %190 = arith.addf %188, %189 : vector<8x128xf32>
    %191 = arith.mulf %190, %186 : vector<8x128xf32>
    %cst_39 = arith.constant 1.42141378 : f32
    %192 = vector.broadcast %cst_39 : f32 to vector<8x128xf32>
    %193 = arith.addf %191, %192 : vector<8x128xf32>
    %194 = arith.mulf %193, %186 : vector<8x128xf32>
    %cst_40 = arith.constant -0.284496725 : f32
    %195 = vector.broadcast %cst_40 : f32 to vector<8x128xf32>
    %196 = arith.addf %194, %195 : vector<8x128xf32>
    %197 = arith.mulf %196, %186 : vector<8x128xf32>
    %cst_41 = arith.constant 0.254829586 : f32
    %198 = vector.broadcast %cst_41 : f32 to vector<8x128xf32>
    %199 = arith.addf %197, %198 : vector<8x128xf32>
    %200 = arith.mulf %199, %186 : vector<8x128xf32>
    %cst_42 = arith.constant 0.000000e+00 : f32
    %201 = vector.broadcast %cst_42 : f32 to vector<8x128xf32>
    %202 = arith.subf %201, %180 : vector<8x128xf32>
    %203 = arith.mulf %202, %180 : vector<8x128xf32>
    %204 = math.exp %203 : vector<8x128xf32>
    %205 = arith.mulf %200, %204 : vector<8x128xf32>
    %cst_43 = arith.constant 1.000000e+00 : f32
    %206 = vector.broadcast %cst_43 : f32 to vector<8x128xf32>
    %207 = arith.subf %206, %205 : vector<8x128xf32>
    %208 = arith.mulf %179, %207 : vector<8x128xf32>
    %cst_44 = arith.constant 1.000000e+00 : f32
    %209 = vector.broadcast %cst_44 : f32 to vector<8x128xf32>
    %210 = arith.addf %209, %208 : vector<8x128xf32>
    %211 = arith.mulf %172, %210 : vector<8x128xf32>
    %cst_45 = arith.constant dense<0.000000e+00> : vector<8x32xf32>
    %212 = tpu.matmul %211, %14, %cst_45 {dimension_numbers = #tpu.dot_dimension_numbers<[1], [1], [0], [0], [0, 0, 1, 0], [], []>, precision = #tpu.contract_precision<fp32>} : vector<8x128xf32>, vector<32x128xf32>, vector<8x32xf32> -> vector<8x32xf32>
    %213 = vector.broadcast %10 : vector<1x32xf32> to vector<8x32xf32>
    %214 = arith.addf %212, %213 : vector<8x32xf32>
    %215 = arith.addf %147, %214 : vector<8x32xf32>
    %c0_46 = arith.constant 0 : index
    %c0_47 = arith.constant 0 : index
    %216 = vector.load %arg6[%c0_46, %c0_47] : memref<8x32xf32, #tpu.memory_space<vmem>>, vector<8x32xf32>
    tpu.vector_store %arg6[%c0_46, %c0_47], %215 {strides = array<i32>} : memref<8x32xf32, #tpu.memory_space<vmem>>, vector<8x32xf32>,
    return
  }
}

</mosaic_0001>

<llo_original>
// kernel: tpu_custom_call.1
$region0: #{tpu_custom_call.1}
  #allocation0 [shape = 'u32[]', space=smem, size = 0x4, offset = 0x4, fixed_abs, tag = 'smem constant byte address 0x4 - core index']
  #allocation1 [shape = 'u32[144,128]{1,0:T(1,128)}', space=vmem, size = 0x12000, scoped, tag = 'internal scratch']
  %s0 = inlined_call_operand.vmem [shape: f32[8,32], index: 0, kind: input, shape index: {}]
  %s1 = inlined_call_operand.vmem [shape: f32[64,32], index: 1, kind: input, shape index: {}]
  %s2 = inlined_call_operand.vmem [shape: f32[64,32], index: 2, kind: input, shape index: {}]
  %s3 = inlined_call_operand.vmem [shape: f32[64,32], index: 3, kind: input, shape index: {}]
  %s4 = inlined_call_operand.vmem [shape: f32[32,384], index: 4, kind: input, shape index: {}]
  %s5 = inlined_call_operand.vmem [shape: f32[4,128], index: 5, kind: input, shape index: {}]
  %s6 = inlined_call_operand.hbm [shape: f32[8,32], index: 6, kind: output, shape index: {}]
  %s7 = sld [smem:[#allocation0]]
  $region34: #{tpu_custom_call.1} parent=0
    _
  %s9 = ssub.s32 1, %s7
  %s10 = scalar_select 0, %s9, %s7
  $region1: #{tpu_custom_call.1} parent=0
    #allocation2 [shape = 'u8[4096]{0}', space=vmem, size = 0x1000, scoped, tag = 'output window, operand 0, single buffered']
    #allocation3 [shape = 's32[1]{0}', space=sflag, size = 0x4, scoped, tag = 'scoped memory for tpu_custom_call.1']
    %11 = vsyncpa [#allocation3], 0
    // Predicated region
    $region2: #{tpu_custom_call.1} parent=1 // pred_check
      _
    $region3: #{tpu_custom_call.1} parent=1 // pred_check_branch
      %13 = sbr.rel (0) target = $region5
    $region4: #{tpu_custom_call.1} parent=1 // pred_region
      _
    $region5: #{tpu_custom_call.1} parent=1 // pred_fallthru
      _
    // Predicated region
    $region6: #{tpu_custom_call.1} parent=1 // pred_check
      _
    $region7: #{tpu_custom_call.1} parent=1 // pred_check_branch
      %15 = sbr.rel (0) target = $region9
    $region8: #{tpu_custom_call.1} parent=1 // pred_region
      _
    $region9: #{tpu_custom_call.1} parent=1 // pred_fallthru
      _
    // Predicated region
    $region10: #{tpu_custom_call.1} parent=1 // pred_check
      _
    $region11: #{tpu_custom_call.1} parent=1 // pred_check_branch
      %17 = sbr.rel (0) target = $region13
    $region12: #{tpu_custom_call.1} parent=1 // pred_region
      _
    $region13: #{tpu_custom_call.1} parent=1 // pred_fallthru
      _
    // Predicated region
    $region14: #{tpu_custom_call.1} parent=1 // pred_check
      _
    $region15: #{tpu_custom_call.1} parent=1 // pred_check_branch
      %19 = sbr.rel (0) target = $region17
    $region16: #{tpu_custom_call.1} parent=1 // pred_region
      _
    $region17: #{tpu_custom_call.1} parent=1 // pred_fallthru
      _
    // Predicated region
    $region18: #{tpu_custom_call.1} parent=1 // pred_check
      _
    $region19: #{tpu_custom_call.1} parent=1 // pred_check_branch
      %21 = sbr.rel (0) target = $region21
    $region20: #{tpu_custom_call.1} parent=1 // pred_region
      _
    $region21: #{tpu_custom_call.1} parent=1 // pred_fallthru
      _
    // Predicated region
    $region22: #{tpu_custom_call.1} parent=1 // pred_check
      _
    $region23: #{tpu_custom_call.1} parent=1 // pred_check_branch
      %23 = sbr.rel (0) target = $region25
    $region24: #{tpu_custom_call.1} parent=1 // pred_region
      _
    $region25: #{tpu_custom_call.1} parent=1 // pred_fallthru
      _
    %v24 = vld [vmem:[%s0] sm:$0xff]
    %v25 = vld [vmem:[%s4] sm:$0xff]
    %v26 = vld [vmem:[%s4 + $0x8] sm:$0xff]
    %v27 = vld [vmem:[%s4 + $0x10] sm:$0xff]
    %v28 = vld [vmem:[%s4 + $0x18] sm:$0xff]
    %v29 = vld [vmem:[%s4 + $0x20] sm:$0xff]
    %v30 = vld [vmem:[%s4 + $0x28] sm:$0xff]
    %v31 = vld [vmem:[%s4 + $0x30] sm:$0xff]
    %v32 = vld [vmem:[%s4 + $0x38] sm:$0xff]
    %v33 = vld [vmem:[%s4 + $0x40] sm:$0xff]
    %v34 = vld [vmem:[%s4 + $0x48] sm:$0xff]
    %v35 = vld [vmem:[%s4 + $0x50] sm:$0xff]
    %v36 = vld [vmem:[%s4 + $0x58] sm:$0xff]
    %v37 = vld [vmem:[%s5] sm:$0xf]
    %vm38 = vcmask 261120
    %v39 = vsel %vm38, %v24, 0.0
    %40 = vadd.xlane.f32.xlu0 %v39
    %v41 = vpop.xlane.xlu0 %40
    %v42 = vrcp.pop 32.0
    %v43 = vmul.f32 %v41, %v42
    %v44 = vsub.f32 %v24, %v43
    %v45 = vmul.f32 %v44, %v44
    %v46 = vsel %vm38, %v45, 0.0
    %47 = vadd.xlane.f32.xlu0 %v46
    %v48 = vpop.xlane.xlu0 %47
    %v49 = vmul.f32 %v48, %v42
    %v50 = vadd.f32 %v49, 1e-05
    %v51 = vrsqrt.pop %v50
    %v52 = vmul.f32 %v44, %v51
    %v53 = vlaneseq
    %v54 = vshrl.u32 %v53, 7
    %v55 = vsub.s32 0, %v54
    %v56 = vrot.slane %v37, %v55
    %v57 = vmul.f32 %v52, %v56
    %59 = vrot.lane.b32.xlu0 %v56, 96
    %v60 = vpop.permute.xlu0 %59
    %v62 = vadd.f32 %v57, %v60
    %v63 = vlaneseq
    %v64 = vshrl.u32 %v63, 7
    %v65 = vsub.s32 1, %v64
    %v66 = vrot.slane %v37, %v65
    %v68 = vsel %vm38, %v62, 0
    %70 = vmatprep.subr.mxu0 0.0
    %v71 = vand.u32 %v25, 4294901760
    %72 = vmatpush1.msra.mxu0 %v71
    %73 = vmatprep.subr.mxu0 0.0
    %v74 = vand.u32 %v28, 4294901760
    %75 = vmatpush1.msra.mxu0 %v74
    %76 = vmatprep.subr.mxu0 0.0
    %v77 = vand.u32 %v31, 4294901760
    %78 = vmatpush1.msra.mxu0 %v77
    %79 = vmatprep.subr.mxu0 0.0
    %v80 = vand.u32 %v34, 4294901760
    %81 = vmatpush1.msra.mxu0 %v80
    %82 = vmatprep.subr.mxu0 0.0
    %83 = vmatpush1.msra.mxu0 0.0
    %84 = vmatprep.subr.mxu0 0.0
    %85 = vmatpush1.msra.mxu0 0.0
    %86 = vmatprep.subr.mxu0 0.0
    %87 = vmatpush1.msra.mxu0 0.0
    %88 = vmatprep.subr.mxu0 0.0
    %89 = vmatpush1.msra.mxu0 0.0
    %90 = vmatprep.subr.mxu0 0.0
    %91 = vmatpush1.msra.mxu0 0.0
    %92 = vmatprep.subr.mxu0 0.0
    %93 = vmatpush1.msra.mxu0 0.0
    %94 = vmatprep.subr.mxu0 0.0
    %95 = vmatpush1.msra.mxu0 0.0
    %96 = vmatprep.subr.mxu0 0.0
    %97 = vmatpush1.msra.mxu0 0.0
    %98 = vmatprep.subr.mxu0 0.0
    %99 = vmatpush1.msra.mxu0 0.0
    %100 = vmatprep.subr.mxu0 0.0
    %101 = vmatpush1.msra.mxu0 0.0
    %102 = vmatprep.subr.mxu0 0.0
    %103 = vmatpush1.msra.mxu0 0.0
    %104 = vmatprep.subr.mxu0 0.0
    %105 = vmatpush1.msra.mxu0 0.0
    %106 = vmatprep.subr.mxu0 0.0
    %107 = vmatpush1.msra.mxu0 0.0
    %108 = vmatprep.subr.mxu0 0.0
    %109 = vmatpush1.msra.mxu0 0.0
    %110 = vmatprep.subr.mxu0 0.0
    %111 = vmatpush1.msra.mxu0 0.0
    %112 = vmatprep.subr.mxu0 0.0
    %113 = vmatpush1.msra.mxu0 0.0
    %114 = vmatprep.subr.mxu0 0.0
    %115 = vmatpush1.msra.mxu0 0.0
    %116 = vmatprep.subr.mxu0 0.0
    %117 = vmatpush1.msra.mxu0 0.0
    %118 = vmatprep.subr.mxu0 0.0
    %119 = vmatpush1.msra.mxu0 0.0
    %120 = vmatprep.subr.mxu0 0.0
    %121 = vmatpush1.msra.mxu0 0.0
    %122 = vmatprep.subr.mxu0 0.0
    %123 = vmatpush1.msra.mxu0 0.0
    %124 = vmatprep.subr.mxu0 0.0
    %125 = vmatpush1.msra.mxu0 0.0
    %126 = vmatprep.subr.mxu0 0.0
    %127 = vmatpush1.msra.mxu0 0.0
    %128 = vmatprep.subr.mxu0 0.0
    %129 = vmatpush1.msra.mxu0 0.0
    %130 = vmatprep.subr.mxu0 0.0
    %131 = vmatpush1.msra.mxu0 0.0
    %132 = vmatprep.subr.mxu0 0.0
    %133 = vmatpush1.msra.mxu0 0.0
    %134 = vmatprep.subr.mxu0 0.0
    %135 = vmatpush1.msra.mxu0 0.0
    %136 = vmatprep.subr.mxu0 0.0
    %137 = vmatpush1.msra.mxu0 0.0
    %138 = vmatprep.mubr.f32.mxu0 0.0
    %v139 = vand.u32 %v68, 4294901760
    %v140 = vsub.f32 %v68, %v139
    %v141 = vand.u32 %v140, 4294901760
    %v142 = vsub.f32 %v140, %v141
    %v143 = vand.u32 %v142, 4294901760
    %144 = vmatmul.mubr.f32.gmra.mrb[0].mxu0 %v143
    %v145 = vpop.f32.mrb[0].mxu0
    %v146 = vadd.f32 %v66, %v145
    %v147 = vpop.f32.mrb[0].mxu0
    %148 = vdwg.mxu0
    %149 = vmatprep.subr.mxu0 0.0
    %v150 = vand.u32 %v25, 4294901760
    %v151 = vsub.f32 %v25, %v150
    %v152 = vand.u32 %v151, 4294901760
    %v153 = vsub.f32 %v151, %v152
    %v154 = vand.u32 %v153, 4294901760
    %155 = vmatpush1.msra.mxu0 %v154
    %156 = vmatprep.subr.mxu0 0.0
    %v157 = vand.u32 %v28, 4294901760
    %v158 = vsub.f32 %v28, %v157
    %v159 = vand.u32 %v158, 4294901760
    %v160 = vsub.f32 %v158, %v159
    %v161 = vand.u32 %v160, 4294901760
    %162 = vmatpush1.msra.mxu0 %v161
    %163 = vmatprep.subr.mxu0 0.0
    %v164 = vand.u32 %v31, 4294901760
    %v165 = vsub.f32 %v31, %v164
    %v166 = vand.u32 %v165, 4294901760
    %v167 = vsub.f32 %v165, %v166
    %v168 = vand.u32 %v167, 4294901760
    %169 = vmatpush1.msra.mxu0 %v168
    %170 = vmatprep.subr.mxu0 0.0
    %v171 = vand.u32 %v34, 4294901760
    %v172 = vsub.f32 %v34, %v171
    %v173 = vand.u32 %v172, 4294901760
    %v174 = vsub.f32 %v172, %v173
    %v175 = vand.u32 %v174, 4294901760
    %176 = vmatpush1.msra.mxu0 %v175
    %177 = vmatprep.subr.mxu0 0.0
    %178 = vmatpush1.msra.mxu0 0.0
    %179 = vmatprep.subr.mxu0 0.0
    %180 = vmatpush1.msra.mxu0 0.0
    %181 = vmatprep.subr.mxu0 0.0
    %182 = vmatpush1.msra.mxu0 0.0
    %183 = vmatprep.subr.mxu0 0.0
    %184 = vmatpush1.msra.mxu0 0.0
    %185 = vmatprep.subr.mxu0 0.0
    %186 = vmatpush1.msra.mxu0 0.0
    %187 = vmatprep.subr.mxu0 0.0
    %188 = vmatpush1.msra.mxu0 0.0
    %189 = vmatprep.subr.mxu0 0.0
    %190 = vmatpush1.msra.mxu0 0.0
    %191 = vmatprep.subr.mxu0 0.0
    %192 = vmatpush1.msra.mxu0 0.0
    %193 = vmatprep.subr.mxu0 0.0
    %194 = vmatpush1.msra.mxu0 0.0
    %195 = vmatprep.subr.mxu0 0.0
    %196 = vmatpush1.msra.mxu0 0.0
    %197 = vmatprep.subr.mxu0 0.0
    %198 = vmatpush1.msra.mxu0 0.0
    %199 = vmatprep.subr.mxu0 0.0
    %200 = vmatpush1.msra.mxu0 0.0
    %201 = vmatprep.subr.mxu0 0.0
    %202 = vmatpush1.msra.mxu0 0.0
    %203 = vmatprep.subr.mxu0 0.0
    %204 = vmatpush1.msra.mxu0 0.0
    %205 = vmatprep.subr.mxu0 0.0
    %206 = vmatpush1.msra.mxu0 0.0
    %207 = vmatprep.subr.mxu0 0.0
    %208 = vmatpush1.msra.mxu0 0.0
    %209 = vmatprep.subr.mxu0 0.0
    %210 = vmatpush1.msra.mxu0 0.0
    %211 = vmatprep.subr.mxu0 0.0
    %212 = vmatpush1.msra.mxu0 0.0
    %213 = vmatprep.subr.mxu0 0.0
    %214 = vmatpush1.msra.mxu0 0.0
    %215 = vmatprep.subr.mxu0 0.0
    %216 = vmatpush1.msra.mxu0 0.0
    %217 = vmatprep.subr.mxu0 0.0
    %218 = vmatpush1.msra.mxu0 0.0
    %219 = vmatprep.subr.mxu0 0.0
    %220 = vmatpush1.msra.mxu0 0.0
    %221 = vmatprep.subr.mxu0 0.0
    %222 = vmatpush1.msra.mxu0 0.0
    %223 = vmatprep.subr.mxu0 0.0
    %224 = vmatpush1.msra.mxu0 0.0
    %225 = vmatprep.subr.mxu0 0.0
    %226 = vmatpush1.msra.mxu0 0.0
    %227 = vmatprep.subr.mxu0 0.0
    %228 = vmatpush1.msra.mxu0 0.0
    %229 = vmatprep.subr.mxu0 0.0
    %230 = vmatpush1.msra.mxu0 0.0
    %231 = vmatprep.subr.mxu0 0.0
    %232 = vmatpush1.msra.mxu0 0.0
    %233 = vmatprep.mubr.f32.mxu0 0.0
    %v234 = vand.u32 %v68, 4294901760
    %235 = vmatmul.mubr.f32.gmra.mrb[0].mxu0 %v234
    %v236 = vpop.f32.mrb[0].mxu0
    %v237 = vadd.f32 %v146, %v236
    %v238 = vpop.f32.mrb[0].mxu0
    %239 = vdwg.mxu0
    %240 = vmatprep.subr.mxu0 0.0
    %v241 = vand.u32 %v25, 4294901760
    %v242 = vsub.f32 %v25, %v241
    %243 = vmatpush1.msra.mxu0 %v242
    %244 = vmatprep.subr.mxu0 0.0
    %v245 = vand.u32 %v28, 4294901760
    %v246 = vsub.f32 %v28, %v245
    %247 = vmatpush1.msra.mxu0 %v246
    %248 = vmatprep.subr.mxu0 0.0
    %v249 = vand.u32 %v31, 4294901760
    %v250 = vsub.f32 %v31, %v249
    %251 = vmatpush1.msra.mxu0 %v250
    %252 = vmatprep.subr.mxu0 0.0
    %v253 = vand.u32 %v34, 4294901760
    %v254 = vsub.f32 %v34, %v253
    %255 = vmatpush1.msra.mxu0 %v254
    %256 = vmatprep.subr.mxu0 0.0
    %257 = vmatpush1.msra.mxu0 0.0
    %258 = vmatprep.subr.mxu0 0.0
    %259 = vmatpush1.msra.mxu0 0.0
    %260 = vmatprep.subr.mxu0 0.0
    %261 = vmatpush1.msra.mxu0 0.0
    %262 = vmatprep.subr.mxu0 0.0
    %263 = vmatpush1.msra.mxu0 0.0
    %264 = vmatprep.subr.mxu0 0.0
    %265 = vmatpush1.msra.mxu0 0.0
    %266 = vmatprep.subr.mxu0 0.0
    %267 = vmatpush1.msra.mxu0 0.0
    %268 = vmatprep.subr.mxu0 0.0
    %269 = vmatpush1.msra.mxu0 0.0
    %270 = vmatprep.subr.mxu0 0.0
    %271 = vmatpush1.msra.mxu0 0.0
    %272 = vmatprep.subr.mxu0 0.0
    %273 = vmatpush1.msra.mxu0 0.0
    %274 = vmatprep.subr.mxu0 0.0
    %275 = vmatpush1.msra.mxu0 0.0
    %276 = vmatprep.subr.mxu0 0.0
    %277 = vmatpush1.msra.mxu0 0.0
    %278 = vmatprep.subr.mxu0 0.0
    %279 = vmatpush1.msra.mxu0 0.0
    %280 = vmatprep.subr.mxu0 0.0
    %281 = vmatpush1.msra.mxu0 0.0
    %282 = vmatprep.subr.mxu0 0.0
    %283 = vmatpush1.msra.mxu0 0.0
    %284 = vmatprep.subr.mxu0 0.0
    %285 = vmatpush1.msra.mxu0 0.0
    %286 = vmatprep.subr.mxu0 0.0
    %287 = vmatpush1.msra.mxu0 0.0
    %288 = vmatprep.subr.mxu0 0.0
    %289 = vmatpush1.msra.mxu0 0.0
    %290 = vmatprep.subr.mxu0 0.0
    %291 = vmatpush1.msra.mxu0 0.0
    %292 = vmatprep.subr.mxu0 0.0
    %293 = vmatpush1.msra.mxu0 0.0
    %294 = vmatprep.subr.mxu0 0.0
    %295 = vmatpush1.msra.mxu0 0.0
    %296 = vmatprep.subr.mxu0 0.0
    %297 = vmatpush1.msra.mxu0 0.0
    %298 = vmatprep.subr.mxu0 0.0
    %299 = vmatpush1.msra.mxu0 0.0
    %300 = vmatprep.subr.mxu0 0.0
    %301 = vmatpush1.msra.mxu0 0.0
    %302 = vmatprep.subr.mxu0 0.0
    %303 = vmatpush1.msra.mxu0 0.0
    %304 = vmatprep.subr.mxu0 0.0
    %305 = vmatpush1.msra.mxu0 0.0
    %306 = vmatprep.subr.mxu0 0.0
    %307 = vmatpush1.msra.mxu0 0.0
    %308 = vmatprep.subr.mxu0 0.0
    %309 = vmatpush1.msra.mxu0 0.0
    %310 = vmatprep.subr.mxu0 0.0
    %311 = vmatpush1.msra.mxu0 0.0
    %312 = vmatprep.mubr.f32.mxu0 0.0
    %v313 = vand.u32 %v68, 4294901760
    %v314 = vsub.f32 %v68, %v313
    %315 = vmatmul.mubr.f32.gmra.mrb[0].mxu0 %v314
    %v316 = vpop.f32.mrb[0].mxu0
    %v317 = vadd.f32 %v237, %v316
    %v318 = vpop.f32.mrb[0].mxu0
    %319 = vdwg.mxu0
    %320 = vmatprep.subr.mxu0 0.0
    %v321 = vand.u32 %v25, 4294901760
    %322 = vmatpush1.msra.mxu0 %v321
    %323 = vmatprep.subr.mxu0 0.0
    %v324 = vand.u32 %v28, 4294901760
    %325 = vmatpush1.msra.mxu0 %v324
    %326 = vmatprep.subr.mxu0 0.0
    %v327 = vand.u32 %v31, 4294901760
    %328 = vmatpush1.msra.mxu0 %v327
    %329 = vmatprep.subr.mxu0 0.0
    %v330 = vand.u32 %v34, 4294901760
    %331 = vmatpush1.msra.mxu0 %v330
    %332 = vmatprep.subr.mxu0 0.0
    %333 = vmatpush1.msra.mxu0 0.0
    %334 = vmatprep.subr.mxu0 0.0
    %335 = vmatpush1.msra.mxu0 0.0
    %336 = vmatprep.subr.mxu0 0.0
    %337 = vmatpush1.msra.mxu0 0.0
    %338 = vmatprep.subr.mxu0 0.0
    %339 = vmatpush1.msra.mxu0 0.0
    %340 = vmatprep.subr.mxu0 0.0
    %341 = vmatpush1.msra.mxu0 0.0
    %342 = vmatprep.subr.mxu0 0.0
    %343 = vmatpush1.msra.mxu0 0.0
    %344 = vmatprep.subr.mxu0 0.0
    %345 = vmatpush1.msra.mxu0 0.0
    %346 = vmatprep.subr.mxu0 0.0
    %347 = vmatpush1.msra.mxu0 0.0
    %348 = vmatprep.subr.mxu0 0.0
    %349 = vmatpush1.msra.mxu0 0.0
    %350 = vmatprep.subr.mxu0 0.0
    %351 = vmatpush1.msra.mxu0 0.0
    %352 = vmatprep.subr.mxu0 0.0
    %353 = vmatpush1.msra.mxu0 0.0
    %354 = vmatprep.subr.mxu0 0.0
    %355 = vmatpush1.msra.mxu0 0.0
    %356 = vmatprep.subr.mxu0 0.0
    %357 = vmatpush1.msra.mxu0 0.0
    %358 = vmatprep.subr.mxu0 0.0
    %359 = vmatpush1.msra.mxu0 0.0
    %360 = vmatprep.subr.mxu0 0.0
    %361 = vmatpush1.msra.mxu0 0.0
    %362 = vmatprep.subr.mxu0 0.0
    %363 = vmatpush1.msra.mxu0 0.0
    %364 = vmatprep.subr.mxu0 0.0
    %365 = vmatpush1.msra.mxu0 0.0
    %366 = vmatprep.subr.mxu0 0.0
    %367 = vmatpush1.msra.mxu0 0.0
    %368 = vmatprep.subr.mxu0 0.0
    %369 = vmatpush1.msra.mxu0 0.0
    %370 = vmatprep.subr.mxu0 0.0
    %371 = vmatpush1.msra.mxu0 0.0
    %372 = vmatprep.subr.mxu0 0.0
    %373 = vmatpush1.msra.mxu0 0.0
    %374 = vmatprep.subr.mxu0 0.0
    %375 = vmatpush1.msra.mxu0 0.0
    %376 = vmatprep.subr.mxu0 0.0
    %377 = vmatpush1.msra.mxu0 0.0
    %378 = vmatprep.subr.mxu0 0.0
    %379 = vmatpush1.msra.mxu0 0.0
    %380 = vmatprep.subr.mxu0 0.0
    %381 = vmatpush1.msra.mxu0 0.0
    %382 = vmatprep.subr.mxu0 0.0
    %383 = vmatpush1.msra.mxu0 0.0
    %384 = vmatprep.subr.mxu0 0.0
    %385 = vmatpush1.msra.mxu0 0.0
    %386 = vmatprep.subr.mxu0 0.0
    %387 = vmatpush1.msra.mxu0 0.0
    %388 = vmatprep.mubr.f32.mxu0 0.0
    %v389 = vand.u32 %v68, 4294901760
    %v390 = vsub.f32 %v68, %v389
    %v391 = vand.u32 %v390, 4294901760
    %392 = vmatmul.mubr.f32.gmra.mrb[0].mxu0 %v391
    %v393 = vpop.f32.mrb[0].mxu0
    %v394 = vadd.f32 %v317, %v393
    %v395 = vpop.f32.mrb[0].mxu0
    %396 = vdwg.mxu0
    %397 = vmatprep.subr.mxu0 0.0
    %v398 = vand.u32 %v25, 4294901760
    %v399 = vsub.f32 %v25, %v398
    %v400 = vand.u32 %v399, 4294901760
    %401 = vmatpush1.msra.mxu0 %v400
    %402 = vmatprep.subr.mxu0 0.0
    %v403 = vand.u32 %v28, 4294901760
    %v404 = vsub.f32 %v28, %v403
    %v405 = vand.u32 %v404, 4294901760
    %406 = vmatpush1.msra.mxu0 %v405
    %407 = vmatprep.subr.mxu0 0.0
    %v408 = vand.u32 %v31, 4294901760
    %v409 = vsub.f32 %v31, %v408
    %v410 = vand.u32 %v409, 4294901760
    %411 = vmatpush1.msra.mxu0 %v410
    %412 = vmatprep.subr.mxu0 0.0
    %v413 = vand.u32 %v34, 4294901760
    %v414 = vsub.f32 %v34, %v413
    %v415 = vand.u32 %v414, 4294901760
    %416 = vmatpush1.msra.mxu0 %v415
    %417 = vmatprep.subr.mxu0 0.0
    %418 = vmatpush1.msra.mxu0 0.0
    %419 = vmatprep.subr.mxu0 0.0
    %420 = vmatpush1.msra.mxu0 0.0
    %421 = vmatprep.subr.mxu0 0.0
    %422 = vmatpush1.msra.mxu0 0.0
    %423 = vmatprep.subr.mxu0 0.0
    %424 = vmatpush1.msra.mxu0 0.0
    %425 = vmatprep.subr.mxu0 0.0
    %426 = vmatpush1.msra.mxu0 0.0
    %427 = vmatprep.subr.mxu0 0.0
    %428 = vmatpush1.msra.mxu0 0.0
    %429 = vmatprep.subr.mxu0 0.0
    %430 = vmatpush1.msra.mxu0 0.0
    %431 = vmatprep.subr.mxu0 0.0
    %432 = vmatpush1.msra.mxu0 0.0
    %433 = vmatprep.subr.mxu0 0.0
    %434 = vmatpush1.msra.mxu0 0.0
    %435 = vmatprep.subr.mxu0 0.0
    %436 = vmatpush1.msra.mxu0 0.0
    %437 = vmatprep.subr.mxu0 0.0
    %438 = vmatpush1.msra.mxu0 0.0
    %439 = vmatprep.subr.mxu0 0.0
    %440 = vmatpush1.msra.mxu0 0.0
    %441 = vmatprep.subr.mxu0 0.0
    %442 = vmatpush1.msra.mxu0 0.0
    %443 = vmatprep.subr.mxu0 0.0
    %444 = vmatpush1.msra.mxu0 0.0
    %445 = vmatprep.subr.mxu0 0.0
    %446 = vmatpush1.msra.mxu0 0.0
    %447 = vmatprep.subr.mxu0 0.0
    %448 = vmatpush1.msra.mxu0 0.0
    %449 = vmatprep.subr.mxu0 0.0
    %450 = vmatpush1.msra.mxu0 0.0
    %451 = vmatprep.subr.mxu0 0.0
    %452 = vmatpush1.msra.mxu0 0.0
    %453 = vmatprep.subr.mxu0 0.0
    %454 = vmatpush1.msra.mxu0 0.0
    %455 = vmatprep.subr.mxu0 0.0
    %456 = vmatpush1.msra.mxu0 0.0
    %457 = vmatprep.subr.mxu0 0.0
    %458 = vmatpush1.msra.mxu0 0.0
    %459 = vmatprep.subr.mxu0 0.0
    %460 = vmatpush1.msra.mxu0 0.0
    %461 = vmatprep.subr.mxu0 0.0
    %462 = vmatpush1.msra.mxu0 0.0
    %463 = vmatprep.subr.mxu0 0.0
    %464 = vmatpush1.msra.mxu0 0.0
    %465 = vmatprep.subr.mxu0 0.0
    %466 = vmatpush1.msra.mxu0 0.0
    %467 = vmatprep.subr.mxu0 0.0
    %468 = vmatpush1.msra.mxu0 0.0
    %469 = vmatprep.subr.mxu0 0.0
    %470 = vmatpush1.msra.mxu0 0.0
    %471 = vmatprep.subr.mxu0 0.0
    %472 = vmatpush1.msra.mxu0 0.0
    %473 = vmatprep.mubr.f32.mxu0 0.0
    %v474 = vand.u32 %v68, 4294901760
    %475 = vmatmul.mubr.f32.gmra.mrb[0].mxu0 %v474
    %v476 = vpop.f32.mrb[0].mxu0
    %v477 = vadd.f32 %v394, %v476
    %v478 = vpop.f32.mrb[0].mxu0
    %479 = vdwg.mxu0
    %480 = vmatprep.subr.mxu0 0.0
    %v481 = vand.u32 %v25, 4294901760
    %482 = vmatpush1.msra.mxu0 %v481
    %483 = vmatprep.subr.mxu0 0.0
    %v484 = vand.u32 %v28, 4294901760
    %485 = vmatpush1.msra.mxu0 %v484
    %486 = vmatprep.subr.mxu0 0.0
    %v487 = vand.u32 %v31, 4294901760
    %488 = vmatpush1.msra.mxu0 %v487
    %489 = vmatprep.subr.mxu0 0.0
    %v490 = vand.u32 %v34, 4294901760
    %491 = vmatpush1.msra.mxu0 %v490
    %492 = vmatprep.subr.mxu0 0.0
    %493 = vmatpush1.msra.mxu0 0.0
    %494 = vmatprep.subr.mxu0 0.0
    %495 = vmatpush1.msra.mxu0 0.0
    %496 = vmatprep.subr.mxu0 0.0
    %497 = vmatpush1.msra.mxu0 0.0
    %498 = vmatprep.subr.mxu0 0.0
    %499 = vmatpush1.msra.mxu0 0.0
    %500 = vmatprep.subr.mxu0 0.0
    %501 = vmatpush1.msra.mxu0 0.0
    %502 = vmatprep.subr.mxu0 0.0
    %503 = vmatpush1.msra.mxu0 0.0
    %504 = vmatprep.subr.mxu0 0.0
    %505 = vmatpush1.msra.mxu0 0.0
    %506 = vmatprep.subr.mxu0 0.0
    %507 = vmatpush1.msra.mxu0 0.0
    %508 = vmatprep.subr.mxu0 0.0
    %509 = vmatpush1.msra.mxu0 0.0
    %510 = vmatprep.subr.mxu0 0.0
    %511 = vmatpush1.msra.mxu0 0.0
    %512 = vmatprep.subr.mxu0 0.0
    %513 = vmatpush1.msra.mxu0 0.0
    %514 = vmatprep.subr.mxu0 0.0
    %515 = vmatpush1.msra.mxu0 0.0
    %516 = vmatprep.subr.mxu0 0.0
    %517 = vmatpush1.msra.mxu0 0.0
    %518 = vmatprep.subr.mxu0 0.0
    %519 = vmatpush1.msra.mxu0 0.0
    %520 = vmatprep.subr.mxu0 0.0
    %521 = vmatpush1.msra.mxu0 0.0
    %522 = vmatprep.subr.mxu0 0.0
    %523 = vmatpush1.msra.mxu0 0.0
    %524 = vmatprep.subr.mxu0 0.0
    %525 = vmatpush1.msra.mxu0 0.0
    %526 = vmatprep.subr.mxu0 0.0
    %527 = vmatpush1.msra.mxu0 0.0
    %528 = vmatprep.subr.mxu0 0.0
    %529 = vmatpush1.msra.mxu0 0.0
    %530 = vmatprep.subr.mxu0 0.0
    %531 = vmatpush1.msra.mxu0 0.0
    %532 = vmatprep.subr.mxu0 0.0
    %533 = vmatpush1.msra.mxu0 0.0
    %534 = vmatprep.subr.mxu0 0.0
    %535 = vmatpush1.msra.mxu0 0.0
    %536 = vmatprep.subr.mxu0 0.0
    %537 = vmatpush1.msra.mxu0 0.0
    %538 = vmatprep.subr.mxu0 0.0
    %539 = vmatpush1.msra.mxu0 0.0
    %540 = vmatprep.subr.mxu0 0.0
    %541 = vmatpush1.msra.mxu0 0.0
    %542 = vmatprep.subr.mxu0 0.0
    %543 = vmatpush1.msra.mxu0 0.0
    %544 = vmatprep.subr.mxu0 0.0
    %545 = vmatpush1.msra.mxu0 0.0
    %546 = vmatprep.subr.mxu0 0.0
    %547 = vmatpush1.msra.mxu0 0.0
    %548 = vmatprep.mubr.f32.mxu0 0.0
    %v549 = vand.u32 %v68, 4294901760
    %550 = vmatmul.mubr.f32.gmra.mrb[0].mxu0 %v549
    %v551 = vpop.f32.mrb[0].mxu0
    %v552 = vadd.f32 %v477, %v551
    %v553 = vpop.f32.mrb[0].mxu0
    %554 = vdwg.mxu0
    %v555 = vld [vmem:[%s1] sm:$0xff]
    %v556 = vld [vmem:[%s1 + $0x8] sm:$0xff]
    %v557 = vld [vmem:[%s1 + $0x10] sm:$0xff]
    %v558 = vld [vmem:[%s1 + $0x18] sm:$0xff]
    %v559 = vld [vmem:[%s1 + $0x20] sm:$0xff]
    %v560 = vld [vmem:[%s1 + $0x28] sm:$0xff]
    %v561 = vld [vmem:[%s1 + $0x30] sm:$0xff]
    %v562 = vld [vmem:[%s1 + $0x38] sm:$0xff]
    %v563 = vld [vmem:[%s2] sm:$0xff]
    %v564 = vld [vmem:[%s2 + $0x8] sm:$0xff]
    %v565 = vld [vmem:[%s2 + $0x10] sm:$0xff]
    %v566 = vld [vmem:[%s2 + $0x18] sm:$0xff]
    %v567 = vld [vmem:[%s2 + $0x20] sm:$0xff]
    %v568 = vld [vmem:[%s2 + $0x28] sm:$0xff]
    %v569 = vld [vmem:[%s2 + $0x30] sm:$0xff]
    %v570 = vld [vmem:[%s2 + $0x38] sm:$0xff]
    %572 = vrot.lane.b32.xlu0 %v552, 96
    %v573 = vpop.permute.xlu0 %572
    %v574 = vld [vmem:[%s3] sm:$0xff]
    %v575 = vld [vmem:[%s3 + $0x8] sm:$0xff]
    %v576 = vld [vmem:[%s3 + $0x10] sm:$0xff]
    %v577 = vld [vmem:[%s3 + $0x18] sm:$0xff]
    %v578 = vld [vmem:[%s3 + $0x20] sm:$0xff]
    %v579 = vld [vmem:[%s3 + $0x28] sm:$0xff]
    %v580 = vld [vmem:[%s3 + $0x30] sm:$0xff]
    %v581 = vld [vmem:[%s3 + $0x38] sm:$0xff]
    %582 = vrot.lane.b32.xlu0 %v552, 64
    %v583 = vpop.permute.xlu0 %582
    %v584 = vmul.f32 %v555, 0.35355338
    %v585 = vmul.f32 %v556, 0.35355338
    %v586 = vmul.f32 %v557, 0.35355338
    %v587 = vmul.f32 %v558, 0.35355338
    %v588 = vmul.f32 %v559, 0.35355338
    %v589 = vmul.f32 %v560, 0.35355338
    %v590 = vmul.f32 %v561, 0.35355338
    %v591 = vmul.f32 %v562, 0.35355338
    %v592 = vmul.f32 %v552, 0.35355338
    %602 = vrot.lane.b32.xlu0 %v584, 104
    %v603 = vpop.permute.xlu0 %602
    %604 = vrot.lane.b32.xlu0 %v585, 104
    %v605 = vpop.permute.xlu0 %604
    %606 = vrot.lane.b32.xlu0 %v586, 104
    %v607 = vpop.permute.xlu0 %606
    %608 = vrot.lane.b32.xlu0 %v587, 104
    %v609 = vpop.permute.xlu0 %608
    %610 = vrot.lane.b32.xlu0 %v588, 104
    %v611 = vpop.permute.xlu0 %610
    %612 = vrot.lane.b32.xlu0 %v589, 104
    %v613 = vpop.permute.xlu0 %612
    %614 = vrot.lane.b32.xlu0 %v590, 104
    %v615 = vpop.permute.xlu0 %614
    %616 = vrot.lane.b32.xlu0 %v591, 104
    %v617 = vpop.permute.xlu0 %616
    %618 = vrot.lane.b32.xlu0 %v592, 104
    %v619 = vpop.permute.xlu0 %618
    %628 = vrot.lane.b32.xlu0 %v563, 104
    %v629 = vpop.permute.xlu0 %628
    %630 = vrot.lane.b32.xlu0 %v564, 104
    %v631 = vpop.permute.xlu0 %630
    %632 = vrot.lane.b32.xlu0 %v565, 104
    %v633 = vpop.permute.xlu0 %632
    %634 = vrot.lane.b32.xlu0 %v566, 104
    %v635 = vpop.permute.xlu0 %634
    %636 = vrot.lane.b32.xlu0 %v567, 104
    %v637 = vpop.permute.xlu0 %636
    %638 = vrot.lane.b32.xlu0 %v568, 104
    %v639 = vpop.permute.xlu0 %638
    %640 = vrot.lane.b32.xlu0 %v569, 104
    %v641 = vpop.permute.xlu0 %640
    %642 = vrot.lane.b32.xlu0 %v570, 104
    %v643 = vpop.permute.xlu0 %642
    %644 = vrot.lane.b32.xlu0 %v573, 104
    %v645 = vpop.permute.xlu0 %644
    %vm646 = vcmask 64512
    %v647 = vsel %vm646, %v603, 0
    %v649 = vsel %vm646, %v605, 0
    %v651 = vsel %vm646, %v607, 0
    %v653 = vsel %vm646, %v609, 0
    %v655 = vsel %vm646, %v611, 0
    %v657 = vsel %vm646, %v613, 0
    %v659 = vsel %vm646, %v615, 0
    %v661 = vsel %vm646, %v617, 0
    %v663 = vsel %vm646, %v619, 0
    %v665 = vsel %vm646, %v629, 0
    %v667 = vsel %vm646, %v631, 0
    %v669 = vsel %vm646, %v633, 0
    %v671 = vsel %vm646, %v635, 0
    %v673 = vsel %vm646, %v637, 0
    %v675 = vsel %vm646, %v639, 0
    %v677 = vsel %vm646, %v641, 0
    %v679 = vsel %vm646, %v643, 0
    %v681 = vsel %vm646, %v645, 0
    %683 = vmatprep.subr.mxu0 0.0
    %v684 = vand.u32 %v665, 4294901760
    %685 = vmatpush1.xpose.msra.mxu0 %v684
    %686 = vmatprep.subr.mxu0 0.0
    %v687 = vand.u32 %v667, 4294901760
    %688 = vmatpush1.xpose.msra.mxu0 %v687
    %689 = vmatprep.subr.mxu0 0.0
    %v690 = vand.u32 %v669, 4294901760
    %691 = vmatpush1.xpose.msra.mxu0 %v690
    %692 = vmatprep.subr.mxu0 0.0
    %v693 = vand.u32 %v671, 4294901760
    %694 = vmatpush1.xpose.msra.mxu0 %v693
    %695 = vmatprep.subr.mxu0 0.0
    %v696 = vand.u32 %v673, 4294901760
    %697 = vmatpush1.xpose.msra.mxu0 %v696
    %698 = vmatprep.subr.mxu0 0.0
    %v699 = vand.u32 %v675, 4294901760
    %700 = vmatpush1.xpose.msra.mxu0 %v699
    %701 = vmatprep.subr.mxu0 0.0
    %v702 = vand.u32 %v677, 4294901760
    %703 = vmatpush1.xpose.msra.mxu0 %v702
    %704 = vmatprep.subr.mxu0 0.0
    %v705 = vand.u32 %v679, 4294901760
    %706 = vmatpush1.xpose.msra.mxu0 %v705
    %707 = vmatprep.subr.mxu0 0.0
    %v708 = vand.u32 %v681, 4294901760
    %709 = vmatpush1.xpose.msra.mxu0 %v708
    %710 = vmatprep.subr.mxu0 0.0
    %711 = vmatpush1.xpose.msra.mxu0 0.0
    %712 = vmatprep.subr.mxu0 0.0
    %713 = vmatpush1.xpose.msra.mxu0 0.0
    %714 = vmatprep.subr.mxu0 0.0
    %715 = vmatpush1.xpose.msra.mxu0 0.0
    %716 = vmatprep.subr.mxu0 0.0
    %717 = vmatpush1.xpose.msra.mxu0 0.0
    %718 = vmatprep.subr.mxu0 0.0
    %719 = vmatpush1.xpose.msra.mxu0 0.0
    %720 = vmatprep.subr.mxu0 0.0
    %721 = vmatpush1.xpose.msra.mxu0 0.0
    %722 = vmatprep.subr.mxu0 0.0
    %723 = vmatpush1.xpose.msra.mxu0 0.0
    %724 = vmatprep.subr.mxu0 0.0
    %725 = vmatpush1.xpose.msra.mxu0 0.0
    %726 = vmatprep.subr.mxu0 0.0
    %727 = vmatpush1.xpose.msra.mxu0 0.0
    %728 = vmatprep.subr.mxu0 0.0
    %729 = vmatpush1.xpose.msra.mxu0 0.0
    %730 = vmatprep.subr.mxu0 0.0
    %731 = vmatpush1.xpose.msra.mxu0 0.0
    %732 = vmatprep.subr.mxu0 0.0
    %733 = vmatpush1.xpose.msra.mxu0 0.0
    %734 = vmatprep.subr.mxu0 0.0
    %735 = vmatpush1.xpose.msra.mxu0 0.0
    %736 = vmatprep.subr.mxu0 0.0
    %737 = vmatpush1.xpose.msra.mxu0 0.0
    %738 = vmatprep.subr.mxu0 0.0
    %739 = vmatpush1.xpose.msra.mxu0 0.0
    %740 = vmatprep.subr.mxu0 0.0
    %741 = vmatpush1.xpose.msra.mxu0 0.0
    %742 = vmatprep.subr.mxu0 0.0
    %743 = vmatpush1.xpose.msra.mxu0 0.0
    %744 = vmatprep.subr.mxu0 0.0
    %745 = vmatpush1.xpose.msra.mxu0 0.0
    %746 = vmatprep.subr.mxu0 0.0
    %747 = vmatpush1.xpose.msra.mxu0 0.0
    %748 = vmatprep.subr.mxu0 0.0
    %749 = vmatpush1.xpose.msra.mxu0 0.0
    %750 = vmatprep.subr.mxu0 0.0
    %751 = vmatpush1.xpose.msra.mxu0 0.0
    %752 = vmatprep.subr.mxu0 0.0
    %753 = vmatpush1.xpose.msra.mxu0 0.0
    %754 = vmatprep.subr.mxu0 0.0
    %755 = vmatpush1.xpose.msra.mxu0 0.0
    %756 = vmatprep.mubr.f32.mxu0 0.0
    %v757 = vand.u32 %v647, 4294901760
    %v758 = vsub.f32 %v647, %v757
    %v759 = vand.u32 %v758, 4294901760
    %v760 = vsub.f32 %v758, %v759
    %v761 = vand.u32 %v760, 4294901760
    %762 = vmatmul.mubr.f32.gmra.mrb[0].mxu0 %v761
    %v763 = vpop.f32.mrb[0].mxu0
    %v764 = vadd.f32 0.0, %v763
    %v765 = vpop.f32.mrb[0].mxu0
    %766 = vmatprep.mubr.f32.mxu0 0.0
    %v767 = vand.u32 %v649, 4294901760
    %v768 = vsub.f32 %v649, %v767
    %v769 = vand.u32 %v768, 4294901760
    %v770 = vsub.f32 %v768, %v769
    %v771 = vand.u32 %v770, 4294901760
    %772 = vmatmul.mubr.f32.gmra.mrb[0].mxu0 %v771
    %v773 = vpop.f32.mrb[0].mxu0
    %v774 = vadd.f32 0.0, %v773
    %v775 = vpop.f32.mrb[0].mxu0
    %776 = vmatprep.mubr.f32.mxu0 0.0
    %v777 = vand.u32 %v651, 4294901760
    %v778 = vsub.f32 %v651, %v777
    %v779 = vand.u32 %v778, 4294901760
    %v780 = vsub.f32 %v778, %v779
    %v781 = vand.u32 %v780, 4294901760
    %782 = vmatmul.mubr.f32.gmra.mrb[0].mxu0 %v781
    %v783 = vpop.f32.mrb[0].mxu0
    %v784 = vadd.f32 0.0, %v783
    %v785 = vpop.f32.mrb[0].mxu0
    %786 = vmatprep.mubr.f32.mxu0 0.0
    %v787 = vand.u32 %v653, 4294901760
    %v788 = vsub.f32 %v653, %v787
    %v789 = vand.u32 %v788, 4294901760
    %v790 = vsub.f32 %v788, %v789
    %v791 = vand.u32 %v790, 4294901760
    %792 = vmatmul.mubr.f32.gmra.mrb[0].mxu0 %v791
    %v793 = vpop.f32.mrb[0].mxu0
    %v794 = vadd.f32 0.0, %v793
    %v795 = vpop.f32.mrb[0].mxu0
    %796 = vmatprep.mubr.f32.mxu0 0.0
    %v797 = vand.u32 %v655, 4294901760
    %v798 = vsub.f32 %v655, %v797
    %v799 = vand.u32 %v798, 4294901760
    %v800 = vsub.f32 %v798, %v799
    %v801 = vand.u32 %v800, 4294901760
    %802 = vmatmul.mubr.f32.gmra.mrb[0].mxu0 %v801
    %v803 = vpop.f32.mrb[0].mxu0
    %v804 = vadd.f32 0.0, %v803
    %v805 = vpop.f32.mrb[0].mxu0
    %806 = vmatprep.mubr.f32.mxu0 0.0
    %v807 = vand.u32 %v657, 4294901760
    %v808 = vsub.f32 %v657, %v807
    %v809 = vand.u32 %v808, 4294901760
    %v810 = vsub.f32 %v808, %v809
    %v811 = vand.u32 %v810, 4294901760
    %812 = vmatmul.mubr.f32.gmra.mrb[0].mxu0 %v811
    %v813 = vpop.f32.mrb[0].mxu0
    %v814 = vadd.f32 0.0, %v813
    %v815 = vpop.f32.mrb[0].mxu0
    %816 = vmatprep.mubr.f32.mxu0 0.0
    %v817 = vand.u32 %v659, 4294901760
    %v818 = vsub.f32 %v659, %v817
    %v819 = vand.u32 %v818, 4294901760
    %v820 = vsub.f32 %v818, %v819
    %v821 = vand.u32 %v820, 4294901760
    %822 = vmatmul.mubr.f32.gmra.mrb[0].mxu0 %v821
    %v823 = vpop.f32.mrb[0].mxu0
    %v824 = vadd.f32 0.0, %v823
    %v825 = vpop.f32.mrb[0].mxu0
    %826 = vmatprep.mubr.f32.mxu0 0.0
    %v827 = vand.u32 %v661, 4294901760
    %v828 = vsub.f32 %v661, %v827
    %v829 = vand.u32 %v828, 4294901760
    %v830 = vsub.f32 %v828, %v829
    %v831 = vand.u32 %v830, 4294901760
    %832 = vmatmul.mubr.f32.gmra.mrb[0].mxu0 %v831
    %v833 = vpop.f32.mrb[0].mxu0
    %v834 = vadd.f32 0.0, %v833
    %v835 = vpop.f32.mrb[0].mxu0
    %836 = vmatprep.mubr.f32.mxu0 0.0
    %v837 = vand.u32 %v663, 4294901760
    %v838 = vsub.f32 %v663, %v837
    %v839 = vand.u32 %v838, 4294901760
    %v840 = vsub.f32 %v838, %v839
    %v841 = vand.u32 %v840, 4294901760
    %842 = vmatmul.mubr.f32.gmra.mrb[0].mxu0 %v841
    %v843 = vpop.f32.mrb[0].mxu0
    %v844 = vadd.f32 0.0, %v843
    %v845 = vpop.f32.mrb[0].mxu0
    %846 = vdwg.mxu0
    %847 = vmatprep.subr.mxu0 0.0
    %v848 = vand.u32 %v665, 4294901760
    %v849 = vsub.f32 %v665, %v848
    %v850 = vand.u32 %v849, 4294901760
    %v851 = vsub.f32 %v849, %v850
    %v852 = vand.u32 %v851, 4294901760
    %853 = vmatpush1.xpose.msra.mxu0 %v852
    %854 = vmatprep.subr.mxu0 0.0
    %v855 = vand.u32 %v667, 4294901760
    %v856 = vsub.f32 %v667, %v855
    %v857 = vand.u32 %v856, 4294901760
    %v858 = vsub.f32 %v856, %v857
    %v859 = vand.u32 %v858, 4294901760
    %860 = vmatpush1.xpose.msra.mxu0 %v859
    %861 = vmatprep.subr.mxu0 0.0
    %v862 = vand.u32 %v669, 4294901760
    %v863 = vsub.f32 %v669, %v862
    %v864 = vand.u32 %v863, 4294901760
    %v865 = vsub.f32 %v863, %v864
    %v866 = vand.u32 %v865, 4294901760
    %867 = vmatpush1.xpose.msra.mxu0 %v866
    %868 = vmatprep.subr.mxu0 0.0
    %v869 = vand.u32 %v671, 4294901760
    %v870 = vsub.f32 %v671, %v869
    %v871 = vand.u32 %v870, 4294901760
    %v872 = vsub.f32 %v870, %v871
    %v873 = vand.u32 %v872, 4294901760
    %874 = vmatpush1.xpose.msra.mxu0 %v873
    %875 = vmatprep.subr.mxu0 0.0
    %v876 = vand.u32 %v673, 4294901760
    %v877 = vsub.f32 %v673, %v876
    %v878 = vand.u32 %v877, 4294901760
    %v879 = vsub.f32 %v877, %v878
    %v880 = vand.u32 %v879, 4294901760
    %881 = vmatpush1.xpose.msra.mxu0 %v880
    %882 = vmatprep.subr.mxu0 0.0
    %v883 = vand.u32 %v675, 4294901760
    %v884 = vsub.f32 %v675, %v883
    %v885 = vand.u32 %v884, 4294901760
    %v886 = vsub.f32 %v884, %v885
    %v887 = vand.u32 %v886, 4294901760
    %888 = vmatpush1.xpose.msra.mxu0 %v887
    %889 = vmatprep.subr.mxu0 0.0
    %v890 = vand.u32 %v677, 4294901760
    %v891 = vsub.f32 %v677, %v890
    %v892 = vand.u32 %v891, 4294901760
    %v893 = vsub.f32 %v891, %v892
    %v894 = vand.u32 %v893, 4294901760
    %895 = vmatpush1.xpose.msra.mxu0 %v894
    %896 = vmatprep.subr.mxu0 0.0
    %v897 = vand.u32 %v679, 4294901760
    %v898 = vsub.f32 %v679, %v897
    %v899 = vand.u32 %v898, 4294901760
    %v900 = vsub.f32 %v898, %v899
    %v901 = vand.u32 %v900, 4294901760
    %902 = vmatpush1.xpose.msra.mxu0 %v901
    %903 = vmatprep.subr.mxu0 0.0
    %v904 = vand.u32 %v681, 4294901760
    %v905 = vsub.f32 %v681, %v904
    %v906 = vand.u32 %v905, 4294901760
    %v907 = vsub.f32 %v905, %v906
    %v908 = vand.u32 %v907, 4294901760
    %909 = vmatpush1.xpose.msra.mxu0 %v908
    %910 = vmatprep.subr.mxu0 0.0
    %911 = vmatpush1.xpose.msra.mxu0 0.0
    %912 = vmatprep.subr.mxu0 0.0
    %913 = vmatpush1.xpose.msra.mxu0 0.0
    %914 = vmatprep.subr.mxu0 0.0
    %915 = vmatpush1.xpose.msra.mxu0 0.0
    %916 = vmatprep.subr.mxu0 0.0
    %917 = vmatpush1.xpose.msra.mxu0 0.0
    %918 = vmatprep.subr.mxu0 0.0
    %919 = vmatpush1.xpose.msra.mxu0 0.0
    %920 = vmatprep.subr.mxu0 0.0
    %921 = vmatpush1.xpose.msra.mxu0 0.0
    %922 = vmatprep.subr.mxu0 0.0
    %923 = vmatpush1.xpose.msra.mxu0 0.0
    %924 = vmatprep.subr.mxu0 0.0
    %925 = vmatpush1.xpose.msra.mxu0 0.0
    %926 = vmatprep.subr.mxu0 0.0
    %927 = vmatpush1.xpose.msra.mxu0 0.0
    %928 = vmatprep.subr.mxu0 0.0
    %929 = vmatpush1.xpose.msra.mxu0 0.0
    %930 = vmatprep.subr.mxu0 0.0
    %931 = vmatpush1.xpose.msra.mxu0 0.0
    %932 = vmatprep.subr.mxu0 0.0
    %933 = vmatpush1.xpose.msra.mxu0 0.0
    %934 = vmatprep.subr.mxu0 0.0
    %935 = vmatpush1.xpose.msra.mxu0 0.0
    %936 = vmatprep.subr.mxu0 0.0
    %937 = vmatpush1.xpose.msra.mxu0 0.0
    %938 = vmatprep.subr.mxu0 0.0
    %939 = vmatpush1.xpose.msra.mxu0 0.0
    %940 = vmatprep.subr.mxu0 0.0
    %941 = vmatpush1.xpose.msra.mxu0 0.0
    %942 = vmatprep.subr.mxu0 0.0
    %943 = vmatpush1.xpose.msra.mxu0 0.0
    %944 = vmatprep.subr.mxu0 0.0
    %945 = vmatpush1.xpose.msra.mxu0 0.0
    %946 = vmatprep.subr.mxu0 0.0
    %947 = vmatpush1.xpose.msra.mxu0 0.0
    %948 = vmatprep.subr.mxu0 0.0
    %949 = vmatpush1.xpose.msra.mxu0 0.0
    %950 = vmatprep.subr.mxu0 0.0
    %951 = vmatpush1.xpose.msra.mxu0 0.0
    %952 = vmatprep.subr.mxu0 0.0
    %953 = vmatpush1.xpose.msra.mxu0 0.0
    %954 = vmatprep.subr.mxu0 0.0
    %955 = vmatpush1.xpose.msra.mxu0 0.0
    %956 = vmatprep.mubr.f32.mxu0 0.0
    %v957 = vand.u32 %v647, 4294901760
    %958 = vmatmul.mubr.f32.gmra.mrb[0].mxu0 %v957
    %v959 = vpop.f32.mrb[0].mxu0
    %v960 = vadd.f32 %v764, %v959
    %v961 = vpop.f32.mrb[0].mxu0
    %962 = vmatprep.mubr.f32.mxu0 0.0
    %v963 = vand.u32 %v649, 4294901760
    %964 = vmatmul.mubr.f32.gmra.mrb[0].mxu0 %v963
    %v965 = vpop.f32.mrb[0].mxu0
    %v966 = vadd.f32 %v774, %v965
    %v967 = vpop.f32.mrb[0].mxu0
    %968 = vmatprep.mubr.f32.mxu0 0.0
    %v969 = vand.u32 %v651, 4294901760
    %970 = vmatmul.mubr.f32.gmra.mrb[0].mxu0 %v969
    %v971 = vpop.f32.mrb[0].mxu0
    %v972 = vadd.f32 %v784, %v971
    %v973 = vpop.f32.mrb[0].mxu0
    %974 = vmatprep.mubr.f32.mxu0 0.0
    %v975 = vand.u32 %v653, 4294901760
    %976 = vmatmul.mubr.f32.gmra.mrb[0].mxu0 %v975
    %v977 = vpop.f32.mrb[0].mxu0
    %v978 = vadd.f32 %v794, %v977
    %v979 = vpop.f32.mrb[0].mxu0
    %980 = vmatprep.mubr.f32.mxu0 0.0
    %v981 = vand.u32 %v655, 4294901760
    %982 = vmatmul.mubr.f32.gmra.mrb[0].mxu0 %v981
    %v983 = vpop.f32.mrb[0].mxu0
    %v984 = vadd.f32 %v804, %v983
    %v985 = vpop.f32.mrb[0].mxu0
    %986 = vmatprep.mubr.f32.mxu0 0.0
    %v987 = vand.u32 %v657, 4294901760
    %988 = vmatmul.mubr.f32.gmra.mrb[0].mxu0 %v987
    %v989 = vpop.f32.mrb[0].mxu0
    %v990 = vadd.f32 %v814, %v989
    %v991 = vpop.f32.mrb[0].mxu0
    %992 = vmatprep.mubr.f32.mxu0 0.0
    %v993 = vand.u32 %v659, 4294901760
    %994 = vmatmul.mubr.f32.gmra.mrb[0].mxu0 %v993
    %v995 = vpop.f32.mrb[0].mxu0
    %v996 = vadd.f32 %v824, %v995
    %v997 = vpop.f32.mrb[0].mxu0
    %998 = vmatprep.mubr.f32.mxu0 0.0
    %v999 = vand.u32 %v661, 4294901760
    %1000 = vmatmul.mubr.f32.gmra.mrb[0].mxu0 %v999
    %v1001 = vpop.f32.mrb[0].mxu0
    %v1002 = vadd.f32 %v834, %v1001
    %v1003 = vpop.f32.mrb[0].mxu0
    %1004 = vmatprep.mubr.f32.mxu0 0.0
    %v1005 = vand.u32 %v663, 4294901760
    %1006 = vmatmul.mubr.f32.gmra.mrb[0].mxu0 %v1005
    %v1007 = vpop.f32.mrb[0].mxu0
    %v1008 = vadd.f32 %v844, %v1007
    %v1009 = vpop.f32.mrb[0].mxu0
    %1010 = vdwg.mxu0
    %1011 = vmatprep.subr.mxu0 0.0
    %v1012 = vand.u32 %v665, 4294901760
    %v1013 = vsub.f32 %v665, %v1012
    %1014 = vmatpush1.xpose.msra.mxu0 %v1013
    %1015 = vmatprep.subr.mxu0 0.0
    %v1016 = vand.u32 %v667, 4294901760
    %v1017 = vsub.f32 %v667, %v1016
    %1018 = vmatpush1.xpose.msra.mxu0 %v1017
    %1019 = vmatprep.subr.mxu0 0.0
    %v1020 = vand.u32 %v669, 4294901760
    %v1021 = vsub.f32 %v669, %v1020
    %1022 = vmatpush1.xpose.msra.mxu0 %v1021
    %1023 = vmatprep.subr.mxu0 0.0
    %v1024 = vand.u32 %v671, 4294901760
    %v1025 = vsub.f32 %v671, %v1024
    %1026 = vmatpush1.xpose.msra.mxu0 %v1025
    %1027 = vmatprep.subr.mxu0 0.0
    %v1028 = vand.u32 %v673, 4294901760
    %v1029 = vsub.f32 %v673, %v1028
    %1030 = vmatpush1.xpose.msra.mxu0 %v1029
    %1031 = vmatprep.subr.mxu0 0.0
    %v1032 = vand.u32 %v675, 4294901760
    %v1033 = vsub.f32 %v675, %v1032
    %1034 = vmatpush1.xpose.msra.mxu0 %v1033
    %1035 = vmatprep.subr.mxu0 0.0
    %v1036 = vand.u32 %v677, 4294901760
    %v1037 = vsub.f32 %v677, %v1036
    %1038 = vmatpush1.xpose.msra.mxu0 %v1037
    %1039 = vmatprep.subr.mxu0 0.0
    %v1040 = vand.u32 %v679, 4294901760
    %v1041 = vsub.f32 %v679, %v1040
    %1042 = vmatpush1.xpose.msra.mxu0 %v1041
    %1043 = vmatprep.subr.mxu0 0.0
    %v1044 = vand.u32 %v681, 4294901760
    %v1045 = vsub.f32 %v681, %v1044
    %1046 = vmatpush1.xpose.msra.mxu0 %v1045
    %1047 = vmatprep.subr.mxu0 0.0
    %1048 = vmatpush1.xpose.msra.mxu0 0.0
    %1049 = vmatprep.subr.mxu0 0.0
    %1050 = vmatpush1.xpose.msra.mxu0 0.0
    %1051 = vmatprep.subr.mxu0 0.0
    %1052 = vmatpush1.xpose.msra.mxu0 0.0
    %1053 = vmatprep.subr.mxu0 0.0
    %1054 = vmatpush1.xpose.msra.mxu0 0.0
    %1055 = vmatprep.subr.mxu0 0.0
    %1056 = vmatpush1.xpose.msra.mxu0 0.0
    %1057 = vmatprep.subr.mxu0 0.0
    %1058 = vmatpush1.xpose.msra.mxu0 0.0
    %1059 = vmatprep.subr.mxu0 0.0
    %1060 = vmatpush1.xpose.msra.mxu0 0.0
    %1061 = vmatprep.subr.mxu0 0.0
    %1062 = vmatpush1.xpose.msra.mxu0 0.0
    %1063 = vmatprep.subr.mxu0 0.0
    %1064 = vmatpush1.xpose.msra.mxu0 0.0
    %1065 = vmatprep.subr.mxu0 0.0
    %1066 = vmatpush1.xpose.msra.mxu0 0.0
    %1067 = vmatprep.subr.mxu0 0.0
    %1068 = vmatpush1.xpose.msra.mxu0 0.0
    %1069 = vmatprep.subr.mxu0 0.0
    %1070 = vmatpush1.xpose.msra.mxu0 0.0
    %1071 = vmatprep.subr.mxu0 0.0
    %1072 = vmatpush1.xpose.msra.mxu0 0.0
    %1073 = vmatprep.subr.mxu0 0.0
    %1074 = vmatpush1.xpose.msra.mxu0 0.0
    %1075 = vmatprep.subr.mxu0 0.0
    %1076 = vmatpush1.xpose.msra.mxu0 0.0
    %1077 = vmatprep.subr.mxu0 0.0
    %1078 = vmatpush1.xpose.msra.mxu0 0.0
    %1079 = vmatprep.subr.mxu0 0.0
    %1080 = vmatpush1.xpose.msra.mxu0 0.0
    %1081 = vmatprep.subr.mxu0 0.0
    %1082 = vmatpush1.xpose.msra.mxu0 0.0
    %1083 = vmatprep.subr.mxu0 0.0
    %1084 = vmatpush1.xpose.msra.mxu0 0.0
    %1085 = vmatprep.subr.mxu0 0.0
    %1086 = vmatpush1.xpose.msra.mxu0 0.0
    %1087 = vmatprep.subr.mxu0 0.0
    %1088 = vmatpush1.xpose.msra.mxu0 0.0
    %1089 = vmatprep.subr.mxu0 0.0
    %1090 = vmatpush1.xpose.msra.mxu0 0.0
    %1091 = vmatprep.subr.mxu0 0.0
    %1092 = vmatpush1.xpose.msra.mxu0 0.0
    %1093 = vmatprep.mubr.f32.mxu0 0.0
    %v1094 = vand.u32 %v647, 4294901760
    %v1095 = vsub.f32 %v647, %v1094
    %1096 = vmatmul.mubr.f32.gmra.mrb[0].mxu0 %v1095
    %v1097 = vpop.f32.mrb[0].mxu0
    %v1098 = vadd.f32 %v960, %v1097
    %v1099 = vpop.f32.mrb[0].mxu0
    %1100 = vmatprep.mubr.f32.mxu0 0.0
    %v1101 = vand.u32 %v649, 4294901760
    %v1102 = vsub.f32 %v649, %v1101
    %1103 = vmatmul.mubr.f32.gmra.mrb[0].mxu0 %v1102
    %v1104 = vpop.f32.mrb[0].mxu0
    %v1105 = vadd.f32 %v966, %v1104
    %v1106 = vpop.f32.mrb[0].mxu0
    %1107 = vmatprep.mubr.f32.mxu0 0.0
    %v1108 = vand.u32 %v651, 4294901760
    %v1109 = vsub.f32 %v651, %v1108
    %1110 = vmatmul.mubr.f32.gmra.mrb[0].mxu0 %v1109
    %v1111 = vpop.f32.mrb[0].mxu0
    %v1112 = vadd.f32 %v972, %v1111
    %v1113 = vpop.f32.mrb[0].mxu0
    %1114 = vmatprep.mubr.f32.mxu0 0.0
    %v1115 = vand.u32 %v653, 4294901760
    %v1116 = vsub.f32 %v653, %v1115
    %1117 = vmatmul.mubr.f32.gmra.mrb[0].mxu0 %v1116
    %v1118 = vpop.f32.mrb[0].mxu0
    %v1119 = vadd.f32 %v978, %v1118
    %v1120 = vpop.f32.mrb[0].mxu0
    %1121 = vmatprep.mubr.f32.mxu0 0.0
    %v1122 = vand.u32 %v655, 4294901760
    %v1123 = vsub.f32 %v655, %v1122
    %1124 = vmatmul.mubr.f32.gmra.mrb[0].mxu0 %v1123
    %v1125 = vpop.f32.mrb[0].mxu0
    %v1126 = vadd.f32 %v984, %v1125
    %v1127 = vpop.f32.mrb[0].mxu0
    %1128 = vmatprep.mubr.f32.mxu0 0.0
    %v1129 = vand.u32 %v657, 4294901760
    %v1130 = vsub.f32 %v657, %v1129
    %1131 = vmatmul.mubr.f32.gmra.mrb[0].mxu0 %v1130
    %v1132 = vpop.f32.mrb[0].mxu0
    %v1133 = vadd.f32 %v990, %v1132
    %v1134 = vpop.f32.mrb[0].mxu0
    %1135 = vmatprep.mubr.f32.mxu0 0.0
    %v1136 = vand.u32 %v659, 4294901760
    %v1137 = vsub.f32 %v659, %v1136
    %1138 = vmatmul.mubr.f32.gmra.mrb[0].mxu0 %v1137
    %v1139 = vpop.f32.mrb[0].mxu0
    %v1140 = vadd.f32 %v996, %v1139
    %v1141 = vpop.f32.mrb[0].mxu0
    %1142 = vmatprep.mubr.f32.mxu0 0.0
    %v1143 = vand.u32 %v661, 4294901760
    %v1144 = vsub.f32 %v661, %v1143
    %1145 = vmatmul.mubr.f32.gmra.mrb[0].mxu0 %v1144
    %v1146 = vpop.f32.mrb[0].mxu0
    %v1147 = vadd.f32 %v1002, %v1146
    %v1148 = vpop.f32.mrb[0].mxu0
    %1149 = vmatprep.mubr.f32.mxu0 0.0
    %v1150 = vand.u32 %v663, 4294901760
    %v1151 = vsub.f32 %v663, %v1150
    %1152 = vmatmul.mubr.f32.gmra.mrb[0].mxu0 %v1151
    %v1153 = vpop.f32.mrb[0].mxu0
    %v1154 = vadd.f32 %v1008, %v1153
    %v1155 = vpop.f32.mrb[0].mxu0
    %1156 = vdwg.mxu0
    %1157 = vmatprep.subr.mxu0 0.0
    %v1158 = vand.u32 %v665, 4294901760
    %1159 = vmatpush1.xpose.msra.mxu0 %v1158
    %1160 = vmatprep.subr.mxu0 0.0
    %v1161 = vand.u32 %v667, 4294901760
    %1162 = vmatpush1.xpose.msra.mxu0 %v1161
    %1163 = vmatprep.subr.mxu0 0.0
    %v1164 = vand.u32 %v669, 4294901760
    %1165 = vmatpush1.xpose.msra.mxu0 %v1164
    %1166 = vmatprep.subr.mxu0 0.0
    %v1167 = vand.u32 %v671, 4294901760
    %1168 = vmatpush1.xpose.msra.mxu0 %v1167
    %1169 = vmatprep.subr.mxu0 0.0
    %v1170 = vand.u32 %v673, 4294901760
    %1171 = vmatpush1.xpose.msra.mxu0 %v1170
    %1172 = vmatprep.subr.mxu0 0.0
    %v1173 = vand.u32 %v675, 4294901760
    %1174 = vmatpush1.xpose.msra.mxu0 %v1173
    %1175 = vmatprep.subr.mxu0 0.0
    %v1176 = vand.u32 %v677, 4294901760
    %1177 = vmatpush1.xpose.msra.mxu0 %v1176
    %1178 = vmatprep.subr.mxu0 0.0
    %v1179 = vand.u32 %v679, 4294901760
    %1180 = vmatpush1.xpose.msra.mxu0 %v1179
    %1181 = vmatprep.subr.mxu0 0.0
    %v1182 = vand.u32 %v681, 4294901760
    %1183 = vmatpush1.xpose.msra.mxu0 %v1182
    %1184 = vmatprep.subr.mxu0 0.0
    %1185 = vmatpush1.xpose.msra.mxu0 0.0
    %1186 = vmatprep.subr.mxu0 0.0
    %1187 = vmatpush1.xpose.msra.mxu0 0.0
    %1188 = vmatprep.subr.mxu0 0.0
    %1189 = vmatpush1.xpose.msra.mxu0 0.0
    %1190 = vmatprep.subr.mxu0 0.0
    %1191 = vmatpush1.xpose.msra.mxu0 0.0
    %1192 = vmatprep.subr.mxu0 0.0
    %1193 = vmatpush1.xpose.msra.mxu0 0.0
    %1194 = vmatprep.subr.mxu0 0.0
    %1195 = vmatpush1.xpose.msra.mxu0 0.0
    %1196 = vmatprep.subr.mxu0 0.0
    %1197 = vmatpush1.xpose.msra.mxu0 0.0
    %1198 = vmatprep.subr.mxu0 0.0
    %1199 = vmatpush1.xpose.msra.mxu0 0.0
    %1200 = vmatprep.subr.mxu0 0.0
    %1201 = vmatpush1.xpose.msra.mxu0 0.0
    %1202 = vmatprep.subr.mxu0 0.0
    %1203 = vmatpush1.xpose.msra.mxu0 0.0
    %1204 = vmatprep.subr.mxu0 0.0
    %1205 = vmatpush1.xpose.msra.mxu0 0.0
    %1206 = vmatprep.subr.mxu0 0.0
    %1207 = vmatpush1.xpose.msra.mxu0 0.0
    %1208 = vmatprep.subr.mxu0 0.0
    %1209 = vmatpush1.xpose.msra.mxu0 0.0
    %1210 = vmatprep.subr.mxu0 0.0
    %1211 = vmatpush1.xpose.msra.mxu0 0.0
    %1212 = vmatprep.subr.mxu0 0.0
    %1213 = vmatpush1.xpose.msra.mxu0 0.0
    %1214 = vmatprep.subr.mxu0 0.0
    %1215 = vmatpush1.xpose.msra.mxu0 0.0
    %1216 = vmatprep.subr.mxu0 0.0
    %1217 = vmatpush1.xpose.msra.mxu0 0.0
    %1218 = vmatprep.subr.mxu0 0.0
    %1219 = vmatpush1.xpose.msra.mxu0 0.0
    %1220 = vmatprep.subr.mxu0 0.0
    %1221 = vmatpush1.xpose.msra.mxu0 0.0
    %1222 = vmatprep.subr.mxu0 0.0
    %1223 = vmatpush1.xpose.msra.mxu0 0.0
    %1224 = vmatprep.subr.mxu0 0.0
    %1225 = vmatpush1.xpose.msra.mxu0 0.0
    %1226 = vmatprep.subr.mxu0 0.0
    %1227 = vmatpush1.xpose.msra.mxu0 0.0
    %1228 = vmatprep.subr.mxu0 0.0
    %1229 = vmatpush1.xpose.msra.mxu0 0.0
    %1230 = vmatprep.mubr.f32.mxu0 0.0
    %v1231 = vand.u32 %v647, 4294901760
    %v1232 = vsub.f32 %v647, %v1231
    %v1233 = vand.u32 %v1232, 4294901760
    %1234 = vmatmul.mubr.f32.gmra.mrb[0].mxu0 %v1233
    %v1235 = vpop.f32.mrb[0].mxu0
    %v1236 = vadd.f32 %v1098, %v1235
    %v1237 = vpop.f32.mrb[0].mxu0
    %1238 = vmatprep.mubr.f32.mxu0 0.0
    %v1239 = vand.u32 %v649, 4294901760
    %v1240 = vsub.f32 %v649, %v1239
    %v1241 = vand.u32 %v1240, 4294901760
    %1242 = vmatmul.mubr.f32.gmra.mrb[0].mxu0 %v1241
    %v1243 = vpop.f32.mrb[0].mxu0
    %v1244 = vadd.f32 %v1105, %v1243
    %v1245 = vpop.f32.mrb[0].mxu0
    %1246 = vmatprep.mubr.f32.mxu0 0.0
    %v1247 = vand.u32 %v651, 4294901760
    %v1248 = vsub.f32 %v651, %v1247
    %v1249 = vand.u32 %v1248, 4294901760
    %1250 = vmatmul.mubr.f32.gmra.mrb[0].mxu0 %v1249
    %v1251 = vpop.f32.mrb[0].mxu0
    %v1252 = vadd.f32 %v1112, %v1251
    %v1253 = vpop.f32.mrb[0].mxu0
    %1254 = vmatprep.mubr.f32.mxu0 0.0
    %v1255 = vand.u32 %v653, 4294901760
    %v1256 = vsub.f32 %v653, %v1255
    %v1257 = vand.u32 %v1256, 4294901760
    %1258 = vmatmul.mubr.f32.gmra.mrb[0].mxu0 %v1257
    %v1259 = vpop.f32.mrb[0].mxu0
    %v1260 = vadd.f32 %v1119, %v1259
    %v1261 = vpop.f32.mrb[0].mxu0
    %1262 = vmatprep.mubr.f32.mxu0 0.0
    %v1263 = vand.u32 %v655, 4294901760
    %v1264 = vsub.f32 %v655, %v1263
    %v1265 = vand.u32 %v1264, 4294901760
    %1266 = vmatmul.mubr.f32.gmra.mrb[0].mxu0 %v1265
    %v1267 = vpop.f32.mrb[0].mxu0
    %v1268 = vadd.f32 %v1126, %v1267
    %v1269 = vpop.f32.mrb[0].mxu0
    %1270 = vmatprep.mubr.f32.mxu0 0.0
    %v1271 = vand.u32 %v657, 4294901760
    %v1272 = vsub.f32 %v657, %v1271
    %v1273 = vand.u32 %v1272, 4294901760
    %1274 = vmatmul.mubr.f32.gmra.mrb[0].mxu0 %v1273
    %v1275 = vpop.f32.mrb[0].mxu0
    %v1276 = vadd.f32 %v1133, %v1275
    %v1277 = vpop.f32.mrb[0].mxu0
    %1278 = vmatprep.mubr.f32.mxu0 0.0
    %v1279 = vand.u32 %v659, 4294901760
    %v1280 = vsub.f32 %v659, %v1279
    %v1281 = vand.u32 %v1280, 4294901760
    %1282 = vmatmul.mubr.f32.gmra.mrb[0].mxu0 %v1281
    %v1283 = vpop.f32.mrb[0].mxu0
    %v1284 = vadd.f32 %v1140, %v1283
    %v1285 = vpop.f32.mrb[0].mxu0
    %1286 = vmatprep.mubr.f32.mxu0 0.0
    %v1287 = vand.u32 %v661, 4294901760
    %v1288 = vsub.f32 %v661, %v1287
    %v1289 = vand.u32 %v1288, 4294901760
    %1290 = vmatmul.mubr.f32.gmra.mrb[0].mxu0 %v1289
    %v1291 = vpop.f32.mrb[0].mxu0
    %v1292 = vadd.f32 %v1147, %v1291
    %v1293 = vpop.f32.mrb[0].mxu0
    %1294 = vmatprep.mubr.f32.mxu0 0.0
    %v1295 = vand.u32 %v663, 4294901760
    %v1296 = vsub.f32 %v663, %v1295
    %v1297 = vand.u32 %v1296, 4294901760
    %1298 = vmatmul.mubr.f32.gmra.mrb[0].mxu0 %v1297
    %v1299 = vpop.f32.mrb[0].mxu0
    %v1300 = vadd.f32 %v1154, %v1299
    %v1301 = vpop.f32.mrb[0].mxu0
    %1302 = vdwg.mxu0
    %1303 = vmatprep.subr.mxu0 0.0
    %v1304 = vand.u32 %v665, 4294901760
    %v1305 = vsub.f32 %v665, %v1304
    %v1306 = vand.u32 %v1305, 4294901760
    %1307 = vmatpush1.xpose.msra.mxu0 %v1306
    %1308 = vmatprep.subr.mxu0 0.0
    %v1309 = vand.u32 %v667, 4294901760
    %v1310 = vsub.f32 %v667, %v1309
    %v1311 = vand.u32 %v1310, 4294901760
    %1312 = vmatpush1.xpose.msra.mxu0 %v1311
    %1313 = vmatprep.subr.mxu0 0.0
    %v1314 = vand.u32 %v669, 4294901760
    %v1315 = vsub.f32 %v669, %v1314
    %v1316 = vand.u32 %v1315, 4294901760
    %1317 = vmatpush1.xpose.msra.mxu0 %v1316
    %1318 = vmatprep.subr.mxu0 0.0
    %v1319 = vand.u32 %v671, 4294901760
    %v1320 = vsub.f32 %v671, %v1319
    %v1321 = vand.u32 %v1320, 4294901760
    %1322 = vmatpush1.xpose.msra.mxu0 %v1321
    %1323 = vmatprep.subr.mxu0 0.0
    %v1324 = vand.u32 %v673, 4294901760
    %v1325 = vsub.f32 %v673, %v1324
    %v1326 = vand.u32 %v1325, 4294901760
    %1327 = vmatpush1.xpose.msra.mxu0 %v1326
    %1328 = vmatprep.subr.mxu0 0.0
    %v1329 = vand.u32 %v675, 4294901760
    %v1330 = vsub.f32 %v675, %v1329
    %v1331 = vand.u32 %v1330, 4294901760
    %1332 = vmatpush1.xpose.msra.mxu0 %v1331
    %1333 = vmatprep.subr.mxu0 0.0
    %v1334 = vand.u32 %v677, 4294901760
    %v1335 = vsub.f32 %v677, %v1334
    %v1336 = vand.u32 %v1335, 4294901760
    %1337 = vmatpush1.xpose.msra.mxu0 %v1336
    %1338 = vmatprep.subr.mxu0 0.0
    %v1339 = vand.u32 %v679, 4294901760
    %v1340 = vsub.f32 %v679, %v1339
    %v1341 = vand.u32 %v1340, 4294901760
    %1342 = vmatpush1.xpose.msra.mxu0 %v1341
    %1343 = vmatprep.subr.mxu0 0.0
    %v1344 = vand.u32 %v681, 4294901760
    %v1345 = vsub.f32 %v681, %v1344
    %v1346 = vand.u32 %v1345, 4294901760
    %1347 = vmatpush1.xpose.msra.mxu0 %v1346
    %1348 = vmatprep.subr.mxu0 0.0
    %1349 = vmatpush1.xpose.msra.mxu0 0.0
    %1350 = vmatprep.subr.mxu0 0.0
    %1351 = vmatpush1.xpose.msra.mxu0 0.0
    %1352 = vmatprep.subr.mxu0 0.0
    %1353 = vmatpush1.xpose.msra.mxu0 0.0
    %1354 = vmatprep.subr.mxu0 0.0
    %1355 = vmatpush1.xpose.msra.mxu0 0.0
    %1356 = vmatprep.subr.mxu0 0.0
    %1357 = vmatpush1.xpose.msra.mxu0 0.0
    %1358 = vmatprep.subr.mxu0 0.0
    %1359 = vmatpush1.xpose.msra.mxu0 0.0
    %1360 = vmatprep.subr.mxu0 0.0
    %1361 = vmatpush1.xpose.msra.mxu0 0.0
    %1362 = vmatprep.subr.mxu0 0.0
    %1363 = vmatpush1.xpose.msra.mxu0 0.0
    %1364 = vmatprep.subr.mxu0 0.0
    %1365 = vmatpush1.xpose.msra.mxu0 0.0
    %1366 = vmatprep.subr.mxu0 0.0
    %1367 = vmatpush1.xpose.msra.mxu0 0.0
    %1368 = vmatprep.subr.mxu0 0.0
    %1369 = vmatpush1.xpose.msra.mxu0 0.0
    %1370 = vmatprep.subr.mxu0 0.0
    %1371 = vmatpush1.xpose.msra.mxu0 0.0
    %1372 = vmatprep.subr.mxu0 0.0
    %1373 = vmatpush1.xpose.msra.mxu0 0.0
    %1374 = vmatprep.subr.mxu0 0.0
    %1375 = vmatpush1.xpose.msra.mxu0 0.0
    %1376 = vmatprep.subr.mxu0 0.0
    %1377 = vmatpush1.xpose.msra.mxu0 0.0
    %1378 = vmatprep.subr.mxu0 0.0
    %1379 = vmatpush1.xpose.msra.mxu0 0.0
    %1380 = vmatprep.subr.mxu0 0.0
    %1381 = vmatpush1.xpose.msra.mxu0 0.0
    %1382 = vmatprep.subr.mxu0 0.0
    %1383 = vmatpush1.xpose.msra.mxu0 0.0
    %1384 = vmatprep.subr.mxu0 0.0
    %1385 = vmatpush1.xpose.msra.mxu0 0.0
    %1386 = vmatprep.subr.mxu0 0.0
    %1387 = vmatpush1.xpose.msra.mxu0 0.0
    %1388 = vmatprep.subr.mxu0 0.0
    %1389 = vmatpush1.xpose.msra.mxu0 0.0
    %1390 = vmatprep.subr.mxu0 0.0
    %1391 = vmatpush1.xpose.msra.mxu0 0.0
    %1392 = vmatprep.subr.mxu0 0.0
    %1393 = vmatpush1.xpose.msra.mxu0 0.0
    %1394 = vmatprep.mubr.f32.mxu0 0.0
    %v1395 = vand.u32 %v647, 4294901760
    %1396 = vmatmul.mubr.f32.gmra.mrb[0].mxu0 %v1395
    %v1397 = vpop.f32.mrb[0].mxu0
    %v1398 = vadd.f32 %v1236, %v1397
    %v1399 = vpop.f32.mrb[0].mxu0
    %1400 = vmatprep.mubr.f32.mxu0 0.0
    %v1401 = vand.u32 %v649, 4294901760
    %1402 = vmatmul.mubr.f32.gmra.mrb[0].mxu0 %v1401
    %v1403 = vpop.f32.mrb[0].mxu0
    %v1404 = vadd.f32 %v1244, %v1403
    %v1405 = vpop.f32.mrb[0].mxu0
    %1406 = vmatprep.mubr.f32.mxu0 0.0
    %v1407 = vand.u32 %v651, 4294901760
    %1408 = vmatmul.mubr.f32.gmra.mrb[0].mxu0 %v1407
    %v1409 = vpop.f32.mrb[0].mxu0
    %v1410 = vadd.f32 %v1252, %v1409
    %v1411 = vpop.f32.mrb[0].mxu0
    %1412 = vmatprep.mubr.f32.mxu0 0.0
    %v1413 = vand.u32 %v653, 4294901760
    %1414 = vmatmul.mubr.f32.gmra.mrb[0].mxu0 %v1413
    %v1415 = vpop.f32.mrb[0].mxu0
    %v1416 = vadd.f32 %v1260, %v1415
    %v1417 = vpop.f32.mrb[0].mxu0
    %1418 = vmatprep.mubr.f32.mxu0 0.0
    %v1419 = vand.u32 %v655, 4294901760
    %1420 = vmatmul.mubr.f32.gmra.mrb[0].mxu0 %v1419
    %v1421 = vpop.f32.mrb[0].mxu0
    %v1422 = vadd.f32 %v1268, %v1421
    %v1423 = vpop.f32.mrb[0].mxu0
    %1424 = vmatprep.mubr.f32.mxu0 0.0
    %v1425 = vand.u32 %v657, 4294901760
    %1426 = vmatmul.mubr.f32.gmra.mrb[0].mxu0 %v1425
    %v1427 = vpop.f32.mrb[0].mxu0
    %v1428 = vadd.f32 %v1276, %v1427
    %v1429 = vpop.f32.mrb[0].mxu0
    %1430 = vmatprep.mubr.f32.mxu0 0.0
    %v1431 = vand.u32 %v659, 4294901760
    %1432 = vmatmul.mubr.f32.gmra.mrb[0].mxu0 %v1431
    %v1433 = vpop.f32.mrb[0].mxu0
    %v1434 = vadd.f32 %v1284, %v1433
    %v1435 = vpop.f32.mrb[0].mxu0
    %1436 = vmatprep.mubr.f32.mxu0 0.0
    %v1437 = vand.u32 %v661, 4294901760
    %1438 = vmatmul.mubr.f32.gmra.mrb[0].mxu0 %v1437
    %v1439 = vpop.f32.mrb[0].mxu0
    %v1440 = vadd.f32 %v1292, %v1439
    %v1441 = vpop.f32.mrb[0].mxu0
    %1442 = vmatprep.mubr.f32.mxu0 0.0
    %v1443 = vand.u32 %v663, 4294901760
    %1444 = vmatmul.mubr.f32.gmra.mrb[0].mxu0 %v1443
    %v1445 = vpop.f32.mrb[0].mxu0
    %v1446 = vadd.f32 %v1300, %v1445
    %v1447 = vpop.f32.mrb[0].mxu0
    %1448 = vdwg.mxu0
    %1449 = vmatprep.subr.mxu0 0.0
    %v1450 = vand.u32 %v665, 4294901760
    %1451 = vmatpush1.xpose.msra.mxu0 %v1450
    %1452 = vmatprep.subr.mxu0 0.0
    %v1453 = vand.u32 %v667, 4294901760
    %1454 = vmatpush1.xpose.msra.mxu0 %v1453
    %1455 = vmatprep.subr.mxu0 0.0
    %v1456 = vand.u32 %v669, 4294901760
    %1457 = vmatpush1.xpose.msra.mxu0 %v1456
    %1458 = vmatprep.subr.mxu0 0.0
    %v1459 = vand.u32 %v671, 4294901760
    %1460 = vmatpush1.xpose.msra.mxu0 %v1459
    %1461 = vmatprep.subr.mxu0 0.0
    %v1462 = vand.u32 %v673, 4294901760
    %1463 = vmatpush1.xpose.msra.mxu0 %v1462
    %1464 = vmatprep.subr.mxu0 0.0
    %v1465 = vand.u32 %v675, 4294901760
    %1466 = vmatpush1.xpose.msra.mxu0 %v1465
    %1467 = vmatprep.subr.mxu0 0.0
    %v1468 = vand.u32 %v677, 4294901760
    %1469 = vmatpush1.xpose.msra.mxu0 %v1468
    %1470 = vmatprep.subr.mxu0 0.0
    %v1471 = vand.u32 %v679, 4294901760
    %1472 = vmatpush1.xpose.msra.mxu0 %v1471
    %1473 = vmatprep.subr.mxu0 0.0
    %v1474 = vand.u32 %v681, 4294901760
    %1475 = vmatpush1.xpose.msra.mxu0 %v1474
    %1476 = vmatprep.subr.mxu0 0.0
    %1477 = vmatpush1.xpose.msra.mxu0 0.0
    %1478 = vmatprep.subr.mxu0 0.0
    %1479 = vmatpush1.xpose.msra.mxu0 0.0
    %1480 = vmatprep.subr.mxu0 0.0
    %1481 = vmatpush1.xpose.msra.mxu0 0.0
    %1482 = vmatprep.subr.mxu0 0.0
    %1483 = vmatpush1.xpose.msra.mxu0 0.0
    %1484 = vmatprep.subr.mxu0 0.0
    %1485 = vmatpush1.xpose.msra.mxu0 0.0
    %1486 = vmatprep.subr.mxu0 0.0
    %1487 = vmatpush1.xpose.msra.mxu0 0.0
    %1488 = vmatprep.subr.mxu0 0.0
    %1489 = vmatpush1.xpose.msra.mxu0 0.0
    %1490 = vmatprep.subr.mxu0 0.0
    %1491 = vmatpush1.xpose.msra.mxu0 0.0
    %1492 = vmatprep.subr.mxu0 0.0
    %1493 = vmatpush1.xpose.msra.mxu0 0.0
    %1494 = vmatprep.subr.mxu0 0.0
    %1495 = vmatpush1.xpose.msra.mxu0 0.0
    %1496 = vmatprep.subr.mxu0 0.0
    %1497 = vmatpush1.xpose.msra.mxu0 0.0
    %1498 = vmatprep.subr.mxu0 0.0
    %1499 = vmatpush1.xpose.msra.mxu0 0.0
    %1500 = vmatprep.subr.mxu0 0.0
    %1501 = vmatpush1.xpose.msra.mxu0 0.0
    %1502 = vmatprep.subr.mxu0 0.0
    %1503 = vmatpush1.xpose.msra.mxu0 0.0
    %1504 = vmatprep.subr.mxu0 0.0
    %1505 = vmatpush1.xpose.msra.mxu0 0.0
    %1506 = vmatprep.subr.mxu0 0.0
    %1507 = vmatpush1.xpose.msra.mxu0 0.0
    %1508 = vmatprep.subr.mxu0 0.0
    %1509 = vmatpush1.xpose.msra.mxu0 0.0
    %1510 = vmatprep.subr.mxu0 0.0
    %1511 = vmatpush1.xpose.msra.mxu0 0.0
    %1512 = vmatprep.subr.mxu0 0.0
    %1513 = vmatpush1.xpose.msra.mxu0 0.0
    %1514 = vmatprep.subr.mxu0 0.0
    %1515 = vmatpush1.xpose.msra.mxu0 0.0
    %1516 = vmatprep.subr.mxu0 0.0
    %1517 = vmatpush1.xpose.msra.mxu0 0.0
    %1518 = vmatprep.subr.mxu0 0.0
    %1519 = vmatpush1.xpose.msra.mxu0 0.0
    %1520 = vmatprep.subr.mxu0 0.0
    %1521 = vmatpush1.xpose.msra.mxu0 0.0
    %1522 = vmatprep.mubr.f32.mxu0 0.0
    %v1523 = vand.u32 %v647, 4294901760
    %1524 = vmatmul.mubr.f32.gmra.mrb[0].mxu0 %v1523
    %v1525 = vpop.f32.mrb[0].mxu0
    %v1526 = vadd.f32 %v1398, %v1525
    %v1527 = vpop.f32.mrb[0].mxu0
    %1528 = vmatprep.mubr.f32.mxu0 0.0
    %v1529 = vand.u32 %v649, 4294901760
    %1530 = vmatmul.mubr.f32.gmra.mrb[0].mxu0 %v1529
    %v1531 = vpop.f32.mrb[0].mxu0
    %v1532 = vadd.f32 %v1404, %v1531
    %v1533 = vpop.f32.mrb[0].mxu0
    %1534 = vmatprep.mubr.f32.mxu0 0.0
    %v1535 = vand.u32 %v651, 4294901760
    %1536 = vmatmul.mubr.f32.gmra.mrb[0].mxu0 %v1535
    %v1537 = vpop.f32.mrb[0].mxu0
    %v1538 = vadd.f32 %v1410, %v1537
    %v1539 = vpop.f32.mrb[0].mxu0
    %1540 = vmatprep.mubr.f32.mxu0 0.0
    %v1541 = vand.u32 %v653, 4294901760
    %1542 = vmatmul.mubr.f32.gmra.mrb[0].mxu0 %v1541
    %v1543 = vpop.f32.mrb[0].mxu0
    %v1544 = vadd.f32 %v1416, %v1543
    %v1545 = vpop.f32.mrb[0].mxu0
    %1546 = vmatprep.mubr.f32.mxu0 0.0
    %v1547 = vand.u32 %v655, 4294901760
    %1548 = vmatmul.mubr.f32.gmra.mrb[0].mxu0 %v1547
    %v1549 = vpop.f32.mrb[0].mxu0
    %v1550 = vadd.f32 %v1422, %v1549
    %v1551 = vpop.f32.mrb[0].mxu0
    %1552 = vmatprep.mubr.f32.mxu0 0.0
    %v1553 = vand.u32 %v657, 4294901760
    %1554 = vmatmul.mubr.f32.gmra.mrb[0].mxu0 %v1553
    %v1555 = vpop.f32.mrb[0].mxu0
    %v1556 = vadd.f32 %v1428, %v1555
    %v1557 = vpop.f32.mrb[0].mxu0
    %1558 = vmatprep.mubr.f32.mxu0 0.0
    %v1559 = vand.u32 %v659, 4294901760
    %1560 = vmatmul.mubr.f32.gmra.mrb[0].mxu0 %v1559
    %v1561 = vpop.f32.mrb[0].mxu0
    %v1562 = vadd.f32 %v1434, %v1561
    %v1563 = vpop.f32.mrb[0].mxu0
    %1564 = vmatprep.mubr.f32.mxu0 0.0
    %v1565 = vand.u32 %v661, 4294901760
    %1566 = vmatmul.mubr.f32.gmra.mrb[0].mxu0 %v1565
    %v1567 = vpop.f32.mrb[0].mxu0
    %v1568 = vadd.f32 %v1440, %v1567
    %v1569 = vpop.f32.mrb[0].mxu0
    %1570 = vmatprep.mubr.f32.mxu0 0.0
    %v1571 = vand.u32 %v663, 4294901760
    %1572 = vmatmul.mubr.f32.gmra.mrb[0].mxu0 %v1571
    %v1573 = vpop.f32.mrb[0].mxu0
    %v1574 = vadd.f32 %v1446, %v1573
    %v1575 = vpop.f32.mrb[0].mxu0
    %1576 = vdwg.mxu0
    %vm1577 = vcmask 588800
    %v1578 = vsel %vm1577, %v1526, -inf
    %1579 = vmax.xlane.f32.xlu0 %v1578
    %v1580 = vpop.xlane.xlu0 %1579
    %v1581 = vsel %vm1577, %v1532, -inf
    %1582 = vmax.xlane.f32.xlu0 %v1581
    %v1583 = vpop.xlane.xlu0 %1582
    %v1584 = vsel %vm1577, %v1538, -inf
    %1585 = vmax.xlane.f32.xlu0 %v1584
    %v1586 = vpop.xlane.xlu0 %1585
    %v1587 = vsel %vm1577, %v1544, -inf
    %1588 = vmax.xlane.f32.xlu0 %v1587
    %v1589 = vpop.xlane.xlu0 %1588
    %v1590 = vsel %vm1577, %v1550, -inf
    %1591 = vmax.xlane.f32.xlu0 %v1590
    %v1592 = vpop.xlane.xlu0 %1591
    %v1593 = vsel %vm1577, %v1556, -inf
    %1594 = vmax.xlane.f32.xlu0 %v1593
    %v1595 = vpop.xlane.xlu0 %1594
    %v1596 = vsel %vm1577, %v1562, -inf
    %1597 = vmax.xlane.f32.xlu0 %v1596
    %v1598 = vpop.xlane.xlu0 %1597
    %v1599 = vsel %vm1577, %v1568, -inf
    %1600 = vmax.xlane.f32.xlu0 %v1599
    %v1601 = vpop.xlane.xlu0 %1600
    %v1602 = vsel %vm1577, %v1574, -inf
    %1603 = vmax.xlane.f32.xlu0 %v1602
    %v1604 = vpop.xlane.xlu0 %1603
    %v1605 = vsub.f32 %v1526, %v1580
    %v1606 = vsub.f32 %v1532, %v1583
    %v1607 = vsub.f32 %v1538, %v1586
    %v1608 = vsub.f32 %v1544, %v1589
    %v1609 = vsub.f32 %v1550, %v1592
    %v1610 = vsub.f32 %v1556, %v1595
    %v1611 = vsub.f32 %v1562, %v1598
    %v1612 = vsub.f32 %v1568, %v1601
    %v1613 = vsub.f32 %v1574, %v1604
    %v1614 = vmul.f32 %v1605, 1.442695
    %v1615 = vpow.pop %v1614
    %v1616 = vmul.f32 %v1606, 1.442695
    %v1617 = vpow.pop %v1616
    %v1618 = vmul.f32 %v1607, 1.442695
    %v1619 = vpow.pop %v1618
    %v1620 = vmul.f32 %v1608, 1.442695
    %v1621 = vpow.pop %v1620
    %v1622 = vmul.f32 %v1609, 1.442695
    %v1623 = vpow.pop %v1622
    %v1624 = vmul.f32 %v1610, 1.442695
    %v1625 = vpow.pop %v1624
    %v1626 = vmul.f32 %v1611, 1.442695
    %v1627 = vpow.pop %v1626
    %v1628 = vmul.f32 %v1612, 1.442695
    %v1629 = vpow.pop %v1628
    %v1630 = vmul.f32 %v1613, 1.442695
    %v1631 = vpow.pop %v1630
    %v1632 = vsel %vm1577, %v1615, 0.0
    %1633 = vadd.xlane.f32.xlu0 %v1632
    %v1634 = vpop.xlane.xlu0 %1633
    %v1635 = vsel %vm1577, %v1617, 0.0
    %1636 = vadd.xlane.f32.xlu0 %v1635
    %v1637 = vpop.xlane.xlu0 %1636
    %v1638 = vsel %vm1577, %v1619, 0.0
    %1639 = vadd.xlane.f32.xlu0 %v1638
    %v1640 = vpop.xlane.xlu0 %1639
    %v1641 = vsel %vm1577, %v1621, 0.0
    %1642 = vadd.xlane.f32.xlu0 %v1641
    %v1643 = vpop.xlane.xlu0 %1642
    %v1644 = vsel %vm1577, %v1623, 0.0
    %1645 = vadd.xlane.f32.xlu0 %v1644
    %v1646 = vpop.xlane.xlu0 %1645
    %v1647 = vsel %vm1577, %v1625, 0.0
    %1648 = vadd.xlane.f32.xlu0 %v1647
    %v1649 = vpop.xlane.xlu0 %1648
    %v1650 = vsel %vm1577, %v1627, 0.0
    %1651 = vadd.xlane.f32.xlu0 %v1650
    %v1652 = vpop.xlane.xlu0 %1651
    %v1653 = vsel %vm1577, %v1629, 0.0
    %1654 = vadd.xlane.f32.xlu0 %v1653
    %v1655 = vpop.xlane.xlu0 %1654
    %v1656 = vsel %vm1577, %v1631, 0.0
    %1657 = vadd.xlane.f32.xlu0 %v1656
    %v1658 = vpop.xlane.xlu0 %1657
    %v1659 = vrcp.pop %v1634
    %v1660 = vrcp.pop %v1637
    %v1661 = vrcp.pop %v1640
    %v1662 = vrcp.pop %v1643
    %v1663 = vrcp.pop %v1646
    %v1664 = vrcp.pop %v1649
    %v1665 = vrcp.pop %v1652
    %v1666 = vrcp.pop %v1655
    %v1667 = vrcp.pop %v1658
    %v1668 = vmul.f32 %v1615, %v1659
    %v1669 = vmul.f32 %v1617, %v1660
    %v1670 = vmul.f32 %v1619, %v1661
    %v1671 = vmul.f32 %v1621, %v1662
    %v1672 = vmul.f32 %v1623, %v1663
    %v1673 = vmul.f32 %v1625, %v1664
    %v1674 = vmul.f32 %v1627, %v1665
    %v1675 = vmul.f32 %v1629, %v1666
    %v1676 = vmul.f32 %v1631, %v1667
    %1685 = vrot.lane.b32.xlu0 %v574, 104
    %v1686 = vpop.permute.xlu0 %1685
    %1687 = vrot.lane.b32.xlu0 %v575, 104
    %v1688 = vpop.permute.xlu0 %1687
    %1689 = vrot.lane.b32.xlu0 %v576, 104
    %v1690 = vpop.permute.xlu0 %1689
    %1691 = vrot.lane.b32.xlu0 %v577, 104
    %v1692 = vpop.permute.xlu0 %1691
    %1693 = vrot.lane.b32.xlu0 %v578, 104
    %v1694 = vpop.permute.xlu0 %1693
    %1695 = vrot.lane.b32.xlu0 %v579, 104
    %v1696 = vpop.permute.xlu0 %1695
    %1697 = vrot.lane.b32.xlu0 %v580, 104
    %v1698 = vpop.permute.xlu0 %1697
    %1699 = vrot.lane.b32.xlu0 %v581, 104
    %v1700 = vpop.permute.xlu0 %1699
    %1701 = vrot.lane.b32.xlu0 %v583, 104
    %v1702 = vpop.permute.xlu0 %1701
    %v1713 = vsel %vm1577, %v1668, 0
    %v1716 = vsel %vm1577, %v1669, 0
    %v1719 = vsel %vm1577, %v1670, 0
    %v1722 = vsel %vm1577, %v1671, 0
    %v1725 = vsel %vm1577, %v1672, 0
    %v1728 = vsel %vm1577, %v1673, 0
    %v1731 = vsel %vm1577, %v1674, 0
    %v1734 = vsel %vm1577, %v1675, 0
    %v1737 = vsel %vm1577, %v1676, 0
    %1739 = vmatprep.subr.mxu0 0.0
    %v1740 = vand.u32 %v1686, 4294901760
    %1741 = vmatpush1.msra.mxu0 %v1740
    %1742 = vmatprep.subr.mxu0 0.0
    %v1743 = vand.u32 %v1688, 4294901760
    %1744 = vmatpush1.msra.mxu0 %v1743
    %1745 = vmatprep.subr.mxu0 0.0
    %v1746 = vand.u32 %v1690, 4294901760
    %1747 = vmatpush1.msra.mxu0 %v1746
    %1748 = vmatprep.subr.mxu0 0.0
    %v1749 = vand.u32 %v1692, 4294901760
    %1750 = vmatpush1.msra.mxu0 %v1749
    %1751 = vmatprep.subr.mxu0 0.0
    %v1752 = vand.u32 %v1694, 4294901760
    %1753 = vmatpush1.msra.mxu0 %v1752
    %1754 = vmatprep.subr.mxu0 0.0
    %v1755 = vand.u32 %v1696, 4294901760
    %1756 = vmatpush1.msra.mxu0 %v1755
    %1757 = vmatprep.subr.mxu0 0.0
    %v1758 = vand.u32 %v1698, 4294901760
    %1759 = vmatpush1.msra.mxu0 %v1758
    %1760 = vmatprep.subr.mxu0 0.0
    %v1761 = vand.u32 %v1700, 4294901760
    %1762 = vmatpush1.msra.mxu0 %v1761
    %1763 = vmatprep.subr.mxu0 0.0
    %v1764 = vand.u32 %v1702, 4294901760
    %1765 = vmatpush1.msra.mxu0 %v1764
    %1766 = vmatprep.subr.mxu0 0.0
    %1767 = vmatpush1.msra.mxu0 0.0
    %1768 = vmatprep.subr.mxu0 0.0
    %1769 = vmatpush1.msra.mxu0 0.0
    %1770 = vmatprep.subr.mxu0 0.0
    %1771 = vmatpush1.msra.mxu0 0.0
    %1772 = vmatprep.subr.mxu0 0.0
    %1773 = vmatpush1.msra.mxu0 0.0
    %1774 = vmatprep.subr.mxu0 0.0
    %1775 = vmatpush1.msra.mxu0 0.0
    %1776 = vmatprep.subr.mxu0 0.0
    %1777 = vmatpush1.msra.mxu0 0.0
    %1778 = vmatprep.subr.mxu0 0.0
    %1779 = vmatpush1.msra.mxu0 0.0
    %1780 = vmatprep.subr.mxu0 0.0
    %1781 = vmatpush1.msra.mxu0 0.0
    %1782 = vmatprep.subr.mxu0 0.0
    %1783 = vmatpush1.msra.mxu0 0.0
    %1784 = vmatprep.subr.mxu0 0.0
    %1785 = vmatpush1.msra.mxu0 0.0
    %1786 = vmatprep.subr.mxu0 0.0
    %1787 = vmatpush1.msra.mxu0 0.0
    %1788 = vmatprep.subr.mxu0 0.0
    %1789 = vmatpush1.msra.mxu0 0.0
    %1790 = vmatprep.subr.mxu0 0.0
    %1791 = vmatpush1.msra.mxu0 0.0
    %1792 = vmatprep.subr.mxu0 0.0
    %1793 = vmatpush1.msra.mxu0 0.0
    %1794 = vmatprep.subr.mxu0 0.0
    %1795 = vmatpush1.msra.mxu0 0.0
    %1796 = vmatprep.subr.mxu0 0.0
    %1797 = vmatpush1.msra.mxu0 0.0
    %1798 = vmatprep.subr.mxu0 0.0
    %1799 = vmatpush1.msra.mxu0 0.0
    %1800 = vmatprep.subr.mxu0 0.0
    %1801 = vmatpush1.msra.mxu0 0.0
    %1802 = vmatprep.subr.mxu0 0.0
    %1803 = vmatpush1.msra.mxu0 0.0
    %1804 = vmatprep.subr.mxu0 0.0
    %1805 = vmatpush1.msra.mxu0 0.0
    %1806 = vmatprep.subr.mxu0 0.0
    %1807 = vmatpush1.msra.mxu0 0.0
    %1808 = vmatprep.subr.mxu0 0.0
    %1809 = vmatpush1.msra.mxu0 0.0
    %1810 = vmatprep.subr.mxu0 0.0
    %1811 = vmatpush1.msra.mxu0 0.0
    %1812 = vmatprep.mubr.f32.mxu0 0.0
    %v1813 = vand.u32 %v1713, 4294901760
    %v1814 = vsub.f32 %v1713, %v1813
    %v1815 = vand.u32 %v1814, 4294901760
    %v1816 = vsub.f32 %v1814, %v1815
    %v1817 = vand.u32 %v1816, 4294901760
    %1818 = vmatmul.mubr.f32.gmra.mrb[0].mxu0 %v1817
    %v1819 = vpop.f32.mrb[0].mxu0
    %v1820 = vadd.f32 0.0, %v1819
    %v1821 = vpop.f32.mrb[0].mxu0
    %1822 = vmatprep.mubr.f32.mxu0 0.0
    %v1823 = vand.u32 %v1716, 4294901760
    %v1824 = vsub.f32 %v1716, %v1823
    %v1825 = vand.u32 %v1824, 4294901760
    %v1826 = vsub.f32 %v1824, %v1825
    %v1827 = vand.u32 %v1826, 4294901760
    %1828 = vmatmul.mubr.f32.gmra.mrb[0].mxu0 %v1827
    %v1829 = vpop.f32.mrb[0].mxu0
    %v1830 = vadd.f32 0.0, %v1829
    %v1831 = vpop.f32.mrb[0].mxu0
    %1832 = vmatprep.mubr.f32.mxu0 0.0
    %v1833 = vand.u32 %v1719, 4294901760
    %v1834 = vsub.f32 %v1719, %v1833
    %v1835 = vand.u32 %v1834, 4294901760
    %v1836 = vsub.f32 %v1834, %v1835
    %v1837 = vand.u32 %v1836, 4294901760
    %1838 = vmatmul.mubr.f32.gmra.mrb[0].mxu0 %v1837
    %v1839 = vpop.f32.mrb[0].mxu0
    %v1840 = vadd.f32 0.0, %v1839
    %v1841 = vpop.f32.mrb[0].mxu0
    %1842 = vmatprep.mubr.f32.mxu0 0.0
    %v1843 = vand.u32 %v1722, 4294901760
    %v1844 = vsub.f32 %v1722, %v1843
    %v1845 = vand.u32 %v1844, 4294901760
    %v1846 = vsub.f32 %v1844, %v1845
    %v1847 = vand.u32 %v1846, 4294901760
    %1848 = vmatmul.mubr.f32.gmra.mrb[0].mxu0 %v1847
    %v1849 = vpop.f32.mrb[0].mxu0
    %v1850 = vadd.f32 0.0, %v1849
    %v1851 = vpop.f32.mrb[0].mxu0
    %1852 = vmatprep.mubr.f32.mxu0 0.0
    %v1853 = vand.u32 %v1725, 4294901760
    %v1854 = vsub.f32 %v1725, %v1853
    %v1855 = vand.u32 %v1854, 4294901760
    %v1856 = vsub.f32 %v1854, %v1855
    %v1857 = vand.u32 %v1856, 4294901760
    %1858 = vmatmul.mubr.f32.gmra.mrb[0].mxu0 %v1857
    %v1859 = vpop.f32.mrb[0].mxu0
    %v1860 = vadd.f32 0.0, %v1859
    %v1861 = vpop.f32.mrb[0].mxu0
    %1862 = vmatprep.mubr.f32.mxu0 0.0
    %v1863 = vand.u32 %v1728, 4294901760
    %v1864 = vsub.f32 %v1728, %v1863
    %v1865 = vand.u32 %v1864, 4294901760
    %v1866 = vsub.f32 %v1864, %v1865
    %v1867 = vand.u32 %v1866, 4294901760
    %1868 = vmatmul.mubr.f32.gmra.mrb[0].mxu0 %v1867
    %v1869 = vpop.f32.mrb[0].mxu0
    %v1870 = vadd.f32 0.0, %v1869
    %v1871 = vpop.f32.mrb[0].mxu0
    %1872 = vmatprep.mubr.f32.mxu0 0.0
    %v1873 = vand.u32 %v1731, 4294901760
    %v1874 = vsub.f32 %v1731, %v1873
    %v1875 = vand.u32 %v1874, 4294901760
    %v1876 = vsub.f32 %v1874, %v1875
    %v1877 = vand.u32 %v1876, 4294901760
    %1878 = vmatmul.mubr.f32.gmra.mrb[0].mxu0 %v1877
    %v1879 = vpop.f32.mrb[0].mxu0
    %v1880 = vadd.f32 0.0, %v1879
    %v1881 = vpop.f32.mrb[0].mxu0
    %1882 = vmatprep.mubr.f32.mxu0 0.0
    %v1883 = vand.u32 %v1734, 4294901760
    %v1884 = vsub.f32 %v1734, %v1883
    %v1885 = vand.u32 %v1884, 4294901760
    %v1886 = vsub.f32 %v1884, %v1885
    %v1887 = vand.u32 %v1886, 4294901760
    %1888 = vmatmul.mubr.f32.gmra.mrb[0].mxu0 %v1887
    %v1889 = vpop.f32.mrb[0].mxu0
    %v1890 = vadd.f32 0.0, %v1889
    %v1891 = vpop.f32.mrb[0].mxu0
    %1892 = vmatprep.mubr.f32.mxu0 0.0
    %v1893 = vand.u32 %v1737, 4294901760
    %v1894 = vsub.f32 %v1737, %v1893
    %v1895 = vand.u32 %v1894, 4294901760
    %v1896 = vsub.f32 %v1894, %v1895
    %v1897 = vand.u32 %v1896, 4294901760
    %1898 = vmatmul.mubr.f32.gmra.mrb[0].mxu0 %v1897
    %v1899 = vpop.f32.mrb[0].mxu0
    %v1900 = vadd.f32 0.0, %v1899
    %v1901 = vpop.f32.mrb[0].mxu0
    %1902 = vdwg.mxu0
    %1903 = vmatprep.subr.mxu0 0.0
    %v1904 = vand.u32 %v1686, 4294901760
    %v1905 = vsub.f32 %v1686, %v1904
    %v1906 = vand.u32 %v1905, 4294901760
    %v1907 = vsub.f32 %v1905, %v1906
    %v1908 = vand.u32 %v1907, 4294901760
    %1909 = vmatpush1.msra.mxu0 %v1908
    %1910 = vmatprep.subr.mxu0 0.0
    %v1911 = vand.u32 %v1688, 4294901760
    %v1912 = vsub.f32 %v1688, %v1911
    %v1913 = vand.u32 %v1912, 4294901760
    %v1914 = vsub.f32 %v1912, %v1913
    %v1915 = vand.u32 %v1914, 4294901760
    %1916 = vmatpush1.msra.mxu0 %v1915
    %1917 = vmatprep.subr.mxu0 0.0
    %v1918 = vand.u32 %v1690, 4294901760
    %v1919 = vsub.f32 %v1690, %v1918
    %v1920 = vand.u32 %v1919, 4294901760
    %v1921 = vsub.f32 %v1919, %v1920
    %v1922 = vand.u32 %v1921, 4294901760
    %1923 = vmatpush1.msra.mxu0 %v1922
    %1924 = vmatprep.subr.mxu0 0.0
    %v1925 = vand.u32 %v1692, 4294901760
    %v1926 = vsub.f32 %v1692, %v1925
    %v1927 = vand.u32 %v1926, 4294901760
    %v1928 = vsub.f32 %v1926, %v1927
    %v1929 = vand.u32 %v1928, 4294901760
    %1930 = vmatpush1.msra.mxu0 %v1929
    %1931 = vmatprep.subr.mxu0 0.0
    %v1932 = vand.u32 %v1694, 4294901760
    %v1933 = vsub.f32 %v1694, %v1932
    %v1934 = vand.u32 %v1933, 4294901760
    %v1935 = vsub.f32 %v1933, %v1934
    %v1936 = vand.u32 %v1935, 4294901760
    %1937 = vmatpush1.msra.mxu0 %v1936
    %1938 = vmatprep.subr.mxu0 0.0
    %v1939 = vand.u32 %v1696, 4294901760
    %v1940 = vsub.f32 %v1696, %v1939
    %v1941 = vand.u32 %v1940, 4294901760
    %v1942 = vsub.f32 %v1940, %v1941
    %v1943 = vand.u32 %v1942, 4294901760
    %1944 = vmatpush1.msra.mxu0 %v1943
    %1945 = vmatprep.subr.mxu0 0.0
    %v1946 = vand.u32 %v1698, 4294901760
    %v1947 = vsub.f32 %v1698, %v1946
    %v1948 = vand.u32 %v1947, 4294901760
    %v1949 = vsub.f32 %v1947, %v1948
    %v1950 = vand.u32 %v1949, 4294901760
    %1951 = vmatpush1.msra.mxu0 %v1950
    %1952 = vmatprep.subr.mxu0 0.0
    %v1953 = vand.u32 %v1700, 4294901760
    %v1954 = vsub.f32 %v1700, %v1953
    %v1955 = vand.u32 %v1954, 4294901760
    %v1956 = vsub.f32 %v1954, %v1955
    %v1957 = vand.u32 %v1956, 4294901760
    %1958 = vmatpush1.msra.mxu0 %v1957
    %1959 = vmatprep.subr.mxu0 0.0
    %v1960 = vand.u32 %v1702, 4294901760
    %v1961 = vsub.f32 %v1702, %v1960
    %v1962 = vand.u32 %v1961, 4294901760
    %v1963 = vsub.f32 %v1961, %v1962
    %v1964 = vand.u32 %v1963, 4294901760
    %1965 = vmatpush1.msra.mxu0 %v1964
    %1966 = vmatprep.subr.mxu0 0.0
    %1967 = vmatpush1.msra.mxu0 0.0
    %1968 = vmatprep.subr.mxu0 0.0
    %1969 = vmatpush1.msra.mxu0 0.0
    %1970 = vmatprep.subr.mxu0 0.0
    %1971 = vmatpush1.msra.mxu0 0.0
    %1972 = vmatprep.subr.mxu0 0.0
    %1973 = vmatpush1.msra.mxu0 0.0
    %1974 = vmatprep.subr.mxu0 0.0
    %1975 = vmatpush1.msra.mxu0 0.0
    %1976 = vmatprep.subr.mxu0 0.0
    %1977 = vmatpush1.msra.mxu0 0.0
    %1978 = vmatprep.subr.mxu0 0.0
    %1979 = vmatpush1.msra.mxu0 0.0
    %1980 = vmatprep.subr.mxu0 0.0
    %1981 = vmatpush1.msra.mxu0 0.0
    %1982 = vmatprep.subr.mxu0 0.0
    %1983 = vmatpush1.msra.mxu0 0.0
    %1984 = vmatprep.subr.mxu0 0.0
    %1985 = vmatpush1.msra.mxu0 0.0
    %1986 = vmatprep.subr.mxu0 0.0
    %1987 = vmatpush1.msra.mxu0 0.0
    %1988 = vmatprep.subr.mxu0 0.0
    %1989 = vmatpush1.msra.mxu0 0.0
    %1990 = vmatprep.subr.mxu0 0.0
    %1991 = vmatpush1.msra.mxu0 0.0
    %1992 = vmatprep.subr.mxu0 0.0
    %1993 = vmatpush1.msra.mxu0 0.0
    %1994 = vmatprep.subr.mxu0 0.0
    %1995 = vmatpush1.msra.mxu0 0.0
    %1996 = vmatprep.subr.mxu0 0.0
    %1997 = vmatpush1.msra.mxu0 0.0
    %1998 = vmatprep.subr.mxu0 0.0
    %1999 = vmatpush1.msra.mxu0 0.0
    %2000 = vmatprep.subr.mxu0 0.0
    %2001 = vmatpush1.msra.mxu0 0.0
    %2002 = vmatprep.subr.mxu0 0.0
    %2003 = vmatpush1.msra.mxu0 0.0
    %2004 = vmatprep.subr.mxu0 0.0
    %2005 = vmatpush1.msra.mxu0 0.0
    %2006 = vmatprep.subr.mxu0 0.0
    %2007 = vmatpush1.msra.mxu0 0.0
    %2008 = vmatprep.subr.mxu0 0.0
    %2009 = vmatpush1.msra.mxu0 0.0
    %2010 = vmatprep.subr.mxu0 0.0
    %2011 = vmatpush1.msra.mxu0 0.0
    %2012 = vmatprep.mubr.f32.mxu0 0.0
    %v2013 = vand.u32 %v1713, 4294901760
    %2014 = vmatmul.mubr.f32.gmra.mrb[0].mxu0 %v2013
    %v2015 = vpop.f32.mrb[0].mxu0
    %v2016 = vadd.f32 %v1820, %v2015
    %v2017 = vpop.f32.mrb[0].mxu0
    %2018 = vmatprep.mubr.f32.mxu0 0.0
    %v2019 = vand.u32 %v1716, 4294901760
    %2020 = vmatmul.mubr.f32.gmra.mrb[0].mxu0 %v2019
    %v2021 = vpop.f32.mrb[0].mxu0
    %v2022 = vadd.f32 %v1830, %v2021
    %v2023 = vpop.f32.mrb[0].mxu0
    %2024 = vmatprep.mubr.f32.mxu0 0.0
    %v2025 = vand.u32 %v1719, 4294901760
    %2026 = vmatmul.mubr.f32.gmra.mrb[0].mxu0 %v2025
    %v2027 = vpop.f32.mrb[0].mxu0
    %v2028 = vadd.f32 %v1840, %v2027
    %v2029 = vpop.f32.mrb[0].mxu0
    %2030 = vmatprep.mubr.f32.mxu0 0.0
    %v2031 = vand.u32 %v1722, 4294901760
    %2032 = vmatmul.mubr.f32.gmra.mrb[0].mxu0 %v2031
    %v2033 = vpop.f32.mrb[0].mxu0
    %v2034 = vadd.f32 %v1850, %v2033
    %v2035 = vpop.f32.mrb[0].mxu0
    %2036 = vmatprep.mubr.f32.mxu0 0.0
    %v2037 = vand.u32 %v1725, 4294901760
    %2038 = vmatmul.mubr.f32.gmra.mrb[0].mxu0 %v2037
    %v2039 = vpop.f32.mrb[0].mxu0
    %v2040 = vadd.f32 %v1860, %v2039
    %v2041 = vpop.f32.mrb[0].mxu0
    %2042 = vmatprep.mubr.f32.mxu0 0.0
    %v2043 = vand.u32 %v1728, 4294901760
    %2044 = vmatmul.mubr.f32.gmra.mrb[0].mxu0 %v2043
    %v2045 = vpop.f32.mrb[0].mxu0
    %v2046 = vadd.f32 %v1870, %v2045
    %v2047 = vpop.f32.mrb[0].mxu0
    %2048 = vmatprep.mubr.f32.mxu0 0.0
    %v2049 = vand.u32 %v1731, 4294901760
    %2050 = vmatmul.mubr.f32.gmra.mrb[0].mxu0 %v2049
    %v2051 = vpop.f32.mrb[0].mxu0
    %v2052 = vadd.f32 %v1880, %v2051
    %v2053 = vpop.f32.mrb[0].mxu0
    %2054 = vmatprep.mubr.f32.mxu0 0.0
    %v2055 = vand.u32 %v1734, 4294901760
    %2056 = vmatmul.mubr.f32.gmra.mrb[0].mxu0 %v2055
    %v2057 = vpop.f32.mrb[0].mxu0
    %v2058 = vadd.f32 %v1890, %v2057
    %v2059 = vpop.f32.mrb[0].mxu0
    %2060 = vmatprep.mubr.f32.mxu0 0.0
    %v2061 = vand.u32 %v1737, 4294901760
    %2062 = vmatmul.mubr.f32.gmra.mrb[0].mxu0 %v2061
    %v2063 = vpop.f32.mrb[0].mxu0
    %v2064 = vadd.f32 %v1900, %v2063
    %v2065 = vpop.f32.mrb[0].mxu0
    %2066 = vdwg.mxu0
    %2067 = vmatprep.subr.mxu0 0.0
    %v2068 = vand.u32 %v1686, 4294901760
    %v2069 = vsub.f32 %v1686, %v2068
    %2070 = vmatpush1.msra.mxu0 %v2069
    %2071 = vmatprep.subr.mxu0 0.0
    %v2072 = vand.u32 %v1688, 4294901760
    %v2073 = vsub.f32 %v1688, %v2072
    %2074 = vmatpush1.msra.mxu0 %v2073
    %2075 = vmatprep.subr.mxu0 0.0
    %v2076 = vand.u32 %v1690, 4294901760
    %v2077 = vsub.f32 %v1690, %v2076
    %2078 = vmatpush1.msra.mxu0 %v2077
    %2079 = vmatprep.subr.mxu0 0.0
    %v2080 = vand.u32 %v1692, 4294901760
    %v2081 = vsub.f32 %v1692, %v2080
    %2082 = vmatpush1.msra.mxu0 %v2081
    %2083 = vmatprep.subr.mxu0 0.0
    %v2084 = vand.u32 %v1694, 4294901760
    %v2085 = vsub.f32 %v1694, %v2084
    %2086 = vmatpush1.msra.mxu0 %v2085
    %2087 = vmatprep.subr.mxu0 0.0
    %v2088 = vand.u32 %v1696, 4294901760
    %v2089 = vsub.f32 %v1696, %v2088
    %2090 = vmatpush1.msra.mxu0 %v2089
    %2091 = vmatprep.subr.mxu0 0.0
    %v2092 = vand.u32 %v1698, 4294901760
    %v2093 = vsub.f32 %v1698, %v2092
    %2094 = vmatpush1.msra.mxu0 %v2093
    %2095 = vmatprep.subr.mxu0 0.0
    %v2096 = vand.u32 %v1700, 4294901760
    %v2097 = vsub.f32 %v1700, %v2096
    %2098 = vmatpush1.msra.mxu0 %v2097
    %2099 = vmatprep.subr.mxu0 0.0
    %v2100 = vand.u32 %v1702, 4294901760
    %v2101 = vsub.f32 %v1702, %v2100
    %2102 = vmatpush1.msra.mxu0 %v2101
    %2103 = vmatprep.subr.mxu0 0.0
    %2104 = vmatpush1.msra.mxu0 0.0
    %2105 = vmatprep.subr.mxu0 0.0
    %2106 = vmatpush1.msra.mxu0 0.0
    %2107 = vmatprep.subr.mxu0 0.0
    %2108 = vmatpush1.msra.mxu0 0.0
    %2109 = vmatprep.subr.mxu0 0.0
    %2110 = vmatpush1.msra.mxu0 0.0
    %2111 = vmatprep.subr.mxu0 0.0
    %2112 = vmatpush1.msra.mxu0 0.0
    %2113 = vmatprep.subr.mxu0 0.0
    %2114 = vmatpush1.msra.mxu0 0.0
    %2115 = vmatprep.subr.mxu0 0.0
    %2116 = vmatpush1.msra.mxu0 0.0
    %2117 = vmatprep.subr.mxu0 0.0
    %2118 = vmatpush1.msra.mxu0 0.0
    %2119 = vmatprep.subr.mxu0 0.0
    %2120 = vmatpush1.msra.mxu0 0.0
    %2121 = vmatprep.subr.mxu0 0.0
    %2122 = vmatpush1.msra.mxu0 0.0
    %2123 = vmatprep.subr.mxu0 0.0
    %2124 = vmatpush1.msra.mxu0 0.0
    %2125 = vmatprep.subr.mxu0 0.0
    %2126 = vmatpush1.msra.mxu0 0.0
    %2127 = vmatprep.subr.mxu0 0.0
    %2128 = vmatpush1.msra.mxu0 0.0
    %2129 = vmatprep.subr.mxu0 0.0
    %2130 = vmatpush1.msra.mxu0 0.0
    %2131 = vmatprep.subr.mxu0 0.0
    %2132 = vmatpush1.msra.mxu0 0.0
    %2133 = vmatprep.subr.mxu0 0.0
    %2134 = vmatpush1.msra.mxu0 0.0
    %2135 = vmatprep.subr.mxu0 0.0
    %2136 = vmatpush1.msra.mxu0 0.0
    %2137 = vmatprep.subr.mxu0 0.0
    %2138 = vmatpush1.msra.mxu0 0.0
    %2139 = vmatprep.subr.mxu0 0.0
    %2140 = vmatpush1.msra.mxu0 0.0
    %2141 = vmatprep.subr.mxu0 0.0
    %2142 = vmatpush1.msra.mxu0 0.0
    %2143 = vmatprep.subr.mxu0 0.0
    %2144 = vmatpush1.msra.mxu0 0.0
    %2145 = vmatprep.subr.mxu0 0.0
    %2146 = vmatpush1.msra.mxu0 0.0
    %2147 = vmatprep.subr.mxu0 0.0
    %2148 = vmatpush1.msra.mxu0 0.0
    %2149 = vmatprep.mubr.f32.mxu0 0.0
    %v2150 = vand.u32 %v1713, 4294901760
    %v2151 = vsub.f32 %v1713, %v2150
    %2152 = vmatmul.mubr.f32.gmra.mrb[0].mxu0 %v2151
    %v2153 = vpop.f32.mrb[0].mxu0
    %v2154 = vadd.f32 %v2016, %v2153
    %v2155 = vpop.f32.mrb[0].mxu0
    %2156 = vmatprep.mubr.f32.mxu0 0.0
    %v2157 = vand.u32 %v1716, 4294901760
    %v2158 = vsub.f32 %v1716, %v2157
    %2159 = vmatmul.mubr.f32.gmra.mrb[0].mxu0 %v2158
    %v2160 = vpop.f32.mrb[0].mxu0
    %v2161 = vadd.f32 %v2022, %v2160
    %v2162 = vpop.f32.mrb[0].mxu0
    %2163 = vmatprep.mubr.f32.mxu0 0.0
    %v2164 = vand.u32 %v1719, 4294901760
    %v2165 = vsub.f32 %v1719, %v2164
    %2166 = vmatmul.mubr.f32.gmra.mrb[0].mxu0 %v2165
    %v2167 = vpop.f32.mrb[0].mxu0
    %v2168 = vadd.f32 %v2028, %v2167
    %v2169 = vpop.f32.mrb[0].mxu0
    %2170 = vmatprep.mubr.f32.mxu0 0.0
    %v2171 = vand.u32 %v1722, 4294901760
    %v2172 = vsub.f32 %v1722, %v2171
    %2173 = vmatmul.mubr.f32.gmra.mrb[0].mxu0 %v2172
    %v2174 = vpop.f32.mrb[0].mxu0
    %v2175 = vadd.f32 %v2034, %v2174
    %v2176 = vpop.f32.mrb[0].mxu0
    %2177 = vmatprep.mubr.f32.mxu0 0.0
    %v2178 = vand.u32 %v1725, 4294901760
    %v2179 = vsub.f32 %v1725, %v2178
    %2180 = vmatmul.mubr.f32.gmra.mrb[0].mxu0 %v2179
    %v2181 = vpop.f32.mrb[0].mxu0
    %v2182 = vadd.f32 %v2040, %v2181
    %v2183 = vpop.f32.mrb[0].mxu0
    %2184 = vmatprep.mubr.f32.mxu0 0.0
    %v2185 = vand.u32 %v1728, 4294901760
    %v2186 = vsub.f32 %v1728, %v2185
    %2187 = vmatmul.mubr.f32.gmra.mrb[0].mxu0 %v2186
    %v2188 = vpop.f32.mrb[0].mxu0
    %v2189 = vadd.f32 %v2046, %v2188
    %v2190 = vpop.f32.mrb[0].mxu0
    %2191 = vmatprep.mubr.f32.mxu0 0.0
    %v2192 = vand.u32 %v1731, 4294901760
    %v2193 = vsub.f32 %v1731, %v2192
    %2194 = vmatmul.mubr.f32.gmra.mrb[0].mxu0 %v2193
    %v2195 = vpop.f32.mrb[0].mxu0
    %v2196 = vadd.f32 %v2052, %v2195
    %v2197 = vpop.f32.mrb[0].mxu0
    %2198 = vmatprep.mubr.f32.mxu0 0.0
    %v2199 = vand.u32 %v1734, 4294901760
    %v2200 = vsub.f32 %v1734, %v2199
    %2201 = vmatmul.mubr.f32.gmra.mrb[0].mxu0 %v2200
    %v2202 = vpop.f32.mrb[0].mxu0
    %v2203 = vadd.f32 %v2058, %v2202
    %v2204 = vpop.f32.mrb[0].mxu0
    %2205 = vmatprep.mubr.f32.mxu0 0.0
    %v2206 = vand.u32 %v1737, 4294901760
    %v2207 = vsub.f32 %v1737, %v2206
    %2208 = vmatmul.mubr.f32.gmra.mrb[0].mxu0 %v2207
    %v2209 = vpop.f32.mrb[0].mxu0
    %v2210 = vadd.f32 %v2064, %v2209
    %v2211 = vpop.f32.mrb[0].mxu0
    %2212 = vdwg.mxu0
    %2213 = vmatprep.subr.mxu0 0.0
    %v2214 = vand.u32 %v1686, 4294901760
    %2215 = vmatpush1.msra.mxu0 %v2214
    %2216 = vmatprep.subr.mxu0 0.0
    %v2217 = vand.u32 %v1688, 4294901760
    %2218 = vmatpush1.msra.mxu0 %v2217
    %2219 = vmatprep.subr.mxu0 0.0
    %v2220 = vand.u32 %v1690, 4294901760
    %2221 = vmatpush1.msra.mxu0 %v2220
    %2222 = vmatprep.subr.mxu0 0.0
    %v2223 = vand.u32 %v1692, 4294901760
    %2224 = vmatpush1.msra.mxu0 %v2223
    %2225 = vmatprep.subr.mxu0 0.0
    %v2226 = vand.u32 %v1694, 4294901760
    %2227 = vmatpush1.msra.mxu0 %v2226
    %2228 = vmatprep.subr.mxu0 0.0
    %v2229 = vand.u32 %v1696, 4294901760
    %2230 = vmatpush1.msra.mxu0 %v2229
    %2231 = vmatprep.subr.mxu0 0.0
    %v2232 = vand.u32 %v1698, 4294901760
    %2233 = vmatpush1.msra.mxu0 %v2232
    %2234 = vmatprep.subr.mxu0 0.0
    %v2235 = vand.u32 %v1700, 4294901760
    %2236 = vmatpush1.msra.mxu0 %v2235
    %2237 = vmatprep.subr.mxu0 0.0
    %v2238 = vand.u32 %v1702, 4294901760
    %2239 = vmatpush1.msra.mxu0 %v2238
    %2240 = vmatprep.subr.mxu0 0.0
    %2241 = vmatpush1.msra.mxu0 0.0
    %2242 = vmatprep.subr.mxu0 0.0
    %2243 = vmatpush1.msra.mxu0 0.0
    %2244 = vmatprep.subr.mxu0 0.0
    %2245 = vmatpush1.msra.mxu0 0.0
    %2246 = vmatprep.subr.mxu0 0.0
    %2247 = vmatpush1.msra.mxu0 0.0
    %2248 = vmatprep.subr.mxu0 0.0
    %2249 = vmatpush1.msra.mxu0 0.0
    %2250 = vmatprep.subr.mxu0 0.0
    %2251 = vmatpush1.msra.mxu0 0.0
    %2252 = vmatprep.subr.mxu0 0.0
    %2253 = vmatpush1.msra.mxu0 0.0
    %2254 = vmatprep.subr.mxu0 0.0
    %2255 = vmatpush1.msra.mxu0 0.0
    %2256 = vmatprep.subr.mxu0 0.0
    %2257 = vmatpush1.msra.mxu0 0.0
    %2258 = vmatprep.subr.mxu0 0.0
    %2259 = vmatpush1.msra.mxu0 0.0
    %2260 = vmatprep.subr.mxu0 0.0
    %2261 = vmatpush1.msra.mxu0 0.0
    %2262 = vmatprep.subr.mxu0 0.0
    %2263 = vmatpush1.msra.mxu0 0.0
    %2264 = vmatprep.subr.mxu0 0.0
    %2265 = vmatpush1.msra.mxu0 0.0
    %2266 = vmatprep.subr.mxu0 0.0
    %2267 = vmatpush1.msra.mxu0 0.0
    %2268 = vmatprep.subr.mxu0 0.0
    %2269 = vmatpush1.msra.mxu0 0.0
    %2270 = vmatprep.subr.mxu0 0.0
    %2271 = vmatpush1.msra.mxu0 0.0
    %2272 = vmatprep.subr.mxu0 0.0
    %2273 = vmatpush1.msra.mxu0 0.0
    %2274 = vmatprep.subr.mxu0 0.0
    %2275 = vmatpush1.msra.mxu0 0.0
    %2276 = vmatprep.subr.mxu0 0.0
    %2277 = vmatpush1.msra.mxu0 0.0
    %2278 = vmatprep.subr.mxu0 0.0
    %2279 = vmatpush1.msra.mxu0 0.0
    %2280 = vmatprep.subr.mxu0 0.0
    %2281 = vmatpush1.msra.mxu0 0.0
    %2282 = vmatprep.subr.mxu0 0.0
    %2283 = vmatpush1.msra.mxu0 0.0
    %2284 = vmatprep.subr.mxu0 0.0
    %2285 = vmatpush1.msra.mxu0 0.0
    %2286 = vmatprep.mubr.f32.mxu0 0.0
    %v2287 = vand.u32 %v1713, 4294901760
    %v2288 = vsub.f32 %v1713, %v2287
    %v2289 = vand.u32 %v2288, 4294901760
    %2290 = vmatmul.mubr.f32.gmra.mrb[0].mxu0 %v2289
    %v2291 = vpop.f32.mrb[0].mxu0
    %v2292 = vadd.f32 %v2154, %v2291
    %v2293 = vpop.f32.mrb[0].mxu0
    %2294 = vmatprep.mubr.f32.mxu0 0.0
    %v2295 = vand.u32 %v1716, 4294901760
    %v2296 = vsub.f32 %v1716, %v2295
    %v2297 = vand.u32 %v2296, 4294901760
    %2298 = vmatmul.mubr.f32.gmra.mrb[0].mxu0 %v2297
    %v2299 = vpop.f32.mrb[0].mxu0
    %v2300 = vadd.f32 %v2161, %v2299
    %v2301 = vpop.f32.mrb[0].mxu0
    %2302 = vmatprep.mubr.f32.mxu0 0.0
    %v2303 = vand.u32 %v1719, 4294901760
    %v2304 = vsub.f32 %v1719, %v2303
    %v2305 = vand.u32 %v2304, 4294901760
    %2306 = vmatmul.mubr.f32.gmra.mrb[0].mxu0 %v2305
    %v2307 = vpop.f32.mrb[0].mxu0
    %v2308 = vadd.f32 %v2168, %v2307
    %v2309 = vpop.f32.mrb[0].mxu0
    %2310 = vmatprep.mubr.f32.mxu0 0.0
    %v2311 = vand.u32 %v1722, 4294901760
    %v2312 = vsub.f32 %v1722, %v2311
    %v2313 = vand.u32 %v2312, 4294901760
    %2314 = vmatmul.mubr.f32.gmra.mrb[0].mxu0 %v2313
    %v2315 = vpop.f32.mrb[0].mxu0
    %v2316 = vadd.f32 %v2175, %v2315
    %v2317 = vpop.f32.mrb[0].mxu0
    %2318 = vmatprep.mubr.f32.mxu0 0.0
    %v2319 = vand.u32 %v1725, 4294901760
    %v2320 = vsub.f32 %v1725, %v2319
    %v2321 = vand.u32 %v2320, 4294901760
    %2322 = vmatmul.mubr.f32.gmra.mrb[0].mxu0 %v2321
    %v2323 = vpop.f32.mrb[0].mxu0
    %v2324 = vadd.f32 %v2182, %v2323
    %v2325 = vpop.f32.mrb[0].mxu0
    %2326 = vmatprep.mubr.f32.mxu0 0.0
    %v2327 = vand.u32 %v1728, 4294901760
    %v2328 = vsub.f32 %v1728, %v2327
    %v2329 = vand.u32 %v2328, 4294901760
    %2330 = vmatmul.mubr.f32.gmra.mrb[0].mxu0 %v2329
    %v2331 = vpop.f32.mrb[0].mxu0
    %v2332 = vadd.f32 %v2189, %v2331
    %v2333 = vpop.f32.mrb[0].mxu0
    %2334 = vmatprep.mubr.f32.mxu0 0.0
    %v2335 = vand.u32 %v1731, 4294901760
    %v2336 = vsub.f32 %v1731, %v2335
    %v2337 = vand.u32 %v2336, 4294901760
    %2338 = vmatmul.mubr.f32.gmra.mrb[0].mxu0 %v2337
    %v2339 = vpop.f32.mrb[0].mxu0
    %v2340 = vadd.f32 %v2196, %v2339
    %v2341 = vpop.f32.mrb[0].mxu0
    %2342 = vmatprep.mubr.f32.mxu0 0.0
    %v2343 = vand.u32 %v1734, 4294901760
    %v2344 = vsub.f32 %v1734, %v2343
    %v2345 = vand.u32 %v2344, 4294901760
    %2346 = vmatmul.mubr.f32.gmra.mrb[0].mxu0 %v2345
    %v2347 = vpop.f32.mrb[0].mxu0
    %v2348 = vadd.f32 %v2203, %v2347
    %v2349 = vpop.f32.mrb[0].mxu0
    %2350 = vmatprep.mubr.f32.mxu0 0.0
    %v2351 = vand.u32 %v1737, 4294901760
    %v2352 = vsub.f32 %v1737, %v2351
    %v2353 = vand.u32 %v2352, 4294901760
    %2354 = vmatmul.mubr.f32.gmra.mrb[0].mxu0 %v2353
    %v2355 = vpop.f32.mrb[0].mxu0
    %v2356 = vadd.f32 %v2210, %v2355
    %v2357 = vpop.f32.mrb[0].mxu0
    %2358 = vdwg.mxu0
    %2359 = vmatprep.subr.mxu0 0.0
    %v2360 = vand.u32 %v1686, 4294901760
    %v2361 = vsub.f32 %v1686, %v2360
    %v2362 = vand.u32 %v2361, 4294901760
    %2363 = vmatpush1.msra.mxu0 %v2362
    %2364 = vmatprep.subr.mxu0 0.0
    %v2365 = vand.u32 %v1688, 4294901760
    %v2366 = vsub.f32 %v1688, %v2365
    %v2367 = vand.u32 %v2366, 4294901760
    %2368 = vmatpush1.msra.mxu0 %v2367
    %2369 = vmatprep.subr.mxu0 0.0
    %v2370 = vand.u32 %v1690, 4294901760
    %v2371 = vsub.f32 %v1690, %v2370
    %v2372 = vand.u32 %v2371, 4294901760
    %2373 = vmatpush1.msra.mxu0 %v2372
    %2374 = vmatprep.subr.mxu0 0.0
    %v2375 = vand.u32 %v1692, 4294901760
    %v2376 = vsub.f32 %v1692, %v2375
    %v2377 = vand.u32 %v2376, 4294901760
    %2378 = vmatpush1.msra.mxu0 %v2377
    %2379 = vmatprep.subr.mxu0 0.0
    %v2380 = vand.u32 %v1694, 4294901760
    %v2381 = vsub.f32 %v1694, %v2380
    %v2382 = vand.u32 %v2381, 4294901760
    %2383 = vmatpush1.msra.mxu0 %v2382
    %2384 = vmatprep.subr.mxu0 0.0
    %v2385 = vand.u32 %v1696, 4294901760
    %v2386 = vsub.f32 %v1696, %v2385
    %v2387 = vand.u32 %v2386, 4294901760
    %2388 = vmatpush1.msra.mxu0 %v2387
    %2389 = vmatprep.subr.mxu0 0.0
    %v2390 = vand.u32 %v1698, 4294901760
    %v2391 = vsub.f32 %v1698, %v2390
    %v2392 = vand.u32 %v2391, 4294901760
    %2393 = vmatpush1.msra.mxu0 %v2392
    %2394 = vmatprep.subr.mxu0 0.0
    %v2395 = vand.u32 %v1700, 4294901760
    %v2396 = vsub.f32 %v1700, %v2395
    %v2397 = vand.u32 %v2396, 4294901760
    %2398 = vmatpush1.msra.mxu0 %v2397
    %2399 = vmatprep.subr.mxu0 0.0
    %v2400 = vand.u32 %v1702, 4294901760
    %v2401 = vsub.f32 %v1702, %v2400
    %v2402 = vand.u32 %v2401, 4294901760
    %2403 = vmatpush1.msra.mxu0 %v2402
    %2404 = vmatprep.subr.mxu0 0.0
    %2405 = vmatpush1.msra.mxu0 0.0
    %2406 = vmatprep.subr.mxu0 0.0
    %2407 = vmatpush1.msra.mxu0 0.0
    %2408 = vmatprep.subr.mxu0 0.0
    %2409 = vmatpush1.msra.mxu0 0.0
    %2410 = vmatprep.subr.mxu0 0.0
    %2411 = vmatpush1.msra.mxu0 0.0
    %2412 = vmatprep.subr.mxu0 0.0
    %2413 = vmatpush1.msra.mxu0 0.0
    %2414 = vmatprep.subr.mxu0 0.0
    %2415 = vmatpush1.msra.mxu0 0.0
    %2416 = vmatprep.subr.mxu0 0.0
    %2417 = vmatpush1.msra.mxu0 0.0
    %2418 = vmatprep.subr.mxu0 0.0
    %2419 = vmatpush1.msra.mxu0 0.0
    %2420 = vmatprep.subr.mxu0 0.0
    %2421 = vmatpush1.msra.mxu0 0.0
    %2422 = vmatprep.subr.mxu0 0.0
    %2423 = vmatpush1.msra.mxu0 0.0
    %2424 = vmatprep.subr.mxu0 0.0
    %2425 = vmatpush1.msra.mxu0 0.0
    %2426 = vmatprep.subr.mxu0 0.0
    %2427 = vmatpush1.msra.mxu0 0.0
    %2428 = vmatprep.subr.mxu0 0.0
    %2429 = vmatpush1.msra.mxu0 0.0
    %2430 = vmatprep.subr.mxu0 0.0
    %2431 = vmatpush1.msra.mxu0 0.0
    %2432 = vmatprep.subr.mxu0 0.0
    %2433 = vmatpush1.msra.mxu0 0.0
    %2434 = vmatprep.subr.mxu0 0.0
    %2435 = vmatpush1.msra.mxu0 0.0
    %2436 = vmatprep.subr.mxu0 0.0
    %2437 = vmatpush1.msra.mxu0 0.0
    %2438 = vmatprep.subr.mxu0 0.0
    %2439 = vmatpush1.msra.mxu0 0.0
    %2440 = vmatprep.subr.mxu0 0.0
    %2441 = vmatpush1.msra.mxu0 0.0
    %2442 = vmatprep.subr.mxu0 0.0
    %2443 = vmatpush1.msra.mxu0 0.0
    %2444 = vmatprep.subr.mxu0 0.0
    %2445 = vmatpush1.msra.mxu0 0.0
    %2446 = vmatprep.subr.mxu0 0.0
    %2447 = vmatpush1.msra.mxu0 0.0
    %2448 = vmatprep.subr.mxu0 0.0
    %2449 = vmatpush1.msra.mxu0 0.0
    %2450 = vmatprep.mubr.f32.mxu0 0.0
    %v2451 = vand.u32 %v1713, 4294901760
    %2452 = vmatmul.mubr.f32.gmra.mrb[0].mxu0 %v2451
    %v2453 = vpop.f32.mrb[0].mxu0
    %v2454 = vadd.f32 %v2292, %v2453
    %v2455 = vpop.f32.mrb[0].mxu0
    %2456 = vmatprep.mubr.f32.mxu0 0.0
    %v2457 = vand.u32 %v1716, 4294901760
    %2458 = vmatmul.mubr.f32.gmra.mrb[0].mxu0 %v2457
    %v2459 = vpop.f32.mrb[0].mxu0
    %v2460 = vadd.f32 %v2300, %v2459
    %v2461 = vpop.f32.mrb[0].mxu0
    %2462 = vmatprep.mubr.f32.mxu0 0.0
    %v2463 = vand.u32 %v1719, 4294901760
    %2464 = vmatmul.mubr.f32.gmra.mrb[0].mxu0 %v2463
    %v2465 = vpop.f32.mrb[0].mxu0
    %v2466 = vadd.f32 %v2308, %v2465
    %v2467 = vpop.f32.mrb[0].mxu0
    %2468 = vmatprep.mubr.f32.mxu0 0.0
    %v2469 = vand.u32 %v1722, 4294901760
    %2470 = vmatmul.mubr.f32.gmra.mrb[0].mxu0 %v2469
    %v2471 = vpop.f32.mrb[0].mxu0
    %v2472 = vadd.f32 %v2316, %v2471
    %v2473 = vpop.f32.mrb[0].mxu0
    %2474 = vmatprep.mubr.f32.mxu0 0.0
    %v2475 = vand.u32 %v1725, 4294901760
    %2476 = vmatmul.mubr.f32.gmra.mrb[0].mxu0 %v2475
    %v2477 = vpop.f32.mrb[0].mxu0
    %v2478 = vadd.f32 %v2324, %v2477
    %v2479 = vpop.f32.mrb[0].mxu0
    %2480 = vmatprep.mubr.f32.mxu0 0.0
    %v2481 = vand.u32 %v1728, 4294901760
    %2482 = vmatmul.mubr.f32.gmra.mrb[0].mxu0 %v2481
    %v2483 = vpop.f32.mrb[0].mxu0
    %v2484 = vadd.f32 %v2332, %v2483
    %v2485 = vpop.f32.mrb[0].mxu0
    %2486 = vmatprep.mubr.f32.mxu0 0.0
    %v2487 = vand.u32 %v1731, 4294901760
    %2488 = vmatmul.mubr.f32.gmra.mrb[0].mxu0 %v2487
    %v2489 = vpop.f32.mrb[0].mxu0
    %v2490 = vadd.f32 %v2340, %v2489
    %v2491 = vpop.f32.mrb[0].mxu0
    %2492 = vmatprep.mubr.f32.mxu0 0.0
    %v2493 = vand.u32 %v1734, 4294901760
    %2494 = vmatmul.mubr.f32.gmra.mrb[0].mxu0 %v2493
    %v2495 = vpop.f32.mrb[0].mxu0
    %v2496 = vadd.f32 %v2348, %v2495
    %v2497 = vpop.f32.mrb[0].mxu0
    %2498 = vmatprep.mubr.f32.mxu0 0.0
    %v2499 = vand.u32 %v1737, 4294901760
    %2500 = vmatmul.mubr.f32.gmra.mrb[0].mxu0 %v2499
    %v2501 = vpop.f32.mrb[0].mxu0
    %v2502 = vadd.f32 %v2356, %v2501
    %v2503 = vpop.f32.mrb[0].mxu0
    %2504 = vdwg.mxu0
    %2505 = vmatprep.subr.mxu0 0.0
    %v2506 = vand.u32 %v1686, 4294901760
    %2507 = vmatpush1.msra.mxu0 %v2506
    %2508 = vmatprep.subr.mxu0 0.0
    %v2509 = vand.u32 %v1688, 4294901760
    %2510 = vmatpush1.msra.mxu0 %v2509
    %2511 = vmatprep.subr.mxu0 0.0
    %v2512 = vand.u32 %v1690, 4294901760
    %2513 = vmatpush1.msra.mxu0 %v2512
    %2514 = vmatprep.subr.mxu0 0.0
    %v2515 = vand.u32 %v1692, 4294901760
    %2516 = vmatpush1.msra.mxu0 %v2515
    %2517 = vmatprep.subr.mxu0 0.0
    %v2518 = vand.u32 %v1694, 4294901760
    %2519 = vmatpush1.msra.mxu0 %v2518
    %2520 = vmatprep.subr.mxu0 0.0
    %v2521 = vand.u32 %v1696, 4294901760
    %2522 = vmatpush1.msra.mxu0 %v2521
    %2523 = vmatprep.subr.mxu0 0.0
    %v2524 = vand.u32 %v1698, 4294901760
    %2525 = vmatpush1.msra.mxu0 %v2524
    %2526 = vmatprep.subr.mxu0 0.0
    %v2527 = vand.u32 %v1700, 4294901760
    %2528 = vmatpush1.msra.mxu0 %v2527
    %2529 = vmatprep.subr.mxu0 0.0
    %v2530 = vand.u32 %v1702, 4294901760
    %2531 = vmatpush1.msra.mxu0 %v2530
    %2532 = vmatprep.subr.mxu0 0.0
    %2533 = vmatpush1.msra.mxu0 0.0
    %2534 = vmatprep.subr.mxu0 0.0
    %2535 = vmatpush1.msra.mxu0 0.0
    %2536 = vmatprep.subr.mxu0 0.0
    %2537 = vmatpush1.msra.mxu0 0.0
    %2538 = vmatprep.subr.mxu0 0.0
    %2539 = vmatpush1.msra.mxu0 0.0
    %2540 = vmatprep.subr.mxu0 0.0
    %2541 = vmatpush1.msra.mxu0 0.0
    %2542 = vmatprep.subr.mxu0 0.0
    %2543 = vmatpush1.msra.mxu0 0.0
    %2544 = vmatprep.subr.mxu0 0.0
    %2545 = vmatpush1.msra.mxu0 0.0
    %2546 = vmatprep.subr.mxu0 0.0
    %2547 = vmatpush1.msra.mxu0 0.0
    %2548 = vmatprep.subr.mxu0 0.0
    %2549 = vmatpush1.msra.mxu0 0.0
    %2550 = vmatprep.subr.mxu0 0.0
    %2551 = vmatpush1.msra.mxu0 0.0
    %2552 = vmatprep.subr.mxu0 0.0
    %2553 = vmatpush1.msra.mxu0 0.0
    %2554 = vmatprep.subr.mxu0 0.0
    %2555 = vmatpush1.msra.mxu0 0.0
    %2556 = vmatprep.subr.mxu0 0.0
    %2557 = vmatpush1.msra.mxu0 0.0
    %2558 = vmatprep.subr.mxu0 0.0
    %2559 = vmatpush1.msra.mxu0 0.0
    %2560 = vmatprep.subr.mxu0 0.0
    %2561 = vmatpush1.msra.mxu0 0.0
    %2562 = vmatprep.subr.mxu0 0.0
    %2563 = vmatpush1.msra.mxu0 0.0
    %2564 = vmatprep.subr.mxu0 0.0
    %2565 = vmatpush1.msra.mxu0 0.0
    %2566 = vmatprep.subr.mxu0 0.0
    %2567 = vmatpush1.msra.mxu0 0.0
    %2568 = vmatprep.subr.mxu0 0.0
    %2569 = vmatpush1.msra.mxu0 0.0
    %2570 = vmatprep.subr.mxu0 0.0
    %2571 = vmatpush1.msra.mxu0 0.0
    %2572 = vmatprep.subr.mxu0 0.0
    %2573 = vmatpush1.msra.mxu0 0.0
    %2574 = vmatprep.subr.mxu0 0.0
    %2575 = vmatpush1.msra.mxu0 0.0
    %2576 = vmatprep.subr.mxu0 0.0
    %2577 = vmatpush1.msra.mxu0 0.0
    %2578 = vmatprep.mubr.f32.mxu0 0.0
    %v2579 = vand.u32 %v1713, 4294901760
    %2580 = vmatmul.mubr.f32.gmra.mrb[0].mxu0 %v2579
    %v2581 = vpop.f32.mrb[0].mxu0
    %v2582 = vadd.f32 %v2454, %v2581
    %v2583 = vpop.f32.mrb[0].mxu0
    %2584 = vmatprep.mubr.f32.mxu0 0.0
    %v2585 = vand.u32 %v1716, 4294901760
    %2586 = vmatmul.mubr.f32.gmra.mrb[0].mxu0 %v2585
    %v2587 = vpop.f32.mrb[0].mxu0
    %v2588 = vadd.f32 %v2460, %v2587
    %v2589 = vpop.f32.mrb[0].mxu0
    %2590 = vmatprep.mubr.f32.mxu0 0.0
    %v2591 = vand.u32 %v1719, 4294901760
    %2592 = vmatmul.mubr.f32.gmra.mrb[0].mxu0 %v2591
    %v2593 = vpop.f32.mrb[0].mxu0
    %v2594 = vadd.f32 %v2466, %v2593
    %v2595 = vpop.f32.mrb[0].mxu0
    %2596 = vmatprep.mubr.f32.mxu0 0.0
    %v2597 = vand.u32 %v1722, 4294901760
    %2598 = vmatmul.mubr.f32.gmra.mrb[0].mxu0 %v2597
    %v2599 = vpop.f32.mrb[0].mxu0
    %v2600 = vadd.f32 %v2472, %v2599
    %v2601 = vpop.f32.mrb[0].mxu0
    %2602 = vmatprep.mubr.f32.mxu0 0.0
    %v2603 = vand.u32 %v1725, 4294901760
    %2604 = vmatmul.mubr.f32.gmra.mrb[0].mxu0 %v2603
    %v2605 = vpop.f32.mrb[0].mxu0
    %v2606 = vadd.f32 %v2478, %v2605
    %v2607 = vpop.f32.mrb[0].mxu0
    %2608 = vmatprep.mubr.f32.mxu0 0.0
    %v2609 = vand.u32 %v1728, 4294901760
    %2610 = vmatmul.mubr.f32.gmra.mrb[0].mxu0 %v2609
    %v2611 = vpop.f32.mrb[0].mxu0
    %v2612 = vadd.f32 %v2484, %v2611
    %v2613 = vpop.f32.mrb[0].mxu0
    %2614 = vmatprep.mubr.f32.mxu0 0.0
    %v2615 = vand.u32 %v1731, 4294901760
    %2616 = vmatmul.mubr.f32.gmra.mrb[0].mxu0 %v2615
    %v2617 = vpop.f32.mrb[0].mxu0
    %v2618 = vadd.f32 %v2490, %v2617
    %v2619 = vpop.f32.mrb[0].mxu0
    %2620 = vmatprep.mubr.f32.mxu0 0.0
    %v2621 = vand.u32 %v1734, 4294901760
    %2622 = vmatmul.mubr.f32.gmra.mrb[0].mxu0 %v2621
    %v2623 = vpop.f32.mrb[0].mxu0
    %v2624 = vadd.f32 %v2496, %v2623
    %v2625 = vpop.f32.mrb[0].mxu0
    %2626 = vmatprep.mubr.f32.mxu0 0.0
    %v2627 = vand.u32 %v1737, 4294901760
    %2628 = vmatmul.mubr.f32.gmra.mrb[0].mxu0 %v2627
    %v2629 = vpop.f32.mrb[0].mxu0
    %v2630 = vadd.f32 %v2502, %v2629
    %v2631 = vpop.f32.mrb[0].mxu0
    %2632 = vdwg.mxu0
    %v2633 = vlaneseq
    %v2634 = vand.u32 %v2633, 127
    %vm2635 = vcmp.eq.s32.totalorder %v2634, 0
    %v2636 = vsel %vm2635, 1, 0
    %v2637 = vcvt.s32.f32 %v2636
    %2639 = vset.pattern.permute.xlu0 4
    %2640 = vperm.xlu0 %2639, %v2606
    %v2641 = vpop.permute.xlu0 %2640
    %2644 = vset.pattern.permute.xlu0 4
    %2645 = vperm.xlu0 %2644, %v2612
    %v2646 = vpop.permute.xlu0 %2645
    %2649 = vset.pattern.permute.xlu0 4
    %2650 = vperm.xlu0 %2649, %v2618
    %v2651 = vpop.permute.xlu0 %2650
    %2654 = vset.pattern.permute.xlu0 4
    %2655 = vperm.xlu0 %2654, %v2624
    %v2656 = vpop.permute.xlu0 %2655
    %v2658 = vmul.f32 %v2641, %v2637
    %v2659 = vmul.f32 %v2646, %v2637
    %v2660 = vmul.f32 %v2651, %v2637
    %v2661 = vmul.f32 %v2656, %v2637
    %v2662 = vadd.f32 %v2658, 0.0
    %v2663 = vadd.f32 %v2659, 0.0
    %v2664 = vadd.f32 %v2660, 0.0
    %v2665 = vadd.f32 %v2661, 0.0
    %2669 = vrot.lane.b32.xlu0 %v2582, 127
    %v2670 = vpop.permute.xlu0 %2669
    %2671 = vrot.lane.b32.xlu0 %v2588, 127
    %v2672 = vpop.permute.xlu0 %2671
    %2673 = vrot.lane.b32.xlu0 %v2594, 127
    %v2674 = vpop.permute.xlu0 %2673
    %vm2675 = vcmp.eq.s32.totalorder %v2634, 1
    %v2676 = vsel %vm2675, 1, 0
    %v2677 = vcvt.s32.f32 %v2676
    %2679 = vset.pattern.permute.xlu0 4
    %2680 = vperm.xlu0 %2679, %v2630
    %v2681 = vpop.permute.xlu0 %2680
    %2683 = vset.pattern.permute.xlu0 4
    %2684 = vperm.xlu0 %2683, %v2670
    %v2685 = vpop.permute.xlu0 %2684
    %2687 = vset.pattern.permute.xlu0 4
    %2688 = vperm.xlu0 %2687, %v2672
    %v2689 = vpop.permute.xlu0 %2688
    %2691 = vset.pattern.permute.xlu0 4
    %2692 = vperm.xlu0 %2691, %v2674
    %v2693 = vpop.permute.xlu0 %2692
    %v2695 = vmul.f32 %v2681, %v2677
    %v2696 = vmul.f32 %v2685, %v2677
    %v2697 = vmul.f32 %v2689, %v2677
    %v2698 = vmul.f32 %v2693, %v2677
    %v2699 = vadd.f32 %v2662, %v2695
    %v2700 = vadd.f32 %v2663, %v2696
    %v2701 = vadd.f32 %v2664, %v2697
    %v2702 = vadd.f32 %v2665, %v2698
    %vm2703 = vcmp.eq.s32.totalorder %v2634, 2
    %v2704 = vsel %vm2703, 1, 0
    %v2705 = vcvt.s32.f32 %v2704
    %2707 = vset.pattern.permute.xlu0 5
    %2708 = vperm.xlu0 %2707, %v2600
    %v2709 = vpop.permute.xlu0 %2708
    %2711 = vset.pattern.permute.xlu0 5
    %2712 = vperm.xlu0 %2711, %v2606
    %v2713 = vpop.permute.xlu0 %2712
    %2715 = vset.pattern.permute.xlu0 5
    %2716 = vperm.xlu0 %2715, %v2612
    %v2717 = vpop.permute.xlu0 %2716
    %2719 = vset.pattern.permute.xlu0 5
    %2720 = vperm.xlu0 %2719, %v2618
    %v2721 = vpop.permute.xlu0 %2720
    %v2723 = vmul.f32 %v2709, %v2705
    %v2724 = vmul.f32 %v2713, %v2705
    %v2725 = vmul.f32 %v2717, %v2705
    %v2726 = vmul.f32 %v2721, %v2705
    %v2727 = vadd.f32 %v2699, %v2723
    %v2728 = vadd.f32 %v2700, %v2724
    %v2729 = vadd.f32 %v2701, %v2725
    %v2730 = vadd.f32 %v2702, %v2726
    %vm2731 = vcmp.eq.s32.totalorder %v2634, 3
    %v2732 = vsel %vm2731, 1, 0
    %v2733 = vcvt.s32.f32 %v2732
    %2734 = vset.pattern.permute.xlu0 5
    %2735 = vperm.xlu0 %2734, %v2624
    %v2736 = vpop.permute.xlu0 %2735
    %2738 = vset.pattern.permute.xlu0 5
    %2739 = vperm.xlu0 %2738, %v2630
    %v2740 = vpop.permute.xlu0 %2739
    %2742 = vset.pattern.permute.xlu0 5
    %2743 = vperm.xlu0 %2742, %v2670
    %v2744 = vpop.permute.xlu0 %2743
    %2746 = vset.pattern.permute.xlu0 5
    %2747 = vperm.xlu0 %2746, %v2672
    %v2748 = vpop.permute.xlu0 %2747
    %v2750 = vmul.f32 %v2736, %v2733
    %v2751 = vmul.f32 %v2740, %v2733
    %v2752 = vmul.f32 %v2744, %v2733
    %v2753 = vmul.f32 %v2748, %v2733
    %v2754 = vadd.f32 %v2727, %v2750
    %v2755 = vadd.f32 %v2728, %v2751
    %v2756 = vadd.f32 %v2729, %v2752
    %v2757 = vadd.f32 %v2730, %v2753
    %vm2758 = vcmp.eq.s32.totalorder %v2634, 4
    %v2759 = vsel %vm2758, 1, 0
    %v2760 = vcvt.s32.f32 %v2759
    %2761 = vset.pattern.permute.xlu0 6
    %2762 = vperm.xlu0 %2761, %v2594
    %v2763 = vpop.permute.xlu0 %2762
    %2765 = vset.pattern.permute.xlu0 6
    %2766 = vperm.xlu0 %2765, %v2600
    %v2767 = vpop.permute.xlu0 %2766
    %2769 = vset.pattern.permute.xlu0 6
    %2770 = vperm.xlu0 %2769, %v2606
    %v2771 = vpop.permute.xlu0 %2770
    %2773 = vset.pattern.permute.xlu0 6
    %2774 = vperm.xlu0 %2773, %v2612
    %v2775 = vpop.permute.xlu0 %2774
    %v2777 = vmul.f32 %v2763, %v2760
    %v2778 = vmul.f32 %v2767, %v2760
    %v2779 = vmul.f32 %v2771, %v2760
    %v2780 = vmul.f32 %v2775, %v2760
    %v2781 = vadd.f32 %v2754, %v2777
    %v2782 = vadd.f32 %v2755, %v2778
    %v2783 = vadd.f32 %v2756, %v2779
    %v2784 = vadd.f32 %v2757, %v2780
    %vm2785 = vcmp.eq.s32.totalorder %v2634, 5
    %v2786 = vsel %vm2785, 1, 0
    %v2787 = vcvt.s32.f32 %v2786
    %2788 = vset.pattern.permute.xlu0 6
    %2789 = vperm.xlu0 %2788, %v2618
    %v2790 = vpop.permute.xlu0 %2789
    %2792 = vset.pattern.permute.xlu0 6
    %2793 = vperm.xlu0 %2792, %v2624
    %v2794 = vpop.permute.xlu0 %2793
    %2796 = vset.pattern.permute.xlu0 6
    %2797 = vperm.xlu0 %2796, %v2630
    %v2798 = vpop.permute.xlu0 %2797
    %2800 = vset.pattern.permute.xlu0 6
    %2801 = vperm.xlu0 %2800, %v2670
    %v2802 = vpop.permute.xlu0 %2801
    %v2804 = vmul.f32 %v2790, %v2787
    %v2805 = vmul.f32 %v2794, %v2787
    %v2806 = vmul.f32 %v2798, %v2787
    %v2807 = vmul.f32 %v2802, %v2787
    %v2808 = vadd.f32 %v2781, %v2804
    %v2809 = vadd.f32 %v2782, %v2805
    %v2810 = vadd.f32 %v2783, %v2806
    %v2811 = vadd.f32 %v2784, %v2807
    %vm2812 = vcmp.eq.s32.totalorder %v2634, 6
    %v2813 = vsel %vm2812, 1, 0
    %v2814 = vcvt.s32.f32 %v2813
    %2815 = vset.pattern.permute.xlu0 7
    %2816 = vperm.xlu0 %2815, %v2588
    %v2817 = vpop.permute.xlu0 %2816
    %2819 = vset.pattern.permute.xlu0 7
    %2820 = vperm.xlu0 %2819, %v2594
    %v2821 = vpop.permute.xlu0 %2820
    %2823 = vset.pattern.permute.xlu0 7
    %2824 = vperm.xlu0 %2823, %v2600
    %v2825 = vpop.permute.xlu0 %2824
    %2827 = vset.pattern.permute.xlu0 7
    %2828 = vperm.xlu0 %2827, %v2606
    %v2829 = vpop.permute.xlu0 %2828
    %v2831 = vmul.f32 %v2817, %v2814
    %v2832 = vmul.f32 %v2821, %v2814
    %v2833 = vmul.f32 %v2825, %v2814
    %v2834 = vmul.f32 %v2829, %v2814
    %v2835 = vadd.f32 %v2808, %v2831
    %v2836 = vadd.f32 %v2809, %v2832
    %v2837 = vadd.f32 %v2810, %v2833
    %v2838 = vadd.f32 %v2811, %v2834
    %vm2839 = vcmp.eq.s32.totalorder %v2634, 7
    %v2840 = vsel %vm2839, 1, 0
    %v2841 = vcvt.s32.f32 %v2840
    %2842 = vset.pattern.permute.xlu0 7
    %2843 = vperm.xlu0 %2842, %v2612
    %v2844 = vpop.permute.xlu0 %2843
    %2846 = vset.pattern.permute.xlu0 7
    %2847 = vperm.xlu0 %2846, %v2618
    %v2848 = vpop.permute.xlu0 %2847
    %2850 = vset.pattern.permute.xlu0 7
    %2851 = vperm.xlu0 %2850, %v2624
    %v2852 = vpop.permute.xlu0 %2851
    %2854 = vset.pattern.permute.xlu0 7
    %2855 = vperm.xlu0 %2854, %v2630
    %v2856 = vpop.permute.xlu0 %2855
    %v2858 = vmul.f32 %v2844, %v2841
    %v2859 = vmul.f32 %v2848, %v2841
    %v2860 = vmul.f32 %v2852, %v2841
    %v2861 = vmul.f32 %v2856, %v2841
    %v2862 = vadd.f32 %v2835, %v2858
    %v2863 = vadd.f32 %v2836, %v2859
    %v2864 = vadd.f32 %v2837, %v2860
    %v2865 = vadd.f32 %v2838, %v2861
    %2866 = vxpose.xlu0.b32.start [1/16] %v2862, 128
    %2867 = vxpose.xlu0.b32.cont [2/16] %v2863, 128
    %2868 = vxpose.xlu0.b32.cont [3/16] %v2864, 128
    %2869 = vxpose.xlu0.b32.cont [4/16] %v2865, 128
    %2870 = vxpose.xlu0.b32.cont [5/16] 0.0, 128
    %2871 = vxpose.xlu0.b32.cont [6/16] 0.0, 128
    %2872 = vxpose.xlu0.b32.cont [7/16] 0.0, 128
    %2873 = vxpose.xlu0.b32.cont [8/16] 0.0, 128
    %2874 = vxpose.xlu0.b32.cont [9/16] 0.0, 128
    %2875 = vxpose.xlu0.b32.cont [10/16] 0.0, 128
    %2876 = vxpose.xlu0.b32.cont [11/16] 0.0, 128
    %2877 = vxpose.xlu0.b32.cont [12/16] 0.0, 128
    %2878 = vxpose.xlu0.b32.cont [13/16] 0.0, 128
    %2879 = vxpose.xlu0.b32.cont [14/16] 0.0, 128
    %2880 = vxpose.xlu0.b32.cont [15/16] 0.0, 128
    %2881 = vxpose.xlu0.b32.end [16/16] 0.0, 128
    %v2882 = vpop.trf.xlu0
    %v2883 = vpop.trf.xlu0
    %v2884 = vpop.trf.xlu0
    %v2885 = vpop.trf.xlu0
    %v2886 = vpop.trf.xlu0
    %v2887 = vpop.trf.xlu0
    %v2888 = vpop.trf.xlu0
    %v2889 = vpop.trf.xlu0
    %v2890 = vpop.trf.xlu0
    %v2891 = vpop.trf.xlu0
    %v2892 = vpop.trf.xlu0
    %v2893 = vpop.trf.xlu0
    %v2894 = vpop.trf.xlu0
    %v2895 = vpop.trf.xlu0
    %v2896 = vpop.trf.xlu0
    %v2897 = vpop.trf.xlu0
    %2902 = vrot.lane.b32.xlu0 %v25, 32
    %v2903 = vpop.permute.xlu0 %2902
    %2904 = vrot.lane.b32.xlu0 %v28, 32
    %v2905 = vpop.permute.xlu0 %2904
    %2906 = vrot.lane.b32.xlu0 %v31, 32
    %v2907 = vpop.permute.xlu0 %2906
    %2908 = vrot.lane.b32.xlu0 %v34, 32
    %v2909 = vpop.permute.xlu0 %2908
    %2915 = vrot.lane.b32.xlu0 %v66, 32
    %v2916 = vpop.permute.xlu0 %2915
    %v2919 = vsel %vm38, %v2882, 0
    %2921 = vmatprep.subr.mxu0 0.0
    %v2922 = vand.u32 %v2903, 4294901760
    %2923 = vmatpush1.msra.mxu0 %v2922
    %2924 = vmatprep.subr.mxu0 0.0
    %v2925 = vand.u32 %v2905, 4294901760
    %2926 = vmatpush1.msra.mxu0 %v2925
    %2927 = vmatprep.subr.mxu0 0.0
    %v2928 = vand.u32 %v2907, 4294901760
    %2929 = vmatpush1.msra.mxu0 %v2928
    %2930 = vmatprep.subr.mxu0 0.0
    %v2931 = vand.u32 %v2909, 4294901760
    %2932 = vmatpush1.msra.mxu0 %v2931
    %2933 = vmatprep.subr.mxu0 0.0
    %2934 = vmatpush1.msra.mxu0 0.0
    %2935 = vmatprep.subr.mxu0 0.0
    %2936 = vmatpush1.msra.mxu0 0.0
    %2937 = vmatprep.subr.mxu0 0.0
    %2938 = vmatpush1.msra.mxu0 0.0
    %2939 = vmatprep.subr.mxu0 0.0
    %2940 = vmatpush1.msra.mxu0 0.0
    %2941 = vmatprep.subr.mxu0 0.0
    %2942 = vmatpush1.msra.mxu0 0.0
    %2943 = vmatprep.subr.mxu0 0.0
    %2944 = vmatpush1.msra.mxu0 0.0
    %2945 = vmatprep.subr.mxu0 0.0
    %2946 = vmatpush1.msra.mxu0 0.0
    %2947 = vmatprep.subr.mxu0 0.0
    %2948 = vmatpush1.msra.mxu0 0.0
    %2949 = vmatprep.subr.mxu0 0.0
    %2950 = vmatpush1.msra.mxu0 0.0
    %2951 = vmatprep.subr.mxu0 0.0
    %2952 = vmatpush1.msra.mxu0 0.0
    %2953 = vmatprep.subr.mxu0 0.0
    %2954 = vmatpush1.msra.mxu0 0.0
    %2955 = vmatprep.subr.mxu0 0.0
    %2956 = vmatpush1.msra.mxu0 0.0
    %2957 = vmatprep.subr.mxu0 0.0
    %2958 = vmatpush1.msra.mxu0 0.0
    %2959 = vmatprep.subr.mxu0 0.0
    %2960 = vmatpush1.msra.mxu0 0.0
    %2961 = vmatprep.subr.mxu0 0.0
    %2962 = vmatpush1.msra.mxu0 0.0
    %2963 = vmatprep.subr.mxu0 0.0
    %2964 = vmatpush1.msra.mxu0 0.0
    %2965 = vmatprep.subr.mxu0 0.0
    %2966 = vmatpush1.msra.mxu0 0.0
    %2967 = vmatprep.subr.mxu0 0.0
    %2968 = vmatpush1.msra.mxu0 0.0
    %2969 = vmatprep.subr.mxu0 0.0
    %2970 = vmatpush1.msra.mxu0 0.0
    %2971 = vmatprep.subr.mxu0 0.0
    %2972 = vmatpush1.msra.mxu0 0.0
    %2973 = vmatprep.subr.mxu0 0.0
    %2974 = vmatpush1.msra.mxu0 0.0
    %2975 = vmatprep.subr.mxu0 0.0
    %2976 = vmatpush1.msra.mxu0 0.0
    %2977 = vmatprep.subr.mxu0 0.0
    %2978 = vmatpush1.msra.mxu0 0.0
    %2979 = vmatprep.subr.mxu0 0.0
    %2980 = vmatpush1.msra.mxu0 0.0
    %2981 = vmatprep.subr.mxu0 0.0
    %2982 = vmatpush1.msra.mxu0 0.0
    %2983 = vmatprep.subr.mxu0 0.0
    %2984 = vmatpush1.msra.mxu0 0.0
    %2985 = vmatprep.subr.mxu0 0.0
    %2986 = vmatpush1.msra.mxu0 0.0
    %2987 = vmatprep.subr.mxu0 0.0
    %2988 = vmatpush1.msra.mxu0 0.0
    %2989 = vmatprep.mubr.f32.mxu0 0.0
    %v2990 = vand.u32 %v2919, 4294901760
    %v2991 = vsub.f32 %v2919, %v2990
    %v2992 = vand.u32 %v2991, 4294901760
    %v2993 = vsub.f32 %v2991, %v2992
    %v2994 = vand.u32 %v2993, 4294901760
    %2995 = vmatmul.mubr.f32.gmra.mrb[0].mxu0 %v2994
    %v2996 = vpop.f32.mrb[0].mxu0
    %v2997 = vadd.f32 %v2916, %v2996
    %v2998 = vpop.f32.mrb[0].mxu0
    %2999 = vdwg.mxu0
    %3000 = vmatprep.subr.mxu0 0.0
    %v3001 = vand.u32 %v2903, 4294901760
    %v3002 = vsub.f32 %v2903, %v3001
    %v3003 = vand.u32 %v3002, 4294901760
    %v3004 = vsub.f32 %v3002, %v3003
    %v3005 = vand.u32 %v3004, 4294901760
    %3006 = vmatpush1.msra.mxu0 %v3005
    %3007 = vmatprep.subr.mxu0 0.0
    %v3008 = vand.u32 %v2905, 4294901760
    %v3009 = vsub.f32 %v2905, %v3008
    %v3010 = vand.u32 %v3009, 4294901760
    %v3011 = vsub.f32 %v3009, %v3010
    %v3012 = vand.u32 %v3011, 4294901760
    %3013 = vmatpush1.msra.mxu0 %v3012
    %3014 = vmatprep.subr.mxu0 0.0
    %v3015 = vand.u32 %v2907, 4294901760
    %v3016 = vsub.f32 %v2907, %v3015
    %v3017 = vand.u32 %v3016, 4294901760
    %v3018 = vsub.f32 %v3016, %v3017
    %v3019 = vand.u32 %v3018, 4294901760
    %3020 = vmatpush1.msra.mxu0 %v3019
    %3021 = vmatprep.subr.mxu0 0.0
    %v3022 = vand.u32 %v2909, 4294901760
    %v3023 = vsub.f32 %v2909, %v3022
    %v3024 = vand.u32 %v3023, 4294901760
    %v3025 = vsub.f32 %v3023, %v3024
    %v3026 = vand.u32 %v3025, 4294901760
    %3027 = vmatpush1.msra.mxu0 %v3026
    %3028 = vmatprep.subr.mxu0 0.0
    %3029 = vmatpush1.msra.mxu0 0.0
    %3030 = vmatprep.subr.mxu0 0.0
    %3031 = vmatpush1.msra.mxu0 0.0
    %3032 = vmatprep.subr.mxu0 0.0
    %3033 = vmatpush1.msra.mxu0 0.0
    %3034 = vmatprep.subr.mxu0 0.0
    %3035 = vmatpush1.msra.mxu0 0.0
    %3036 = vmatprep.subr.mxu0 0.0
    %3037 = vmatpush1.msra.mxu0 0.0
    %3038 = vmatprep.subr.mxu0 0.0
    %3039 = vmatpush1.msra.mxu0 0.0
    %3040 = vmatprep.subr.mxu0 0.0
    %3041 = vmatpush1.msra.mxu0 0.0
    %3042 = vmatprep.subr.mxu0 0.0
    %3043 = vmatpush1.msra.mxu0 0.0
    %3044 = vmatprep.subr.mxu0 0.0
    %3045 = vmatpush1.msra.mxu0 0.0
    %3046 = vmatprep.subr.mxu0 0.0
    %3047 = vmatpush1.msra.mxu0 0.0
    %3048 = vmatprep.subr.mxu0 0.0
    %3049 = vmatpush1.msra.mxu0 0.0
    %3050 = vmatprep.subr.mxu0 0.0
    %3051 = vmatpush1.msra.mxu0 0.0
    %3052 = vmatprep.subr.mxu0 0.0
    %3053 = vmatpush1.msra.mxu0 0.0
    %3054 = vmatprep.subr.mxu0 0.0
    %3055 = vmatpush1.msra.mxu0 0.0
    %3056 = vmatprep.subr.mxu0 0.0
    %3057 = vmatpush1.msra.mxu0 0.0
    %3058 = vmatprep.subr.mxu0 0.0
    %3059 = vmatpush1.msra.mxu0 0.0
    %3060 = vmatprep.subr.mxu0 0.0
    %3061 = vmatpush1.msra.mxu0 0.0
    %3062 = vmatprep.subr.mxu0 0.0
    %3063 = vmatpush1.msra.mxu0 0.0
    %3064 = vmatprep.subr.mxu0 0.0
    %3065 = vmatpush1.msra.mxu0 0.0
    %3066 = vmatprep.subr.mxu0 0.0
    %3067 = vmatpush1.msra.mxu0 0.0
    %3068 = vmatprep.subr.mxu0 0.0
    %3069 = vmatpush1.msra.mxu0 0.0
    %3070 = vmatprep.subr.mxu0 0.0
    %3071 = vmatpush1.msra.mxu0 0.0
    %3072 = vmatprep.subr.mxu0 0.0
    %3073 = vmatpush1.msra.mxu0 0.0
    %3074 = vmatprep.subr.mxu0 0.0
    %3075 = vmatpush1.msra.mxu0 0.0
    %3076 = vmatprep.subr.mxu0 0.0
    %3077 = vmatpush1.msra.mxu0 0.0
    %3078 = vmatprep.subr.mxu0 0.0
    %3079 = vmatpush1.msra.mxu0 0.0
    %3080 = vmatprep.subr.mxu0 0.0
    %3081 = vmatpush1.msra.mxu0 0.0
    %3082 = vmatprep.subr.mxu0 0.0
    %3083 = vmatpush1.msra.mxu0 0.0
    %3084 = vmatprep.mubr.f32.mxu0 0.0
    %v3085 = vand.u32 %v2919, 4294901760
    %3086 = vmatmul.mubr.f32.gmra.mrb[0].mxu0 %v3085
    %v3087 = vpop.f32.mrb[0].mxu0
    %v3088 = vadd.f32 %v2997, %v3087
    %v3089 = vpop.f32.mrb[0].mxu0
    %3090 = vdwg.mxu0
    %3091 = vmatprep.subr.mxu0 0.0
    %v3092 = vand.u32 %v2903, 4294901760
    %v3093 = vsub.f32 %v2903, %v3092
    %3094 = vmatpush1.msra.mxu0 %v3093
    %3095 = vmatprep.subr.mxu0 0.0
    %v3096 = vand.u32 %v2905, 4294901760
    %v3097 = vsub.f32 %v2905, %v3096
    %3098 = vmatpush1.msra.mxu0 %v3097
    %3099 = vmatprep.subr.mxu0 0.0
    %v3100 = vand.u32 %v2907, 4294901760
    %v3101 = vsub.f32 %v2907, %v3100
    %3102 = vmatpush1.msra.mxu0 %v3101
    %3103 = vmatprep.subr.mxu0 0.0
    %v3104 = vand.u32 %v2909, 4294901760
    %v3105 = vsub.f32 %v2909, %v3104
    %3106 = vmatpush1.msra.mxu0 %v3105
    %3107 = vmatprep.subr.mxu0 0.0
    %3108 = vmatpush1.msra.mxu0 0.0
    %3109 = vmatprep.subr.mxu0 0.0
    %3110 = vmatpush1.msra.mxu0 0.0
    %3111 = vmatprep.subr.mxu0 0.0
    %3112 = vmatpush1.msra.mxu0 0.0
    %3113 = vmatprep.subr.mxu0 0.0
    %3114 = vmatpush1.msra.mxu0 0.0
    %3115 = vmatprep.subr.mxu0 0.0
    %3116 = vmatpush1.msra.mxu0 0.0
    %3117 = vmatprep.subr.mxu0 0.0
    %3118 = vmatpush1.msra.mxu0 0.0
    %3119 = vmatprep.subr.mxu0 0.0
    %3120 = vmatpush1.msra.mxu0 0.0
    %3121 = vmatprep.subr.mxu0 0.0
    %3122 = vmatpush1.msra.mxu0 0.0
    %3123 = vmatprep.subr.mxu0 0.0
    %3124 = vmatpush1.msra.mxu0 0.0
    %3125 = vmatprep.subr.mxu0 0.0
    %3126 = vmatpush1.msra.mxu0 0.0
    %3127 = vmatprep.subr.mxu0 0.0
    %3128 = vmatpush1.msra.mxu0 0.0
    %3129 = vmatprep.subr.mxu0 0.0
    %3130 = vmatpush1.msra.mxu0 0.0
    %3131 = vmatprep.subr.mxu0 0.0
    %3132 = vmatpush1.msra.mxu0 0.0
    %3133 = vmatprep.subr.mxu0 0.0
    %3134 = vmatpush1.msra.mxu0 0.0
    %3135 = vmatprep.subr.mxu0 0.0
    %3136 = vmatpush1.msra.mxu0 0.0
    %3137 = vmatprep.subr.mxu0 0.0
    %3138 = vmatpush1.msra.mxu0 0.0
    %3139 = vmatprep.subr.mxu0 0.0
    %3140 = vmatpush1.msra.mxu0 0.0
    %3141 = vmatprep.subr.mxu0 0.0
    %3142 = vmatpush1.msra.mxu0 0.0
    %3143 = vmatprep.subr.mxu0 0.0
    %3144 = vmatpush1.msra.mxu0 0.0
    %3145 = vmatprep.subr.mxu0 0.0
    %3146 = vmatpush1.msra.mxu0 0.0
    %3147 = vmatprep.subr.mxu0 0.0
    %3148 = vmatpush1.msra.mxu0 0.0
    %3149 = vmatprep.subr.mxu0 0.0
    %3150 = vmatpush1.msra.mxu0 0.0
    %3151 = vmatprep.subr.mxu0 0.0
    %3152 = vmatpush1.msra.mxu0 0.0
    %3153 = vmatprep.subr.mxu0 0.0
    %3154 = vmatpush1.msra.mxu0 0.0
    %3155 = vmatprep.subr.mxu0 0.0
    %3156 = vmatpush1.msra.mxu0 0.0
    %3157 = vmatprep.subr.mxu0 0.0
    %3158 = vmatpush1.msra.mxu0 0.0
    %3159 = vmatprep.subr.mxu0 0.0
    %3160 = vmatpush1.msra.mxu0 0.0
    %3161 = vmatprep.subr.mxu0 0.0
    %3162 = vmatpush1.msra.mxu0 0.0
    %3163 = vmatprep.mubr.f32.mxu0 0.0
    %v3164 = vand.u32 %v2919, 4294901760
    %v3165 = vsub.f32 %v2919, %v3164
    %3166 = vmatmul.mubr.f32.gmra.mrb[0].mxu0 %v3165
    %v3167 = vpop.f32.mrb[0].mxu0
    %v3168 = vadd.f32 %v3088, %v3167
    %v3169 = vpop.f32.mrb[0].mxu0
    %3170 = vdwg.mxu0
    %3171 = vmatprep.subr.mxu0 0.0
    %v3172 = vand.u32 %v2903, 4294901760
    %3173 = vmatpush1.msra.mxu0 %v3172
    %3174 = vmatprep.subr.mxu0 0.0
    %v3175 = vand.u32 %v2905, 4294901760
    %3176 = vmatpush1.msra.mxu0 %v3175
    %3177 = vmatprep.subr.mxu0 0.0
    %v3178 = vand.u32 %v2907, 4294901760
    %3179 = vmatpush1.msra.mxu0 %v3178
    %3180 = vmatprep.subr.mxu0 0.0
    %v3181 = vand.u32 %v2909, 4294901760
    %3182 = vmatpush1.msra.mxu0 %v3181
    %3183 = vmatprep.subr.mxu0 0.0
    %3184 = vmatpush1.msra.mxu0 0.0
    %3185 = vmatprep.subr.mxu0 0.0
    %3186 = vmatpush1.msra.mxu0 0.0
    %3187 = vmatprep.subr.mxu0 0.0
    %3188 = vmatpush1.msra.mxu0 0.0
    %3189 = vmatprep.subr.mxu0 0.0
    %3190 = vmatpush1.msra.mxu0 0.0
    %3191 = vmatprep.subr.mxu0 0.0
    %3192 = vmatpush1.msra.mxu0 0.0
    %3193 = vmatprep.subr.mxu0 0.0
    %3194 = vmatpush1.msra.mxu0 0.0
    %3195 = vmatprep.subr.mxu0 0.0
    %3196 = vmatpush1.msra.mxu0 0.0
    %3197 = vmatprep.subr.mxu0 0.0
    %3198 = vmatpush1.msra.mxu0 0.0
    %3199 = vmatprep.subr.mxu0 0.0
    %3200 = vmatpush1.msra.mxu0 0.0
    %3201 = vmatprep.subr.mxu0 0.0
    %3202 = vmatpush1.msra.mxu0 0.0
    %3203 = vmatprep.subr.mxu0 0.0
    %3204 = vmatpush1.msra.mxu0 0.0
    %3205 = vmatprep.subr.mxu0 0.0
    %3206 = vmatpush1.msra.mxu0 0.0
    %3207 = vmatprep.subr.mxu0 0.0
    %3208 = vmatpush1.msra.mxu0 0.0
    %3209 = vmatprep.subr.mxu0 0.0
    %3210 = vmatpush1.msra.mxu0 0.0
    %3211 = vmatprep.subr.mxu0 0.0
    %3212 = vmatpush1.msra.mxu0 0.0
    %3213 = vmatprep.subr.mxu0 0.0
    %3214 = vmatpush1.msra.mxu0 0.0
    %3215 = vmatprep.subr.mxu0 0.0
    %3216 = vmatpush1.msra.mxu0 0.0
    %3217 = vmatprep.subr.mxu0 0.0
    %3218 = vmatpush1.msra.mxu0 0.0
    %3219 = vmatprep.subr.mxu0 0.0
    %3220 = vmatpush1.msra.mxu0 0.0
    %3221 = vmatprep.subr.mxu0 0.0
    %3222 = vmatpush1.msra.mxu0 0.0
    %3223 = vmatprep.subr.mxu0 0.0
    %3224 = vmatpush1.msra.mxu0 0.0
    %3225 = vmatprep.subr.mxu0 0.0
    %3226 = vmatpush1.msra.mxu0 0.0
    %3227 = vmatprep.subr.mxu0 0.0
    %3228 = vmatpush1.msra.mxu0 0.0
    %3229 = vmatprep.subr.mxu0 0.0
    %3230 = vmatpush1.msra.mxu0 0.0
    %3231 = vmatprep.subr.mxu0 0.0
    %3232 = vmatpush1.msra.mxu0 0.0
    %3233 = vmatprep.subr.mxu0 0.0
    %3234 = vmatpush1.msra.mxu0 0.0
    %3235 = vmatprep.subr.mxu0 0.0
    %3236 = vmatpush1.msra.mxu0 0.0
    %3237 = vmatprep.subr.mxu0 0.0
    %3238 = vmatpush1.msra.mxu0 0.0
    %3239 = vmatprep.mubr.f32.mxu0 0.0
    %v3240 = vand.u32 %v2919, 4294901760
    %v3241 = vsub.f32 %v2919, %v3240
    %v3242 = vand.u32 %v3241, 4294901760
    %3243 = vmatmul.mubr.f32.gmra.mrb[0].mxu0 %v3242
    %v3244 = vpop.f32.mrb[0].mxu0
    %v3245 = vadd.f32 %v3168, %v3244
    %v3246 = vpop.f32.mrb[0].mxu0
    %3247 = vdwg.mxu0
    %3248 = vmatprep.subr.mxu0 0.0
    %v3249 = vand.u32 %v2903, 4294901760
    %v3250 = vsub.f32 %v2903, %v3249
    %v3251 = vand.u32 %v3250, 4294901760
    %3252 = vmatpush1.msra.mxu0 %v3251
    %3253 = vmatprep.subr.mxu0 0.0
    %v3254 = vand.u32 %v2905, 4294901760
    %v3255 = vsub.f32 %v2905, %v3254
    %v3256 = vand.u32 %v3255, 4294901760
    %3257 = vmatpush1.msra.mxu0 %v3256
    %3258 = vmatprep.subr.mxu0 0.0
    %v3259 = vand.u32 %v2907, 4294901760
    %v3260 = vsub.f32 %v2907, %v3259
    %v3261 = vand.u32 %v3260, 4294901760
    %3262 = vmatpush1.msra.mxu0 %v3261
    %3263 = vmatprep.subr.mxu0 0.0
    %v3264 = vand.u32 %v2909, 4294901760
    %v3265 = vsub.f32 %v2909, %v3264
    %v3266 = vand.u32 %v3265, 4294901760
    %3267 = vmatpush1.msra.mxu0 %v3266
    %3268 = vmatprep.subr.mxu0 0.0
    %3269 = vmatpush1.msra.mxu0 0.0
    %3270 = vmatprep.subr.mxu0 0.0
    %3271 = vmatpush1.msra.mxu0 0.0
    %3272 = vmatprep.subr.mxu0 0.0
    %3273 = vmatpush1.msra.mxu0 0.0
    %3274 = vmatprep.subr.mxu0 0.0
    %3275 = vmatpush1.msra.mxu0 0.0
    %3276 = vmatprep.subr.mxu0 0.0
    %3277 = vmatpush1.msra.mxu0 0.0
    %3278 = vmatprep.subr.mxu0 0.0
    %3279 = vmatpush1.msra.mxu0 0.0
    %3280 = vmatprep.subr.mxu0 0.0
    %3281 = vmatpush1.msra.mxu0 0.0
    %3282 = vmatprep.subr.mxu0 0.0
    %3283 = vmatpush1.msra.mxu0 0.0
    %3284 = vmatprep.subr.mxu0 0.0
    %3285 = vmatpush1.msra.mxu0 0.0
    %3286 = vmatprep.subr.mxu0 0.0
    %3287 = vmatpush1.msra.mxu0 0.0
    %3288 = vmatprep.subr.mxu0 0.0
    %3289 = vmatpush1.msra.mxu0 0.0
    %3290 = vmatprep.subr.mxu0 0.0
    %3291 = vmatpush1.msra.mxu0 0.0
    %3292 = vmatprep.subr.mxu0 0.0
    %3293 = vmatpush1.msra.mxu0 0.0
    %3294 = vmatprep.subr.mxu0 0.0
    %3295 = vmatpush1.msra.mxu0 0.0
    %3296 = vmatprep.subr.mxu0 0.0
    %3297 = vmatpush1.msra.mxu0 0.0
    %3298 = vmatprep.subr.mxu0 0.0
    %3299 = vmatpush1.msra.mxu0 0.0
    %3300 = vmatprep.subr.mxu0 0.0
    %3301 = vmatpush1.msra.mxu0 0.0
    %3302 = vmatprep.subr.mxu0 0.0
    %3303 = vmatpush1.msra.mxu0 0.0
    %3304 = vmatprep.subr.mxu0 0.0
    %3305 = vmatpush1.msra.mxu0 0.0
    %3306 = vmatprep.subr.mxu0 0.0
    %3307 = vmatpush1.msra.mxu0 0.0
    %3308 = vmatprep.subr.mxu0 0.0
    %3309 = vmatpush1.msra.mxu0 0.0
    %3310 = vmatprep.subr.mxu0 0.0
    %3311 = vmatpush1.msra.mxu0 0.0
    %3312 = vmatprep.subr.mxu0 0.0
    %3313 = vmatpush1.msra.mxu0 0.0
    %3314 = vmatprep.subr.mxu0 0.0
    %3315 = vmatpush1.msra.mxu0 0.0
    %3316 = vmatprep.subr.mxu0 0.0
    %3317 = vmatpush1.msra.mxu0 0.0
    %3318 = vmatprep.subr.mxu0 0.0
    %3319 = vmatpush1.msra.mxu0 0.0
    %3320 = vmatprep.subr.mxu0 0.0
    %3321 = vmatpush1.msra.mxu0 0.0
    %3322 = vmatprep.subr.mxu0 0.0
    %3323 = vmatpush1.msra.mxu0 0.0
    %3324 = vmatprep.mubr.f32.mxu0 0.0
    %v3325 = vand.u32 %v2919, 4294901760
    %3326 = vmatmul.mubr.f32.gmra.mrb[0].mxu0 %v3325
    %v3327 = vpop.f32.mrb[0].mxu0
    %v3328 = vadd.f32 %v3245, %v3327
    %v3329 = vpop.f32.mrb[0].mxu0
    %3330 = vdwg.mxu0
    %3331 = vmatprep.subr.mxu0 0.0
    %v3332 = vand.u32 %v2903, 4294901760
    %3333 = vmatpush1.msra.mxu0 %v3332
    %3334 = vmatprep.subr.mxu0 0.0
    %v3335 = vand.u32 %v2905, 4294901760
    %3336 = vmatpush1.msra.mxu0 %v3335
    %3337 = vmatprep.subr.mxu0 0.0
    %v3338 = vand.u32 %v2907, 4294901760
    %3339 = vmatpush1.msra.mxu0 %v3338
    %3340 = vmatprep.subr.mxu0 0.0
    %v3341 = vand.u32 %v2909, 4294901760
    %3342 = vmatpush1.msra.mxu0 %v3341
    %3343 = vmatprep.subr.mxu0 0.0
    %3344 = vmatpush1.msra.mxu0 0.0
    %3345 = vmatprep.subr.mxu0 0.0
    %3346 = vmatpush1.msra.mxu0 0.0
    %3347 = vmatprep.subr.mxu0 0.0
    %3348 = vmatpush1.msra.mxu0 0.0
    %3349 = vmatprep.subr.mxu0 0.0
    %3350 = vmatpush1.msra.mxu0 0.0
    %3351 = vmatprep.subr.mxu0 0.0
    %3352 = vmatpush1.msra.mxu0 0.0
    %3353 = vmatprep.subr.mxu0 0.0
    %3354 = vmatpush1.msra.mxu0 0.0
    %3355 = vmatprep.subr.mxu0 0.0
    %3356 = vmatpush1.msra.mxu0 0.0
    %3357 = vmatprep.subr.mxu0 0.0
    %3358 = vmatpush1.msra.mxu0 0.0
    %3359 = vmatprep.subr.mxu0 0.0
    %3360 = vmatpush1.msra.mxu0 0.0
    %3361 = vmatprep.subr.mxu0 0.0
    %3362 = vmatpush1.msra.mxu0 0.0
    %3363 = vmatprep.subr.mxu0 0.0
    %3364 = vmatpush1.msra.mxu0 0.0
    %3365 = vmatprep.subr.mxu0 0.0
    %3366 = vmatpush1.msra.mxu0 0.0
    %3367 = vmatprep.subr.mxu0 0.0
    %3368 = vmatpush1.msra.mxu0 0.0
    %3369 = vmatprep.subr.mxu0 0.0
    %3370 = vmatpush1.msra.mxu0 0.0
    %3371 = vmatprep.subr.mxu0 0.0
    %3372 = vmatpush1.msra.mxu0 0.0
    %3373 = vmatprep.subr.mxu0 0.0
    %3374 = vmatpush1.msra.mxu0 0.0
    %3375 = vmatprep.subr.mxu0 0.0
    %3376 = vmatpush1.msra.mxu0 0.0
    %3377 = vmatprep.subr.mxu0 0.0
    %3378 = vmatpush1.msra.mxu0 0.0
    %3379 = vmatprep.subr.mxu0 0.0
    %3380 = vmatpush1.msra.mxu0 0.0
    %3381 = vmatprep.subr.mxu0 0.0
    %3382 = vmatpush1.msra.mxu0 0.0
    %3383 = vmatprep.subr.mxu0 0.0
    %3384 = vmatpush1.msra.mxu0 0.0
    %3385 = vmatprep.subr.mxu0 0.0
    %3386 = vmatpush1.msra.mxu0 0.0
    %3387 = vmatprep.subr.mxu0 0.0
    %3388 = vmatpush1.msra.mxu0 0.0
    %3389 = vmatprep.subr.mxu0 0.0
    %3390 = vmatpush1.msra.mxu0 0.0
    %3391 = vmatprep.subr.mxu0 0.0
    %3392 = vmatpush1.msra.mxu0 0.0
    %3393 = vmatprep.subr.mxu0 0.0
    %3394 = vmatpush1.msra.mxu0 0.0
    %3395 = vmatprep.subr.mxu0 0.0
    %3396 = vmatpush1.msra.mxu0 0.0
    %3397 = vmatprep.subr.mxu0 0.0
    %3398 = vmatpush1.msra.mxu0 0.0
    %3399 = vmatprep.mubr.f32.mxu0 0.0
    %v3400 = vand.u32 %v2919, 4294901760
    %3401 = vmatmul.mubr.f32.gmra.mrb[0].mxu0 %v3400
    %v3402 = vpop.f32.mrb[0].mxu0
    %v3403 = vadd.f32 %v3328, %v3402
    %v3404 = vpop.f32.mrb[0].mxu0
    %3405 = vdwg.mxu0
    %v3406 = vadd.f32 %v24, %v3403
    %v3407 = vsel %vm38, %v3406, 0.0
    %3408 = vadd.xlane.f32.xlu0 %v3407
    %v3409 = vpop.xlane.xlu0 %3408
    %v3410 = vmul.f32 %v3409, %v42
    %v3411 = vsub.f32 %v3406, %v3410
    %v3412 = vmul.f32 %v3411, %v3411
    %v3413 = vsel %vm38, %v3412, 0.0
    %3414 = vadd.xlane.f32.xlu0 %v3413
    %v3415 = vpop.xlane.xlu0 %3414
    %v3416 = vmul.f32 %v3415, %v42
    %v3417 = vadd.f32 %v3416, 1e-05
    %v3418 = vrsqrt.pop %v3417
    %v3419 = vmul.f32 %v3411, %v3418
    %3420 = vrot.lane.b32.xlu0 %v56, 64
    %v3421 = vpop.permute.xlu0 %3420
    %v3423 = vmul.f32 %v3419, %v3421
    %3424 = vrot.lane.b32.xlu0 %v56, 32
    %v3425 = vpop.permute.xlu0 %3424
    %v3427 = vadd.f32 %v3423, %v3425
    %v3428 = vlaneseq
    %v3429 = vshrl.u32 %v3428, 7
    %v3430 = vsub.s32 2, %v3429
    %v3431 = vrot.slane %v37, %v3430
    %v3433 = vsel %vm38, %v3427, 0
    %3435 = vmatprep.subr.mxu0 0.0
    %v3436 = vand.u32 %v26, 4294901760
    %3437 = vmatpush1.msra.mxu0 %v3436
    %3438 = vmatprep.subr.mxu0 0.0
    %v3439 = vand.u32 %v29, 4294901760
    %3440 = vmatpush1.msra.mxu0 %v3439
    %3441 = vmatprep.subr.mxu0 0.0
    %v3442 = vand.u32 %v32, 4294901760
    %3443 = vmatpush1.msra.mxu0 %v3442
    %3444 = vmatprep.subr.mxu0 0.0
    %v3445 = vand.u32 %v35, 4294901760
    %3446 = vmatpush1.msra.mxu0 %v3445
    %3447 = vmatprep.subr.mxu0 0.0
    %3448 = vmatpush1.msra.mxu0 0.0
    %3449 = vmatprep.subr.mxu0 0.0
    %3450 = vmatpush1.msra.mxu0 0.0
    %3451 = vmatprep.subr.mxu0 0.0
    %3452 = vmatpush1.msra.mxu0 0.0
    %3453 = vmatprep.subr.mxu0 0.0
    %3454 = vmatpush1.msra.mxu0 0.0
    %3455 = vmatprep.subr.mxu0 0.0
    %3456 = vmatpush1.msra.mxu0 0.0
    %3457 = vmatprep.subr.mxu0 0.0
    %3458 = vmatpush1.msra.mxu0 0.0
    %3459 = vmatprep.subr.mxu0 0.0
    %3460 = vmatpush1.msra.mxu0 0.0
    %3461 = vmatprep.subr.mxu0 0.0
    %3462 = vmatpush1.msra.mxu0 0.0
    %3463 = vmatprep.subr.mxu0 0.0
    %3464 = vmatpush1.msra.mxu0 0.0
    %3465 = vmatprep.subr.mxu0 0.0
    %3466 = vmatpush1.msra.mxu0 0.0
    %3467 = vmatprep.subr.mxu0 0.0
    %3468 = vmatpush1.msra.mxu0 0.0
    %3469 = vmatprep.subr.mxu0 0.0
    %3470 = vmatpush1.msra.mxu0 0.0
    %3471 = vmatprep.subr.mxu0 0.0
    %3472 = vmatpush1.msra.mxu0 0.0
    %3473 = vmatprep.subr.mxu0 0.0
    %3474 = vmatpush1.msra.mxu0 0.0
    %3475 = vmatprep.subr.mxu0 0.0
    %3476 = vmatpush1.msra.mxu0 0.0
    %3477 = vmatprep.subr.mxu0 0.0
    %3478 = vmatpush1.msra.mxu0 0.0
    %3479 = vmatprep.subr.mxu0 0.0
    %3480 = vmatpush1.msra.mxu0 0.0
    %3481 = vmatprep.subr.mxu0 0.0
    %3482 = vmatpush1.msra.mxu0 0.0
    %3483 = vmatprep.subr.mxu0 0.0
    %3484 = vmatpush1.msra.mxu0 0.0
    %3485 = vmatprep.subr.mxu0 0.0
    %3486 = vmatpush1.msra.mxu0 0.0
    %3487 = vmatprep.subr.mxu0 0.0
    %3488 = vmatpush1.msra.mxu0 0.0
    %3489 = vmatprep.subr.mxu0 0.0
    %3490 = vmatpush1.msra.mxu0 0.0
    %3491 = vmatprep.subr.mxu0 0.0
    %3492 = vmatpush1.msra.mxu0 0.0
    %3493 = vmatprep.subr.mxu0 0.0
    %3494 = vmatpush1.msra.mxu0 0.0
    %3495 = vmatprep.subr.mxu0 0.0
    %3496 = vmatpush1.msra.mxu0 0.0
    %3497 = vmatprep.subr.mxu0 0.0
    %3498 = vmatpush1.msra.mxu0 0.0
    %3499 = vmatprep.subr.mxu0 0.0
    %3500 = vmatpush1.msra.mxu0 0.0
    %3501 = vmatprep.subr.mxu0 0.0
    %3502 = vmatpush1.msra.mxu0 0.0
    %3503 = vmatprep.mubr.f32.mxu0 0.0
    %v3504 = vand.u32 %v3433, 4294901760
    %v3505 = vsub.f32 %v3433, %v3504
    %v3506 = vand.u32 %v3505, 4294901760
    %v3507 = vsub.f32 %v3505, %v3506
    %v3508 = vand.u32 %v3507, 4294901760
    %3509 = vmatmul.mubr.f32.gmra.mrb[0].mxu0 %v3508
    %v3510 = vpop.f32.mrb[0].mxu0
    %v3511 = vadd.f32 %v3431, %v3510
    %v3512 = vpop.f32.mrb[0].mxu0
    %3513 = vdwg.mxu0
    %3514 = vmatprep.subr.mxu0 0.0
    %v3515 = vand.u32 %v26, 4294901760
    %v3516 = vsub.f32 %v26, %v3515
    %v3517 = vand.u32 %v3516, 4294901760
    %v3518 = vsub.f32 %v3516, %v3517
    %v3519 = vand.u32 %v3518, 4294901760
    %3520 = vmatpush1.msra.mxu0 %v3519
    %3521 = vmatprep.subr.mxu0 0.0
    %v3522 = vand.u32 %v29, 4294901760
    %v3523 = vsub.f32 %v29, %v3522
    %v3524 = vand.u32 %v3523, 4294901760
    %v3525 = vsub.f32 %v3523, %v3524
    %v3526 = vand.u32 %v3525, 4294901760
    %3527 = vmatpush1.msra.mxu0 %v3526
    %3528 = vmatprep.subr.mxu0 0.0
    %v3529 = vand.u32 %v32, 4294901760
    %v3530 = vsub.f32 %v32, %v3529
    %v3531 = vand.u32 %v3530, 4294901760
    %v3532 = vsub.f32 %v3530, %v3531
    %v3533 = vand.u32 %v3532, 4294901760
    %3534 = vmatpush1.msra.mxu0 %v3533
    %3535 = vmatprep.subr.mxu0 0.0
    %v3536 = vand.u32 %v35, 4294901760
    %v3537 = vsub.f32 %v35, %v3536
    %v3538 = vand.u32 %v3537, 4294901760
    %v3539 = vsub.f32 %v3537, %v3538
    %v3540 = vand.u32 %v3539, 4294901760
    %3541 = vmatpush1.msra.mxu0 %v3540
    %3542 = vmatprep.subr.mxu0 0.0
    %3543 = vmatpush1.msra.mxu0 0.0
    %3544 = vmatprep.subr.mxu0 0.0
    %3545 = vmatpush1.msra.mxu0 0.0
    %3546 = vmatprep.subr.mxu0 0.0
    %3547 = vmatpush1.msra.mxu0 0.0
    %3548 = vmatprep.subr.mxu0 0.0
    %3549 = vmatpush1.msra.mxu0 0.0
    %3550 = vmatprep.subr.mxu0 0.0
    %3551 = vmatpush1.msra.mxu0 0.0
    %3552 = vmatprep.subr.mxu0 0.0
    %3553 = vmatpush1.msra.mxu0 0.0
    %3554 = vmatprep.subr.mxu0 0.0
    %3555 = vmatpush1.msra.mxu0 0.0
    %3556 = vmatprep.subr.mxu0 0.0
    %3557 = vmatpush1.msra.mxu0 0.0
    %3558 = vmatprep.subr.mxu0 0.0
    %3559 = vmatpush1.msra.mxu0 0.0
    %3560 = vmatprep.subr.mxu0 0.0
    %3561 = vmatpush1.msra.mxu0 0.0
    %3562 = vmatprep.subr.mxu0 0.0
    %3563 = vmatpush1.msra.mxu0 0.0
    %3564 = vmatprep.subr.mxu0 0.0
    %3565 = vmatpush1.msra.mxu0 0.0
    %3566 = vmatprep.subr.mxu0 0.0
    %3567 = vmatpush1.msra.mxu0 0.0
    %3568 = vmatprep.subr.mxu0 0.0
    %3569 = vmatpush1.msra.mxu0 0.0
    %3570 = vmatprep.subr.mxu0 0.0
    %3571 = vmatpush1.msra.mxu0 0.0
    %3572 = vmatprep.subr.mxu0 0.0
    %3573 = vmatpush1.msra.mxu0 0.0
    %3574 = vmatprep.subr.mxu0 0.0
    %3575 = vmatpush1.msra.mxu0 0.0
    %3576 = vmatprep.subr.mxu0 0.0
    %3577 = vmatpush1.msra.mxu0 0.0
    %3578 = vmatprep.subr.mxu0 0.0
    %3579 = vmatpush1.msra.mxu0 0.0
    %3580 = vmatprep.subr.mxu0 0.0
    %3581 = vmatpush1.msra.mxu0 0.0
    %3582 = vmatprep.subr.mxu0 0.0
    %3583 = vmatpush1.msra.mxu0 0.0
    %3584 = vmatprep.subr.mxu0 0.0
    %3585 = vmatpush1.msra.mxu0 0.0
    %3586 = vmatprep.subr.mxu0 0.0
    %3587 = vmatpush1.msra.mxu0 0.0
    %3588 = vmatprep.subr.mxu0 0.0
    %3589 = vmatpush1.msra.mxu0 0.0
    %3590 = vmatprep.subr.mxu0 0.0
    %3591 = vmatpush1.msra.mxu0 0.0
    %3592 = vmatprep.subr.mxu0 0.0
    %3593 = vmatpush1.msra.mxu0 0.0
    %3594 = vmatprep.subr.mxu0 0.0
    %3595 = vmatpush1.msra.mxu0 0.0
    %3596 = vmatprep.subr.mxu0 0.0
    %3597 = vmatpush1.msra.mxu0 0.0
    %3598 = vmatprep.mubr.f32.mxu0 0.0
    %v3599 = vand.u32 %v3433, 4294901760
    %3600 = vmatmul.mubr.f32.gmra.mrb[0].mxu0 %v3599
    %v3601 = vpop.f32.mrb[0].mxu0
    %v3602 = vadd.f32 %v3511, %v3601
    %v3603 = vpop.f32.mrb[0].mxu0
    %3604 = vdwg.mxu0
    %3605 = vmatprep.subr.mxu0 0.0
    %v3606 = vand.u32 %v26, 4294901760
    %v3607 = vsub.f32 %v26, %v3606
    %3608 = vmatpush1.msra.mxu0 %v3607
    %3609 = vmatprep.subr.mxu0 0.0
    %v3610 = vand.u32 %v29, 4294901760
    %v3611 = vsub.f32 %v29, %v3610
    %3612 = vmatpush1.msra.mxu0 %v3611
    %3613 = vmatprep.subr.mxu0 0.0
    %v3614 = vand.u32 %v32, 4294901760
    %v3615 = vsub.f32 %v32, %v3614
    %3616 = vmatpush1.msra.mxu0 %v3615
    %3617 = vmatprep.subr.mxu0 0.0
    %v3618 = vand.u32 %v35, 4294901760
    %v3619 = vsub.f32 %v35, %v3618
    %3620 = vmatpush1.msra.mxu0 %v3619
    %3621 = vmatprep.subr.mxu0 0.0
    %3622 = vmatpush1.msra.mxu0 0.0
    %3623 = vmatprep.subr.mxu0 0.0
    %3624 = vmatpush1.msra.mxu0 0.0
    %3625 = vmatprep.subr.mxu0 0.0
    %3626 = vmatpush1.msra.mxu0 0.0
    %3627 = vmatprep.subr.mxu0 0.0
    %3628 = vmatpush1.msra.mxu0 0.0
    %3629 = vmatprep.subr.mxu0 0.0
    %3630 = vmatpush1.msra.mxu0 0.0
    %3631 = vmatprep.subr.mxu0 0.0
    %3632 = vmatpush1.msra.mxu0 0.0
    %3633 = vmatprep.subr.mxu0 0.0
    %3634 = vmatpush1.msra.mxu0 0.0
    %3635 = vmatprep.subr.mxu0 0.0
    %3636 = vmatpush1.msra.mxu0 0.0
    %3637 = vmatprep.subr.mxu0 0.0
    %3638 = vmatpush1.msra.mxu0 0.0
    %3639 = vmatprep.subr.mxu0 0.0
    %3640 = vmatpush1.msra.mxu0 0.0
    %3641 = vmatprep.subr.mxu0 0.0
    %3642 = vmatpush1.msra.mxu0 0.0
    %3643 = vmatprep.subr.mxu0 0.0
    %3644 = vmatpush1.msra.mxu0 0.0
    %3645 = vmatprep.subr.mxu0 0.0
    %3646 = vmatpush1.msra.mxu0 0.0
    %3647 = vmatprep.subr.mxu0 0.0
    %3648 = vmatpush1.msra.mxu0 0.0
    %3649 = vmatprep.subr.mxu0 0.0
    %3650 = vmatpush1.msra.mxu0 0.0
    %3651 = vmatprep.subr.mxu0 0.0
    %3652 = vmatpush1.msra.mxu0 0.0
    %3653 = vmatprep.subr.mxu0 0.0
    %3654 = vmatpush1.msra.mxu0 0.0
    %3655 = vmatprep.subr.mxu0 0.0
    %3656 = vmatpush1.msra.mxu0 0.0
    %3657 = vmatprep.subr.mxu0 0.0
    %3658 = vmatpush1.msra.mxu0 0.0
    %3659 = vmatprep.subr.mxu0 0.0
    %3660 = vmatpush1.msra.mxu0 0.0
    %3661 = vmatprep.subr.mxu0 0.0
    %3662 = vmatpush1.msra.mxu0 0.0
    %3663 = vmatprep.subr.mxu0 0.0
    %3664 = vmatpush1.msra.mxu0 0.0
    %3665 = vmatprep.subr.mxu0 0.0
    %3666 = vmatpush1.msra.mxu0 0.0
    %3667 = vmatprep.subr.mxu0 0.0
    %3668 = vmatpush1.msra.mxu0 0.0
    %3669 = vmatprep.subr.mxu0 0.0
    %3670 = vmatpush1.msra.mxu0 0.0
    %3671 = vmatprep.subr.mxu0 0.0
    %3672 = vmatpush1.msra.mxu0 0.0
    %3673 = vmatprep.subr.mxu0 0.0
    %3674 = vmatpush1.msra.mxu0 0.0
    %3675 = vmatprep.subr.mxu0 0.0
    %3676 = vmatpush1.msra.mxu0 0.0
    %3677 = vmatprep.mubr.f32.mxu0 0.0
    %v3678 = vand.u32 %v3433, 4294901760
    %v3679 = vsub.f32 %v3433, %v3678
    %3680 = vmatmul.mubr.f32.gmra.mrb[0].mxu0 %v3679
    %v3681 = vpop.f32.mrb[0].mxu0
    %v3682 = vadd.f32 %v3602, %v3681
    %v3683 = vpop.f32.mrb[0].mxu0
    %3684 = vdwg.mxu0
    %3685 = vmatprep.subr.mxu0 0.0
    %v3686 = vand.u32 %v26, 4294901760
    %3687 = vmatpush1.msra.mxu0 %v3686
    %3688 = vmatprep.subr.mxu0 0.0
    %v3689 = vand.u32 %v29, 4294901760
    %3690 = vmatpush1.msra.mxu0 %v3689
    %3691 = vmatprep.subr.mxu0 0.0
    %v3692 = vand.u32 %v32, 4294901760
    %3693 = vmatpush1.msra.mxu0 %v3692
    %3694 = vmatprep.subr.mxu0 0.0
    %v3695 = vand.u32 %v35, 4294901760
    %3696 = vmatpush1.msra.mxu0 %v3695
    %3697 = vmatprep.subr.mxu0 0.0
    %3698 = vmatpush1.msra.mxu0 0.0
    %3699 = vmatprep.subr.mxu0 0.0
    %3700 = vmatpush1.msra.mxu0 0.0
    %3701 = vmatprep.subr.mxu0 0.0
    %3702 = vmatpush1.msra.mxu0 0.0
    %3703 = vmatprep.subr.mxu0 0.0
    %3704 = vmatpush1.msra.mxu0 0.0
    %3705 = vmatprep.subr.mxu0 0.0
    %3706 = vmatpush1.msra.mxu0 0.0
    %3707 = vmatprep.subr.mxu0 0.0
    %3708 = vmatpush1.msra.mxu0 0.0
    %3709 = vmatprep.subr.mxu0 0.0
    %3710 = vmatpush1.msra.mxu0 0.0
    %3711 = vmatprep.subr.mxu0 0.0
    %3712 = vmatpush1.msra.mxu0 0.0
    %3713 = vmatprep.subr.mxu0 0.0
    %3714 = vmatpush1.msra.mxu0 0.0
    %3715 = vmatprep.subr.mxu0 0.0
    %3716 = vmatpush1.msra.mxu0 0.0
    %3717 = vmatprep.subr.mxu0 0.0
    %3718 = vmatpush1.msra.mxu0 0.0
    %3719 = vmatprep.subr.mxu0 0.0
    %3720 = vmatpush1.msra.mxu0 0.0
    %3721 = vmatprep.subr.mxu0 0.0
    %3722 = vmatpush1.msra.mxu0 0.0
    %3723 = vmatprep.subr.mxu0 0.0
    %3724 = vmatpush1.msra.mxu0 0.0
    %3725 = vmatprep.subr.mxu0 0.0
    %3726 = vmatpush1.msra.mxu0 0.0
    %3727 = vmatprep.subr.mxu0 0.0
    %3728 = vmatpush1.msra.mxu0 0.0
    %3729 = vmatprep.subr.mxu0 0.0
    %3730 = vmatpush1.msra.mxu0 0.0
    %3731 = vmatprep.subr.mxu0 0.0
    %3732 = vmatpush1.msra.mxu0 0.0
    %3733 = vmatprep.subr.mxu0 0.0
    %3734 = vmatpush1.msra.mxu0 0.0
    %3735 = vmatprep.subr.mxu0 0.0
    %3736 = vmatpush1.msra.mxu0 0.0
    %3737 = vmatprep.subr.mxu0 0.0
    %3738 = vmatpush1.msra.mxu0 0.0
    %3739 = vmatprep.subr.mxu0 0.0
    %3740 = vmatpush1.msra.mxu0 0.0
    %3741 = vmatprep.subr.mxu0 0.0
    %3742 = vmatpush1.msra.mxu0 0.0
    %3743 = vmatprep.subr.mxu0 0.0
    %3744 = vmatpush1.msra.mxu0 0.0
    %3745 = vmatprep.subr.mxu0 0.0
    %3746 = vmatpush1.msra.mxu0 0.0
    %3747 = vmatprep.subr.mxu0 0.0
    %3748 = vmatpush1.msra.mxu0 0.0
    %3749 = vmatprep.subr.mxu0 0.0
    %3750 = vmatpush1.msra.mxu0 0.0
    %3751 = vmatprep.subr.mxu0 0.0
    %3752 = vmatpush1.msra.mxu0 0.0
    %3753 = vmatprep.mubr.f32.mxu0 0.0
    %v3754 = vand.u32 %v3433, 4294901760
    %v3755 = vsub.f32 %v3433, %v3754
    %v3756 = vand.u32 %v3755, 4294901760
    %3757 = vmatmul.mubr.f32.gmra.mrb[0].mxu0 %v3756
    %v3758 = vpop.f32.mrb[0].mxu0
    %v3759 = vadd.f32 %v3682, %v3758
    %v3760 = vpop.f32.mrb[0].mxu0
    %3761 = vdwg.mxu0
    %3762 = vmatprep.subr.mxu0 0.0
    %v3763 = vand.u32 %v26, 4294901760
    %v3764 = vsub.f32 %v26, %v3763
    %v3765 = vand.u32 %v3764, 4294901760
    %3766 = vmatpush1.msra.mxu0 %v3765
    %3767 = vmatprep.subr.mxu0 0.0
    %v3768 = vand.u32 %v29, 4294901760
    %v3769 = vsub.f32 %v29, %v3768
    %v3770 = vand.u32 %v3769, 4294901760
    %3771 = vmatpush1.msra.mxu0 %v3770
    %3772 = vmatprep.subr.mxu0 0.0
    %v3773 = vand.u32 %v32, 4294901760
    %v3774 = vsub.f32 %v32, %v3773
    %v3775 = vand.u32 %v3774, 4294901760
    %3776 = vmatpush1.msra.mxu0 %v3775
    %3777 = vmatprep.subr.mxu0 0.0
    %v3778 = vand.u32 %v35, 4294901760
    %v3779 = vsub.f32 %v35, %v3778
    %v3780 = vand.u32 %v3779, 4294901760
    %3781 = vmatpush1.msra.mxu0 %v3780
    %3782 = vmatprep.subr.mxu0 0.0
    %3783 = vmatpush1.msra.mxu0 0.0
    %3784 = vmatprep.subr.mxu0 0.0
    %3785 = vmatpush1.msra.mxu0 0.0
    %3786 = vmatprep.subr.mxu0 0.0
    %3787 = vmatpush1.msra.mxu0 0.0
    %3788 = vmatprep.subr.mxu0 0.0
    %3789 = vmatpush1.msra.mxu0 0.0
    %3790 = vmatprep.subr.mxu0 0.0
    %3791 = vmatpush1.msra.mxu0 0.0
    %3792 = vmatprep.subr.mxu0 0.0
    %3793 = vmatpush1.msra.mxu0 0.0
    %3794 = vmatprep.subr.mxu0 0.0
    %3795 = vmatpush1.msra.mxu0 0.0
    %3796 = vmatprep.subr.mxu0 0.0
    %3797 = vmatpush1.msra.mxu0 0.0
    %3798 = vmatprep.subr.mxu0 0.0
    %3799 = vmatpush1.msra.mxu0 0.0
    %3800 = vmatprep.subr.mxu0 0.0
    %3801 = vmatpush1.msra.mxu0 0.0
    %3802 = vmatprep.subr.mxu0 0.0
    %3803 = vmatpush1.msra.mxu0 0.0
    %3804 = vmatprep.subr.mxu0 0.0
    %3805 = vmatpush1.msra.mxu0 0.0
    %3806 = vmatprep.subr.mxu0 0.0
    %3807 = vmatpush1.msra.mxu0 0.0
    %3808 = vmatprep.subr.mxu0 0.0
    %3809 = vmatpush1.msra.mxu0 0.0
    %3810 = vmatprep.subr.mxu0 0.0
    %3811 = vmatpush1.msra.mxu0 0.0
    %3812 = vmatprep.subr.mxu0 0.0
    %3813 = vmatpush1.msra.mxu0 0.0
    %3814 = vmatprep.subr.mxu0 0.0
    %3815 = vmatpush1.msra.mxu0 0.0
    %3816 = vmatprep.subr.mxu0 0.0
    %3817 = vmatpush1.msra.mxu0 0.0
    %3818 = vmatprep.subr.mxu0 0.0
    %3819 = vmatpush1.msra.mxu0 0.0
    %3820 = vmatprep.subr.mxu0 0.0
    %3821 = vmatpush1.msra.mxu0 0.0
    %3822 = vmatprep.subr.mxu0 0.0
    %3823 = vmatpush1.msra.mxu0 0.0
    %3824 = vmatprep.subr.mxu0 0.0
    %3825 = vmatpush1.msra.mxu0 0.0
    %3826 = vmatprep.subr.mxu0 0.0
    %3827 = vmatpush1.msra.mxu0 0.0
    %3828 = vmatprep.subr.mxu0 0.0
    %3829 = vmatpush1.msra.mxu0 0.0
    %3830 = vmatprep.subr.mxu0 0.0
    %3831 = vmatpush1.msra.mxu0 0.0
    %3832 = vmatprep.subr.mxu0 0.0
    %3833 = vmatpush1.msra.mxu0 0.0
    %3834 = vmatprep.subr.mxu0 0.0
    %3835 = vmatpush1.msra.mxu0 0.0
    %3836 = vmatprep.subr.mxu0 0.0
    %3837 = vmatpush1.msra.mxu0 0.0
    %3838 = vmatprep.mubr.f32.mxu0 0.0
    %v3839 = vand.u32 %v3433, 4294901760
    %3840 = vmatmul.mubr.f32.gmra.mrb[0].mxu0 %v3839
    %v3841 = vpop.f32.mrb[0].mxu0
    %v3842 = vadd.f32 %v3759, %v3841
    %v3843 = vpop.f32.mrb[0].mxu0
    %3844 = vdwg.mxu0
    %3845 = vmatprep.subr.mxu0 0.0
    %v3846 = vand.u32 %v26, 4294901760
    %3847 = vmatpush1.msra.mxu0 %v3846
    %3848 = vmatprep.subr.mxu0 0.0
    %v3849 = vand.u32 %v29, 4294901760
    %3850 = vmatpush1.msra.mxu0 %v3849
    %3851 = vmatprep.subr.mxu0 0.0
    %v3852 = vand.u32 %v32, 4294901760
    %3853 = vmatpush1.msra.mxu0 %v3852
    %3854 = vmatprep.subr.mxu0 0.0
    %v3855 = vand.u32 %v35, 4294901760
    %3856 = vmatpush1.msra.mxu0 %v3855
    %3857 = vmatprep.subr.mxu0 0.0
    %3858 = vmatpush1.msra.mxu0 0.0
    %3859 = vmatprep.subr.mxu0 0.0
    %3860 = vmatpush1.msra.mxu0 0.0
    %3861 = vmatprep.subr.mxu0 0.0
    %3862 = vmatpush1.msra.mxu0 0.0
    %3863 = vmatprep.subr.mxu0 0.0
    %3864 = vmatpush1.msra.mxu0 0.0
    %3865 = vmatprep.subr.mxu0 0.0
    %3866 = vmatpush1.msra.mxu0 0.0
    %3867 = vmatprep.subr.mxu0 0.0
    %3868 = vmatpush1.msra.mxu0 0.0
    %3869 = vmatprep.subr.mxu0 0.0
    %3870 = vmatpush1.msra.mxu0 0.0
    %3871 = vmatprep.subr.mxu0 0.0
    %3872 = vmatpush1.msra.mxu0 0.0
    %3873 = vmatprep.subr.mxu0 0.0
    %3874 = vmatpush1.msra.mxu0 0.0
    %3875 = vmatprep.subr.mxu0 0.0
    %3876 = vmatpush1.msra.mxu0 0.0
    %3877 = vmatprep.subr.mxu0 0.0
    %3878 = vmatpush1.msra.mxu0 0.0
    %3879 = vmatprep.subr.mxu0 0.0
    %3880 = vmatpush1.msra.mxu0 0.0
    %3881 = vmatprep.subr.mxu0 0.0
    %3882 = vmatpush1.msra.mxu0 0.0
    %3883 = vmatprep.subr.mxu0 0.0
    %3884 = vmatpush1.msra.mxu0 0.0
    %3885 = vmatprep.subr.mxu0 0.0
    %3886 = vmatpush1.msra.mxu0 0.0
    %3887 = vmatprep.subr.mxu0 0.0
    %3888 = vmatpush1.msra.mxu0 0.0
    %3889 = vmatprep.subr.mxu0 0.0
    %3890 = vmatpush1.msra.mxu0 0.0
    %3891 = vmatprep.subr.mxu0 0.0
    %3892 = vmatpush1.msra.mxu0 0.0
    %3893 = vmatprep.subr.mxu0 0.0
    %3894 = vmatpush1.msra.mxu0 0.0
    %3895 = vmatprep.subr.mxu0 0.0
    %3896 = vmatpush1.msra.mxu0 0.0
    %3897 = vmatprep.subr.mxu0 0.0
    %3898 = vmatpush1.msra.mxu0 0.0
    %3899 = vmatprep.subr.mxu0 0.0
    %3900 = vmatpush1.msra.mxu0 0.0
    %3901 = vmatprep.subr.mxu0 0.0
    %3902 = vmatpush1.msra.mxu0 0.0
    %3903 = vmatprep.subr.mxu0 0.0
    %3904 = vmatpush1.msra.mxu0 0.0
    %3905 = vmatprep.subr.mxu0 0.0
    %3906 = vmatpush1.msra.mxu0 0.0
    %3907 = vmatprep.subr.mxu0 0.0
    %3908 = vmatpush1.msra.mxu0 0.0
    %3909 = vmatprep.subr.mxu0 0.0
    %3910 = vmatpush1.msra.mxu0 0.0
    %3911 = vmatprep.subr.mxu0 0.0
    %3912 = vmatpush1.msra.mxu0 0.0
    %3913 = vmatprep.mubr.f32.mxu0 0.0
    %v3914 = vand.u32 %v3433, 4294901760
    %3915 = vmatmul.mubr.f32.gmra.mrb[0].mxu0 %v3914
    %v3916 = vpop.f32.mrb[0].mxu0
    %v3917 = vadd.f32 %v3842, %v3916
    %v3918 = vpop.f32.mrb[0].mxu0
    %3919 = vdwg.mxu0
    %v3920 = vmul.f32 %v3917, 0.5
    %v3921 = vrcp.pop 1.41421
    %v3922 = vmul.f32 %v3917, %v3921
    %vm3923 = vcmp.ge.f32.partialorder %v3922, 0.0
    %v3924 = vsel %vm3923, 1.0, -1.0
    %v3925 = vand.u32 2147483647, %v3922
    %v3926 = vmul.f32 %v3925, 0.3275911
    %v3927 = vadd.f32 %v3926, 1.0
    %v3928 = vrcp.pop %v3927
    %v3929 = vmul.f32 1.0, %v3928
    %v3930 = vmul.f32 %v3929, 1.0614054
    %v3931 = vadd.f32 %v3930, -1.4531521
    %v3932 = vmul.f32 %v3931, %v3929
    %v3933 = vadd.f32 %v3932, 1.4214138
    %v3934 = vmul.f32 %v3933, %v3929
    %v3935 = vadd.f32 %v3934, -0.28449672
    %v3936 = vmul.f32 %v3935, %v3929
    %v3937 = vadd.f32 %v3936, 0.2548296
    %v3938 = vmul.f32 %v3937, %v3929
    %v3939 = vsub.f32 0.0, %v3925
    %v3940 = vmul.f32 %v3939, %v3925
    %v3941 = vmul.f32 %v3940, 1.442695
    %v3942 = vpow.pop %v3941
    %v3943 = vmul.f32 %v3938, %v3942
    %v3944 = vsub.f32 1.0, %v3943
    %v3945 = vmul.f32 %v3924, %v3944
    %v3946 = vadd.f32 %v3945, 1.0
    %v3947 = vmul.f32 %v3920, %v3946
    %v3948 = vlaneseq
    %v3949 = vshrl.u32 %v3948, 7
    %v3950 = vsub.s32 3, %v3949
    %v3951 = vrot.slane %v37, %v3950
    %3952 = vmatprep.subr.mxu0 0.0
    %v3953 = vand.u32 %v27, 4294901760
    %3954 = vmatpush1.xpose.msra.mxu0 %v3953
    %3955 = vmatprep.subr.mxu0 0.0
    %v3956 = vand.u32 %v30, 4294901760
    %3957 = vmatpush1.xpose.msra.mxu0 %v3956
    %3958 = vmatprep.subr.mxu0 0.0
    %v3959 = vand.u32 %v33, 4294901760
    %3960 = vmatpush1.xpose.msra.mxu0 %v3959
    %3961 = vmatprep.subr.mxu0 0.0
    %v3962 = vand.u32 %v36, 4294901760
    %3963 = vmatpush1.xpose.msra.mxu0 %v3962
    %3964 = vmatprep.subr.mxu0 0.0
    %3965 = vmatpush1.xpose.msra.mxu0 0.0
    %3966 = vmatprep.subr.mxu0 0.0
    %3967 = vmatpush1.xpose.msra.mxu0 0.0
    %3968 = vmatprep.subr.mxu0 0.0
    %3969 = vmatpush1.xpose.msra.mxu0 0.0
    %3970 = vmatprep.subr.mxu0 0.0
    %3971 = vmatpush1.xpose.msra.mxu0 0.0
    %3972 = vmatprep.subr.mxu0 0.0
    %3973 = vmatpush1.xpose.msra.mxu0 0.0
    %3974 = vmatprep.subr.mxu0 0.0
    %3975 = vmatpush1.xpose.msra.mxu0 0.0
    %3976 = vmatprep.subr.mxu0 0.0
    %3977 = vmatpush1.xpose.msra.mxu0 0.0
    %3978 = vmatprep.subr.mxu0 0.0
    %3979 = vmatpush1.xpose.msra.mxu0 0.0
    %3980 = vmatprep.subr.mxu0 0.0
    %3981 = vmatpush1.xpose.msra.mxu0 0.0
    %3982 = vmatprep.subr.mxu0 0.0
    %3983 = vmatpush1.xpose.msra.mxu0 0.0
    %3984 = vmatprep.subr.mxu0 0.0
    %3985 = vmatpush1.xpose.msra.mxu0 0.0
    %3986 = vmatprep.subr.mxu0 0.0
    %3987 = vmatpush1.xpose.msra.mxu0 0.0
    %3988 = vmatprep.subr.mxu0 0.0
    %3989 = vmatpush1.xpose.msra.mxu0 0.0
    %3990 = vmatprep.subr.mxu0 0.0
    %3991 = vmatpush1.xpose.msra.mxu0 0.0
    %3992 = vmatprep.subr.mxu0 0.0
    %3993 = vmatpush1.xpose.msra.mxu0 0.0
    %3994 = vmatprep.subr.mxu0 0.0
    %3995 = vmatpush1.xpose.msra.mxu0 0.0
    %3996 = vmatprep.subr.mxu0 0.0
    %3997 = vmatpush1.xpose.msra.mxu0 0.0
    %3998 = vmatprep.subr.mxu0 0.0
    %3999 = vmatpush1.xpose.msra.mxu0 0.0
    %4000 = vmatprep.subr.mxu0 0.0
    %4001 = vmatpush1.xpose.msra.mxu0 0.0
    %4002 = vmatprep.subr.mxu0 0.0
    %4003 = vmatpush1.xpose.msra.mxu0 0.0
    %4004 = vmatprep.subr.mxu0 0.0
    %4005 = vmatpush1.xpose.msra.mxu0 0.0
    %4006 = vmatprep.subr.mxu0 0.0
    %4007 = vmatpush1.xpose.msra.mxu0 0.0
    %4008 = vmatprep.subr.mxu0 0.0
    %4009 = vmatpush1.xpose.msra.mxu0 0.0
    %4010 = vmatprep.subr.mxu0 0.0
    %4011 = vmatpush1.xpose.msra.mxu0 0.0
    %4012 = vmatprep.subr.mxu0 0.0
    %4013 = vmatpush1.xpose.msra.mxu0 0.0
    %4014 = vmatprep.subr.mxu0 0.0
    %4015 = vmatpush1.xpose.msra.mxu0 0.0
    %4016 = vmatprep.subr.mxu0 0.0
    %4017 = vmatpush1.xpose.msra.mxu0 0.0
    %4018 = vmatprep.subr.mxu0 0.0
    %4019 = vmatpush1.xpose.msra.mxu0 0.0
    %4020 = vmatprep.mubr.f32.mxu0 0.0
    %v4021 = vand.u32 %v3947, 4294901760
    %v4022 = vsub.f32 %v3947, %v4021
    %v4023 = vand.u32 %v4022, 4294901760
    %v4024 = vsub.f32 %v4022, %v4023
    %v4025 = vand.u32 %v4024, 4294901760
    %4026 = vmatmul.mubr.f32.gmra.mrb[0].mxu0 %v4025
    %v4027 = vpop.f32.mrb[0].mxu0
    %v4028 = vadd.f32 %v3951, %v4027
    %v4029 = vpop.f32.mrb[0].mxu0
    %4030 = vdwg.mxu0
    %4031 = vmatprep.subr.mxu0 0.0
    %v4032 = vand.u32 %v27, 4294901760
    %v4033 = vsub.f32 %v27, %v4032
    %v4034 = vand.u32 %v4033, 4294901760
    %v4035 = vsub.f32 %v4033, %v4034
    %v4036 = vand.u32 %v4035, 4294901760
    %4037 = vmatpush1.xpose.msra.mxu0 %v4036
    %4038 = vmatprep.subr.mxu0 0.0
    %v4039 = vand.u32 %v30, 4294901760
    %v4040 = vsub.f32 %v30, %v4039
    %v4041 = vand.u32 %v4040, 4294901760
    %v4042 = vsub.f32 %v4040, %v4041
    %v4043 = vand.u32 %v4042, 4294901760
    %4044 = vmatpush1.xpose.msra.mxu0 %v4043
    %4045 = vmatprep.subr.mxu0 0.0
    %v4046 = vand.u32 %v33, 4294901760
    %v4047 = vsub.f32 %v33, %v4046
    %v4048 = vand.u32 %v4047, 4294901760
    %v4049 = vsub.f32 %v4047, %v4048
    %v4050 = vand.u32 %v4049, 4294901760
    %4051 = vmatpush1.xpose.msra.mxu0 %v4050
    %4052 = vmatprep.subr.mxu0 0.0
    %v4053 = vand.u32 %v36, 4294901760
    %v4054 = vsub.f32 %v36, %v4053
    %v4055 = vand.u32 %v4054, 4294901760
    %v4056 = vsub.f32 %v4054, %v4055
    %v4057 = vand.u32 %v4056, 4294901760
    %4058 = vmatpush1.xpose.msra.mxu0 %v4057
    %4059 = vmatprep.subr.mxu0 0.0
    %4060 = vmatpush1.xpose.msra.mxu0 0.0
    %4061 = vmatprep.subr.mxu0 0.0
    %4062 = vmatpush1.xpose.msra.mxu0 0.0
    %4063 = vmatprep.subr.mxu0 0.0
    %4064 = vmatpush1.xpose.msra.mxu0 0.0
    %4065 = vmatprep.subr.mxu0 0.0
    %4066 = vmatpush1.xpose.msra.mxu0 0.0
    %4067 = vmatprep.subr.mxu0 0.0
    %4068 = vmatpush1.xpose.msra.mxu0 0.0
    %4069 = vmatprep.subr.mxu0 0.0
    %4070 = vmatpush1.xpose.msra.mxu0 0.0
    %4071 = vmatprep.subr.mxu0 0.0
    %4072 = vmatpush1.xpose.msra.mxu0 0.0
    %4073 = vmatprep.subr.mxu0 0.0
    %4074 = vmatpush1.xpose.msra.mxu0 0.0
    %4075 = vmatprep.subr.mxu0 0.0
    %4076 = vmatpush1.xpose.msra.mxu0 0.0
    %4077 = vmatprep.subr.mxu0 0.0
    %4078 = vmatpush1.xpose.msra.mxu0 0.0
    %4079 = vmatprep.subr.mxu0 0.0
    %4080 = vmatpush1.xpose.msra.mxu0 0.0
    %4081 = vmatprep.subr.mxu0 0.0
    %4082 = vmatpush1.xpose.msra.mxu0 0.0
    %4083 = vmatprep.subr.mxu0 0.0
    %4084 = vmatpush1.xpose.msra.mxu0 0.0
    %4085 = vmatprep.subr.mxu0 0.0
    %4086 = vmatpush1.xpose.msra.mxu0 0.0
    %4087 = vmatprep.subr.mxu0 0.0
    %4088 = vmatpush1.xpose.msra.mxu0 0.0
    %4089 = vmatprep.subr.mxu0 0.0
    %4090 = vmatpush1.xpose.msra.mxu0 0.0
    %4091 = vmatprep.subr.mxu0 0.0
    %4092 = vmatpush1.xpose.msra.mxu0 0.0
    %4093 = vmatprep.subr.mxu0 0.0
    %4094 = vmatpush1.xpose.msra.mxu0 0.0
    %4095 = vmatprep.subr.mxu0 0.0
    %4096 = vmatpush1.xpose.msra.mxu0 0.0
    %4097 = vmatprep.subr.mxu0 0.0
    %4098 = vmatpush1.xpose.msra.mxu0 0.0
    %4099 = vmatprep.subr.mxu0 0.0
    %4100 = vmatpush1.xpose.msra.mxu0 0.0
    %4101 = vmatprep.subr.mxu0 0.0
    %4102 = vmatpush1.xpose.msra.mxu0 0.0
    %4103 = vmatprep.subr.mxu0 0.0
    %4104 = vmatpush1.xpose.msra.mxu0 0.0
    %4105 = vmatprep.subr.mxu0 0.0
    %4106 = vmatpush1.xpose.msra.mxu0 0.0
    %4107 = vmatprep.subr.mxu0 0.0
    %4108 = vmatpush1.xpose.msra.mxu0 0.0
    %4109 = vmatprep.subr.mxu0 0.0
    %4110 = vmatpush1.xpose.msra.mxu0 0.0
    %4111 = vmatprep.subr.mxu0 0.0
    %4112 = vmatpush1.xpose.msra.mxu0 0.0
    %4113 = vmatprep.subr.mxu0 0.0
    %4114 = vmatpush1.xpose.msra.mxu0 0.0
    %4115 = vmatprep.mubr.f32.mxu0 0.0
    %v4116 = vand.u32 %v3947, 4294901760
    %4117 = vmatmul.mubr.f32.gmra.mrb[0].mxu0 %v4116
    %v4118 = vpop.f32.mrb[0].mxu0
    %v4119 = vadd.f32 %v4028, %v4118
    %v4120 = vpop.f32.mrb[0].mxu0
    %4121 = vdwg.mxu0
    %4122 = vmatprep.subr.mxu0 0.0
    %v4123 = vand.u32 %v27, 4294901760
    %v4124 = vsub.f32 %v27, %v4123
    %4125 = vmatpush1.xpose.msra.mxu0 %v4124
    %4126 = vmatprep.subr.mxu0 0.0
    %v4127 = vand.u32 %v30, 4294901760
    %v4128 = vsub.f32 %v30, %v4127
    %4129 = vmatpush1.xpose.msra.mxu0 %v4128
    %4130 = vmatprep.subr.mxu0 0.0
    %v4131 = vand.u32 %v33, 4294901760
    %v4132 = vsub.f32 %v33, %v4131
    %4133 = vmatpush1.xpose.msra.mxu0 %v4132
    %4134 = vmatprep.subr.mxu0 0.0
    %v4135 = vand.u32 %v36, 4294901760
    %v4136 = vsub.f32 %v36, %v4135
    %4137 = vmatpush1.xpose.msra.mxu0 %v4136
    %4138 = vmatprep.subr.mxu0 0.0
    %4139 = vmatpush1.xpose.msra.mxu0 0.0
    %4140 = vmatprep.subr.mxu0 0.0
    %4141 = vmatpush1.xpose.msra.mxu0 0.0
    %4142 = vmatprep.subr.mxu0 0.0
    %4143 = vmatpush1.xpose.msra.mxu0 0.0
    %4144 = vmatprep.subr.mxu0 0.0
    %4145 = vmatpush1.xpose.msra.mxu0 0.0
    %4146 = vmatprep.subr.mxu0 0.0
    %4147 = vmatpush1.xpose.msra.mxu0 0.0
    %4148 = vmatprep.subr.mxu0 0.0
    %4149 = vmatpush1.xpose.msra.mxu0 0.0
    %4150 = vmatprep.subr.mxu0 0.0
    %4151 = vmatpush1.xpose.msra.mxu0 0.0
    %4152 = vmatprep.subr.mxu0 0.0
    %4153 = vmatpush1.xpose.msra.mxu0 0.0
    %4154 = vmatprep.subr.mxu0 0.0
    %4155 = vmatpush1.xpose.msra.mxu0 0.0
    %4156 = vmatprep.subr.mxu0 0.0
    %4157 = vmatpush1.xpose.msra.mxu0 0.0
    %4158 = vmatprep.subr.mxu0 0.0
    %4159 = vmatpush1.xpose.msra.mxu0 0.0
    %4160 = vmatprep.subr.mxu0 0.0
    %4161 = vmatpush1.xpose.msra.mxu0 0.0
    %4162 = vmatprep.subr.mxu0 0.0
    %4163 = vmatpush1.xpose.msra.mxu0 0.0
    %4164 = vmatprep.subr.mxu0 0.0
    %4165 = vmatpush1.xpose.msra.mxu0 0.0
    %4166 = vmatprep.subr.mxu0 0.0
    %4167 = vmatpush1.xpose.msra.mxu0 0.0
    %4168 = vmatprep.subr.mxu0 0.0
    %4169 = vmatpush1.xpose.msra.mxu0 0.0
    %4170 = vmatprep.subr.mxu0 0.0
    %4171 = vmatpush1.xpose.msra.mxu0 0.0
    %4172 = vmatprep.subr.mxu0 0.0
    %4173 = vmatpush1.xpose.msra.mxu0 0.0
    %4174 = vmatprep.subr.mxu0 0.0
    %4175 = vmatpush1.xpose.msra.mxu0 0.0
    %4176 = vmatprep.subr.mxu0 0.0
    %4177 = vmatpush1.xpose.msra.mxu0 0.0
    %4178 = vmatprep.subr.mxu0 0.0
    %4179 = vmatpush1.xpose.msra.mxu0 0.0
    %4180 = vmatprep.subr.mxu0 0.0
    %4181 = vmatpush1.xpose.msra.mxu0 0.0
    %4182 = vmatprep.subr.mxu0 0.0
    %4183 = vmatpush1.xpose.msra.mxu0 0.0
    %4184 = vmatprep.subr.mxu0 0.0
    %4185 = vmatpush1.xpose.msra.mxu0 0.0
    %4186 = vmatprep.subr.mxu0 0.0
    %4187 = vmatpush1.xpose.msra.mxu0 0.0
    %4188 = vmatprep.subr.mxu0 0.0
    %4189 = vmatpush1.xpose.msra.mxu0 0.0
    %4190 = vmatprep.subr.mxu0 0.0
    %4191 = vmatpush1.xpose.msra.mxu0 0.0
    %4192 = vmatprep.subr.mxu0 0.0
    %4193 = vmatpush1.xpose.msra.mxu0 0.0
    %4194 = vmatprep.mubr.f32.mxu0 0.0
    %v4195 = vand.u32 %v3947, 4294901760
    %v4196 = vsub.f32 %v3947, %v4195
    %4197 = vmatmul.mubr.f32.gmra.mrb[0].mxu0 %v4196
    %v4198 = vpop.f32.mrb[0].mxu0
    %v4199 = vadd.f32 %v4119, %v4198
    %v4200 = vpop.f32.mrb[0].mxu0
    %4201 = vdwg.mxu0
    %4202 = vmatprep.subr.mxu0 0.0
    %v4203 = vand.u32 %v27, 4294901760
    %4204 = vmatpush1.xpose.msra.mxu0 %v4203
    %4205 = vmatprep.subr.mxu0 0.0
    %v4206 = vand.u32 %v30, 4294901760
    %4207 = vmatpush1.xpose.msra.mxu0 %v4206
    %4208 = vmatprep.subr.mxu0 0.0
    %v4209 = vand.u32 %v33, 4294901760
    %4210 = vmatpush1.xpose.msra.mxu0 %v4209
    %4211 = vmatprep.subr.mxu0 0.0
    %v4212 = vand.u32 %v36, 4294901760
    %4213 = vmatpush1.xpose.msra.mxu0 %v4212
    %4214 = vmatprep.subr.mxu0 0.0
    %4215 = vmatpush1.xpose.msra.mxu0 0.0
    %4216 = vmatprep.subr.mxu0 0.0
    %4217 = vmatpush1.xpose.msra.mxu0 0.0
    %4218 = vmatprep.subr.mxu0 0.0
    %4219 = vmatpush1.xpose.msra.mxu0 0.0
    %4220 = vmatprep.subr.mxu0 0.0
    %4221 = vmatpush1.xpose.msra.mxu0 0.0
    %4222 = vmatprep.subr.mxu0 0.0
    %4223 = vmatpush1.xpose.msra.mxu0 0.0
    %4224 = vmatprep.subr.mxu0 0.0
    %4225 = vmatpush1.xpose.msra.mxu0 0.0
    %4226 = vmatprep.subr.mxu0 0.0
    %4227 = vmatpush1.xpose.msra.mxu0 0.0
    %4228 = vmatprep.subr.mxu0 0.0
    %4229 = vmatpush1.xpose.msra.mxu0 0.0
    %4230 = vmatprep.subr.mxu0 0.0
    %4231 = vmatpush1.xpose.msra.mxu0 0.0
    %4232 = vmatprep.subr.mxu0 0.0
    %4233 = vmatpush1.xpose.msra.mxu0 0.0
    %4234 = vmatprep.subr.mxu0 0.0
    %4235 = vmatpush1.xpose.msra.mxu0 0.0
    %4236 = vmatprep.subr.mxu0 0.0
    %4237 = vmatpush1.xpose.msra.mxu0 0.0
    %4238 = vmatprep.subr.mxu0 0.0
    %4239 = vmatpush1.xpose.msra.mxu0 0.0
    %4240 = vmatprep.subr.mxu0 0.0
    %4241 = vmatpush1.xpose.msra.mxu0 0.0
    %4242 = vmatprep.subr.mxu0 0.0
    %4243 = vmatpush1.xpose.msra.mxu0 0.0
    %4244 = vmatprep.subr.mxu0 0.0
    %4245 = vmatpush1.xpose.msra.mxu0 0.0
    %4246 = vmatprep.subr.mxu0 0.0
    %4247 = vmatpush1.xpose.msra.mxu0 0.0
    %4248 = vmatprep.subr.mxu0 0.0
    %4249 = vmatpush1.xpose.msra.mxu0 0.0
    %4250 = vmatprep.subr.mxu0 0.0
    %4251 = vmatpush1.xpose.msra.mxu0 0.0
    %4252 = vmatprep.subr.mxu0 0.0
    %4253 = vmatpush1.xpose.msra.mxu0 0.0
    %4254 = vmatprep.subr.mxu0 0.0
    %4255 = vmatpush1.xpose.msra.mxu0 0.0
    %4256 = vmatprep.subr.mxu0 0.0
    %4257 = vmatpush1.xpose.msra.mxu0 0.0
    %4258 = vmatprep.subr.mxu0 0.0
    %4259 = vmatpush1.xpose.msra.mxu0 0.0
    %4260 = vmatprep.subr.mxu0 0.0
    %4261 = vmatpush1.xpose.msra.mxu0 0.0
    %4262 = vmatprep.subr.mxu0 0.0
    %4263 = vmatpush1.xpose.msra.mxu0 0.0
    %4264 = vmatprep.subr.mxu0 0.0
    %4265 = vmatpush1.xpose.msra.mxu0 0.0
    %4266 = vmatprep.subr.mxu0 0.0
    %4267 = vmatpush1.xpose.msra.mxu0 0.0
    %4268 = vmatprep.subr.mxu0 0.0
    %4269 = vmatpush1.xpose.msra.mxu0 0.0
    %4270 = vmatprep.mubr.f32.mxu0 0.0
    %v4271 = vand.u32 %v3947, 4294901760
    %v4272 = vsub.f32 %v3947, %v4271
    %v4273 = vand.u32 %v4272, 4294901760
    %4274 = vmatmul.mubr.f32.gmra.mrb[0].mxu0 %v4273
    %v4275 = vpop.f32.mrb[0].mxu0
    %v4276 = vadd.f32 %v4199, %v4275
    %v4277 = vpop.f32.mrb[0].mxu0
    %4278 = vdwg.mxu0
    %4279 = vmatprep.subr.mxu0 0.0
    %v4280 = vand.u32 %v27, 4294901760
    %v4281 = vsub.f32 %v27, %v4280
    %v4282 = vand.u32 %v4281, 4294901760
    %4283 = vmatpush1.xpose.msra.mxu0 %v4282
    %4284 = vmatprep.subr.mxu0 0.0
    %v4285 = vand.u32 %v30, 4294901760
    %v4286 = vsub.f32 %v30, %v4285
    %v4287 = vand.u32 %v4286, 4294901760
    %4288 = vmatpush1.xpose.msra.mxu0 %v4287
    %4289 = vmatprep.subr.mxu0 0.0
    %v4290 = vand.u32 %v33, 4294901760
    %v4291 = vsub.f32 %v33, %v4290
    %v4292 = vand.u32 %v4291, 4294901760
    %4293 = vmatpush1.xpose.msra.mxu0 %v4292
    %4294 = vmatprep.subr.mxu0 0.0
    %v4295 = vand.u32 %v36, 4294901760
    %v4296 = vsub.f32 %v36, %v4295
    %v4297 = vand.u32 %v4296, 4294901760
    %4298 = vmatpush1.xpose.msra.mxu0 %v4297
    %4299 = vmatprep.subr.mxu0 0.0
    %4300 = vmatpush1.xpose.msra.mxu0 0.0
    %4301 = vmatprep.subr.mxu0 0.0
    %4302 = vmatpush1.xpose.msra.mxu0 0.0
    %4303 = vmatprep.subr.mxu0 0.0
    %4304 = vmatpush1.xpose.msra.mxu0 0.0
    %4305 = vmatprep.subr.mxu0 0.0
    %4306 = vmatpush1.xpose.msra.mxu0 0.0
    %4307 = vmatprep.subr.mxu0 0.0
    %4308 = vmatpush1.xpose.msra.mxu0 0.0
    %4309 = vmatprep.subr.mxu0 0.0
    %4310 = vmatpush1.xpose.msra.mxu0 0.0
    %4311 = vmatprep.subr.mxu0 0.0
    %4312 = vmatpush1.xpose.msra.mxu0 0.0
    %4313 = vmatprep.subr.mxu0 0.0
    %4314 = vmatpush1.xpose.msra.mxu0 0.0
    %4315 = vmatprep.subr.mxu0 0.0
    %4316 = vmatpush1.xpose.msra.mxu0 0.0
    %4317 = vmatprep.subr.mxu0 0.0
    %4318 = vmatpush1.xpose.msra.mxu0 0.0
    %4319 = vmatprep.subr.mxu0 0.0
    %4320 = vmatpush1.xpose.msra.mxu0 0.0
    %4321 = vmatprep.subr.mxu0 0.0
    %4322 = vmatpush1.xpose.msra.mxu0 0.0
    %4323 = vmatprep.subr.mxu0 0.0
    %4324 = vmatpush1.xpose.msra.mxu0 0.0
    %4325 = vmatprep.subr.mxu0 0.0
    %4326 = vmatpush1.xpose.msra.mxu0 0.0
    %4327 = vmatprep.subr.mxu0 0.0
    %4328 = vmatpush1.xpose.msra.mxu0 0.0
    %4329 = vmatprep.subr.mxu0 0.0
    %4330 = vmatpush1.xpose.msra.mxu0 0.0
    %4331 = vmatprep.subr.mxu0 0.0
    %4332 = vmatpush1.xpose.msra.mxu0 0.0
    %4333 = vmatprep.subr.mxu0 0.0
    %4334 = vmatpush1.xpose.msra.mxu0 0.0
    %4335 = vmatprep.subr.mxu0 0.0
    %4336 = vmatpush1.xpose.msra.mxu0 0.0
    %4337 = vmatprep.subr.mxu0 0.0
    %4338 = vmatpush1.xpose.msra.mxu0 0.0
    %4339 = vmatprep.subr.mxu0 0.0
    %4340 = vmatpush1.xpose.msra.mxu0 0.0
    %4341 = vmatprep.subr.mxu0 0.0
    %4342 = vmatpush1.xpose.msra.mxu0 0.0
    %4343 = vmatprep.subr.mxu0 0.0
    %4344 = vmatpush1.xpose.msra.mxu0 0.0
    %4345 = vmatprep.subr.mxu0 0.0
    %4346 = vmatpush1.xpose.msra.mxu0 0.0
    %4347 = vmatprep.subr.mxu0 0.0
    %4348 = vmatpush1.xpose.msra.mxu0 0.0
    %4349 = vmatprep.subr.mxu0 0.0
    %4350 = vmatpush1.xpose.msra.mxu0 0.0
    %4351 = vmatprep.subr.mxu0 0.0
    %4352 = vmatpush1.xpose.msra.mxu0 0.0
    %4353 = vmatprep.subr.mxu0 0.0
    %4354 = vmatpush1.xpose.msra.mxu0 0.0
    %4355 = vmatprep.mubr.f32.mxu0 0.0
    %v4356 = vand.u32 %v3947, 4294901760
    %4357 = vmatmul.mubr.f32.gmra.mrb[0].mxu0 %v4356
    %v4358 = vpop.f32.mrb[0].mxu0
    %v4359 = vadd.f32 %v4276, %v4358
    %v4360 = vpop.f32.mrb[0].mxu0
    %4361 = vdwg.mxu0
    %4362 = vmatprep.subr.mxu0 0.0
    %v4363 = vand.u32 %v27, 4294901760
    %4364 = vmatpush1.xpose.msra.mxu0 %v4363
    %4365 = vmatprep.subr.mxu0 0.0
    %v4366 = vand.u32 %v30, 4294901760
    %4367 = vmatpush1.xpose.msra.mxu0 %v4366
    %4368 = vmatprep.subr.mxu0 0.0
    %v4369 = vand.u32 %v33, 4294901760
    %4370 = vmatpush1.xpose.msra.mxu0 %v4369
    %4371 = vmatprep.subr.mxu0 0.0
    %v4372 = vand.u32 %v36, 4294901760
    %4373 = vmatpush1.xpose.msra.mxu0 %v4372
    %4374 = vmatprep.subr.mxu0 0.0
    %4375 = vmatpush1.xpose.msra.mxu0 0.0
    %4376 = vmatprep.subr.mxu0 0.0
    %4377 = vmatpush1.xpose.msra.mxu0 0.0
    %4378 = vmatprep.subr.mxu0 0.0
    %4379 = vmatpush1.xpose.msra.mxu0 0.0
    %4380 = vmatprep.subr.mxu0 0.0
    %4381 = vmatpush1.xpose.msra.mxu0 0.0
    %4382 = vmatprep.subr.mxu0 0.0
    %4383 = vmatpush1.xpose.msra.mxu0 0.0
    %4384 = vmatprep.subr.mxu0 0.0
    %4385 = vmatpush1.xpose.msra.mxu0 0.0
    %4386 = vmatprep.subr.mxu0 0.0
    %4387 = vmatpush1.xpose.msra.mxu0 0.0
    %4388 = vmatprep.subr.mxu0 0.0
    %4389 = vmatpush1.xpose.msra.mxu0 0.0
    %4390 = vmatprep.subr.mxu0 0.0
    %4391 = vmatpush1.xpose.msra.mxu0 0.0
    %4392 = vmatprep.subr.mxu0 0.0
    %4393 = vmatpush1.xpose.msra.mxu0 0.0
    %4394 = vmatprep.subr.mxu0 0.0
    %4395 = vmatpush1.xpose.msra.mxu0 0.0
    %4396 = vmatprep.subr.mxu0 0.0
    %4397 = vmatpush1.xpose.msra.mxu0 0.0
    %4398 = vmatprep.subr.mxu0 0.0
    %4399 = vmatpush1.xpose.msra.mxu0 0.0
    %4400 = vmatprep.subr.mxu0 0.0
    %4401 = vmatpush1.xpose.msra.mxu0 0.0
    %4402 = vmatprep.subr.mxu0 0.0
    %4403 = vmatpush1.xpose.msra.mxu0 0.0
    %4404 = vmatprep.subr.mxu0 0.0
    %4405 = vmatpush1.xpose.msra.mxu0 0.0
    %4406 = vmatprep.subr.mxu0 0.0
    %4407 = vmatpush1.xpose.msra.mxu0 0.0
    %4408 = vmatprep.subr.mxu0 0.0
    %4409 = vmatpush1.xpose.msra.mxu0 0.0
    %4410 = vmatprep.subr.mxu0 0.0
    %4411 = vmatpush1.xpose.msra.mxu0 0.0
    %4412 = vmatprep.subr.mxu0 0.0
    %4413 = vmatpush1.xpose.msra.mxu0 0.0
    %4414 = vmatprep.subr.mxu0 0.0
    %4415 = vmatpush1.xpose.msra.mxu0 0.0
    %4416 = vmatprep.subr.mxu0 0.0
    %4417 = vmatpush1.xpose.msra.mxu0 0.0
    %4418 = vmatprep.subr.mxu0 0.0
    %4419 = vmatpush1.xpose.msra.mxu0 0.0
    %4420 = vmatprep.subr.mxu0 0.0
    %4421 = vmatpush1.xpose.msra.mxu0 0.0
    %4422 = vmatprep.subr.mxu0 0.0
    %4423 = vmatpush1.xpose.msra.mxu0 0.0
    %4424 = vmatprep.subr.mxu0 0.0
    %4425 = vmatpush1.xpose.msra.mxu0 0.0
    %4426 = vmatprep.subr.mxu0 0.0
    %4427 = vmatpush1.xpose.msra.mxu0 0.0
    %4428 = vmatprep.subr.mxu0 0.0
    %4429 = vmatpush1.xpose.msra.mxu0 0.0
    %4430 = vmatprep.mubr.f32.mxu0 0.0
    %v4431 = vand.u32 %v3947, 4294901760
    %4432 = vmatmul.mubr.f32.gmra.mrb[0].mxu0 %v4431
    %v4433 = vpop.f32.mrb[0].mxu0
    %v4434 = vadd.f32 %v4359, %v4433
    %v4435 = vpop.f32.mrb[0].mxu0
    %4436 = vdwg.mxu0
    %v4437 = vadd.f32 %v3406, %v4434
    %4438 = vst.msk [vmem:[#allocation2] sm:$0xff] %vm38, %v4437
    // Predicated region
    $region26: #{tpu_custom_call.1} parent=1 // pred_check
      _
    $region27: #{tpu_custom_call.1} parent=1 // pred_check_branch
      %4440 = sbr.rel (0) target = $region29
    $region28: #{tpu_custom_call.1} parent=1 // pred_region
      %s4442 = ssub.s32 128, 128
      %4443 = vsyncadd [#allocation3], %s4442
      %s4445 = sshll.u32 [#allocation2], 4
      %s4446 = int_to_ptr.vmem [resolvable:$true] %s4445
      %4448 = dma.vmem_to_hbm [thread:$0]  %s4446, 128, %s6, [#allocation3]
    $region29: #{tpu_custom_call.1} parent=1 // pred_fallthru
      _
    // Predicated region
    $region30: #{tpu_custom_call.1} parent=1 // pred_check
      _
    $region31: #{tpu_custom_call.1} parent=1 // pred_check_branch
      %4450 = sbr.rel (0) target = $region33
    $region32: #{tpu_custom_call.1} parent=1 // pred_region
      %4451 = dma.done [#allocation3], 128
    $region33: #{tpu_custom_call.1} parent=1 // pred_fallthru
      _
    %4452 = vsyncpa [#allocation3], 1

</llo_original>
